<compile_context>
chip_gen: v5e
topology: v5e:2x2
jax: 0.10.0
libtpu: 0.0.40
codegen_flags: <defaults>
</compile_context>

<pallas_src>
import functools
import math

import jax
import jax.numpy as jnp
from jax.experimental import pallas as pl
from jax.experimental.pallas import tpu as pltpu

# ----------------------------- configuration --------------------------------
NODE_DICT = {"A": 0, "B": 1}
CANONICAL_ETYPES = [("A", "ab", "B"), ("B", "ba", "A"), ("A", "aa", "A")]
EDGE_DICT = {et: i for i, et in enumerate(CANONICAL_ETYPES)}

N_NODES = {"A": 8, "B": 8}
N_INP = 16
N_HID = 32
N_OUT = 8
N_HEADS = 4
N_LAYERS = 2
D_K = N_HID // N_HEADS
NUM_TYPES = len(NODE_DICT)
NUM_RELS = len(EDGE_DICT)
INV_SQRT_DK = 1.0 / math.sqrt(D_K)
INV_SQRT2 = 1.0 / math.sqrt(2.0)

# Offsets into the packed Q|K|V weight/bias slabs (dim 0).
OFF_Q = 0
OFF_K = N_LAYERS * NUM_TYPES
OFF_V = OFF_K + N_LAYERS * NUM_RELS

# Number of canonical edge types delivering messages into each dst node type.
ETYPE_COUNT_PER_DST = [0] * NUM_TYPES
for (_s, _e, _d) in CANONICAL_ETYPES:
    ETYPE_COUNT_PER_DST[NODE_DICT[_d]] += 1

_VMEM = pl.BlockSpec(memory_space=pltpu.MemorySpace.VMEM)
_SMEM = pl.BlockSpec(memory_space=pltpu.MemorySpace.SMEM)


# ----------------------------- fused Pallas kernel ---------------------------
def _fused_hgt_kernel(xa_ref, xb_ref, masks_ref, aw_ref, ab_ref,
                      wqkv_ref, bqkv_ref, wa_ref, tvec_ref,
                      ow_ref, ob_ref, oma_ref, out_ref, *, out_nid):
    """Whole HGT forward: adapt+GELU, N_LAYERS HGT layers, output linear."""

    # ---- input adaptation + exact-erf GELU (both node types) ----------------
    x_refs = (xa_ref, xb_ref)
    h = []
    for t in range(NUM_TYPES):
        z = (jnp.dot(x_refs[t][...], aw_ref[t], preferred_element_type=jnp.float32)
             + ab_ref[t])
        h.append(0.5 * z * (1.0 + jax.lax.erf(z * INV_SQRT2)))

    # ---- HGT layers (fully unrolled; all weights already preprocessed) ------
    for l in range(N_LAYERS):
        # Head-major broadcast of the current features, reused for Q/K/V bmms.
        hb = [jnp.broadcast_to(h[t][None], (N_HEADS, h[t].shape[0], N_HID))
              for t in range(NUM_TYPES)]

        # Per-dst-type query: (H, N, d_k), computed once per node type.
        q3 = []
        for t in range(NUM_TYPES):
            idx = OFF_Q + l * NUM_TYPES + t
            q3.append(jnp.einsum("hnd,hdf->hnf", hb[t], wqkv_ref[idx],
                                 preferred_element_type=jnp.float32)
                      + bqkv_ref[idx])

        # Per-edge-type attention + aggregation (relation transforms and
        # relation_pri / sqrt(d_k) are folded into the K/V weights at init).
        agg = [None] * NUM_TYPES                      # summed (H, Ndst, d_k)
        for (src, _et, dst), eid in EDGE_DICT.items():
            sid, did = NODE_DICT[src], NODE_DICT[dst]
            k_idx = OFF_K + l * NUM_RELS + eid
            v_idx = OFF_V + l * NUM_RELS + eid
            k3 = (jnp.einsum("hnd,hdf->hnf", hb[sid], wqkv_ref[k_idx],
                             preferred_element_type=jnp.float32)
                  + bqkv_ref[k_idx])                  # (H, Nsrc, d_k)
            v3 = (jnp.einsum("hnd,hdf->hnf", hb[sid], wqkv_ref[v_idx],
                             preferred_element_type=jnp.float32)
                  + bqkv_ref[v_idx])                  # (H, Nsrc, d_k)

            s = jnp.einsum("hqd,hkd->hqk", q3[did], k3,
                           preferred_element_type=jnp.float32)   # (H, Nd, Ns)
            mask3 = masks_ref[eid][None, :, :]                   # (1, Nd, Ns)
            s = jnp.where(mask3 > 0.5, s, jnp.float32(-1e30))
            m = jnp.max(s, axis=-1, keepdims=True)
            p = jnp.exp(s - m) * mask3                           # masked rows -> 0
            denom = jnp.sum(p, axis=-1, keepdims=True)
            inv = 1.0 / jnp.maximum(denom, jnp.float32(1e-30))   # no inf/NaN ever
            o3 = jnp.einsum("hqk,hkd->hqd", p, v3,
                            preferred_element_type=jnp.float32) * inv
            agg[did] = o3 if agg[did] is None else agg[did] + o3

        # Epilogue per node type: mean over edge types, 'a' projection (with
        # sigmoid(skip) folded in), residual blend, LayerNorm.
        new_h = []
        for t in range(NUM_TYPES):
            lt = l * NUM_TYPES + t
            o3 = agg[t] * jnp.float32(1.0 / float(ETYPE_COUNT_PER_DST[t]))
            # TODO(synk): nn.Dropout(0.2) omitted — eval-mode identity.
            trans = tvec_ref[lt, 0]                       # (1, N_HID) = alpha * a_b
            for hh in range(N_HEADS):
                trans = trans + jnp.dot(o3[hh], wa_ref[lt, hh],
                                        preferred_element_type=jnp.float32)
            out = trans + h[t] * oma_ref[lt]              # alpha*W_a(t) + (1-alpha)*h
            mu = jnp.mean(out, axis=-1, keepdims=True)
            var = jnp.mean((out - mu) ** 2, axis=-1, keepdims=True)
            new_h.append((out - mu) * jax.lax.rsqrt(var + 1e-5)
                         * tvec_ref[lt, 1] + tvec_ref[lt, 2])
        h = new_h

    # ---- output linear -------------------------------------------------------
    out_ref[...] = (jnp.dot(h[out_nid], ow_ref[...],
                            preferred_element_type=jnp.float32) + ob_ref[...])


# ----------------------------- wrapper ---------------------------------------
@functools.partial(jax.jit, static_argnames=("out_key",))
def hgt_forward(packed, xa, xb, masks_stacked, out_key):
    out_nid = NODE_DICT[out_key]
    n_out_nodes = xa.shape[0] if out_nid == 0 else xb.shape[0]
    kernel = functools.partial(_fused_hgt_kernel, out_nid=out_nid)
    return pl.pallas_call(
        kernel,
        out_shape=jax.ShapeDtypeStruct((n_out_nodes, N_OUT), jnp.float32),
        in_specs=[_VMEM] * 11 + [_SMEM],
        out_specs=_VMEM,
        compiler_params=pltpu.CompilerParams(vmem_limit_bytes=4 * 1024 * 1024),
    )(xa, xb, masks_stacked,
      packed["adapt_w"], packed["adapt_b"],
      packed["wqkv"], packed["bqkv"], packed["wa"], packed["tvec"],
      packed["out_w"], packed["out_b"], packed["oma"])


# ----------------------------- parameters ------------------------------------
def init_params(key):
    """Raw parameters with PyTorch-equivalent initializers."""
    keys = iter(jax.random.split(key, 512))

    def nxt():
        return next(keys)

    def lin(din, dout):
        bound = 1.0 / math.sqrt(din)
        w = jax.random.uniform(nxt(), (din, dout), jnp.float32, -bound, bound)
        b = jax.random.uniform(nxt(), (dout,), jnp.float32, -bound, bound)
        return w, b

    params = {}
    aw, ab = [], []
    for _ in range(NUM_TYPES):
        w, b = lin(N_INP, N_HID)
        aw.append(w)
        ab.append(b)
    params["adapt_w"] = jnp.stack(aw)
    params["adapt_b"] = jnp.stack(ab)

    xav = math.sqrt(6.0 / (D_K + D_K))
    layers = []
    for _ in range(N_LAYERS):
        lp = {}
        for name in ("k", "q", "v", "a"):
            ws, bs = [], []
            for _ in range(NUM_TYPES):
                w, b = lin(N_HID, N_HID)
                ws.append(w)
                bs.append(b)
            lp[name + "_w"] = jnp.stack(ws)
            lp[name + "_b"] = jnp.stack(bs)
        lp["rel_pri"] = jnp.ones((NUM_RELS, N_HEADS), jnp.float32)
        lp["rel_att"] = jax.random.uniform(
            nxt(), (NUM_RELS, N_HEADS, D_K, D_K), jnp.float32, -xav, xav)
        lp["rel_msg"] = jax.random.uniform(
            nxt(), (NUM_RELS, N_HEADS, D_K, D_K), jnp.float32, -xav, xav)
        lp["skip"] = jnp.ones((NUM_TYPES,), jnp.float32)
        lp["ln_g"] = jnp.ones((NUM_TYPES, N_HID), jnp.float32)
        lp["ln_b"] = jnp.zeros((NUM_TYPES, N_HID), jnp.float32)
        layers.append(lp)
    params["layers"] = layers
    params["out_w"], params["out_b"] = lin(N_HID, N_OUT)
    return params


def pack_params(params):
    """One-time (init-time) preprocessing into the kernel's packed slabs."""
    def head_major(w):                 # (n_hid, n_hid) -> (H, n_hid, d_k)
        return w.reshape(N_HID, N_HEADS, D_K).transpose(1, 0, 2)

    def head_bias(b):                  # (n_hid,) -> (H, 1, d_k)
        return b.reshape(N_HEADS, 1, D_K)

    wq, bq, wk, bk, wv, bv = [], [], [], [], [], []
    wa, tvec, oma = [], [], []
    for lp in params["layers"]:
        alpha = jax.nn.sigmoid(lp["skip"])                          # (T,)
        for t in range(NUM_TYPES):
            wq.append(head_major(lp["q_w"][t]))
            bq.append(head_bias(lp["q_b"][t]))
            # 'a' projection with sigmoid(skip) folded in, rows split by head.
            wa.append(lp["a_w"][t].reshape(N_HEADS, D_K, N_HID) * alpha[t])
            ab = (lp["a_b"][t] * alpha[t]).reshape(1, N_HID)
            tvec.append(jnp.stack([ab,
                                   lp["ln_g"][t].reshape(1, N_HID),
                                   lp["ln_b"][t].reshape(1, N_HID)]))
            oma.append(1.0 - alpha[t])
        for (src, _et, _dst), eid in EDGE_DICT.items():
            sid = NODE_DICT[src]
            scale = (lp["rel_pri"][eid] * INV_SQRT_DK)[:, None, None]   # (H,1,1)
            kw = jnp.einsum("hdf,hfg->hdg", head_major(lp["k_w"][sid]),
                            lp["rel_att"][eid]) * scale
            kb = jnp.einsum("hif,hfg->hig", head_bias(lp["k_b"][sid]),
                            lp["rel_att"][eid]) * scale
            vw = jnp.einsum("hdf,hfg->hdg", head_major(lp["v_w"][sid]),
                            lp["rel_msg"][eid])
            vb = jnp.einsum("hif,hfg->hig", head_bias(lp["v_b"][sid]),
                            lp["rel_msg"][eid])
            wk.append(kw); bk.append(kb); wv.append(vw); bv.append(vb)

    return {
        "adapt_w": params["adapt_w"],                       # (T, n_inp, n_hid)
        "adapt_b": params["adapt_b"][:, None, :],           # (T, 1, n_hid)
        "wqkv": jnp.stack(wq + wk + wv),                    # (L*T+2*L*R, H, n_hid, d_k)
        "bqkv": jnp.stack(bq + bk + bv),                    # (L*T+2*L*R, H, 1, d_k)
        "wa": jnp.stack(wa),                                # (L*T, H, d_k, n_hid)
        "tvec": jnp.stack(tvec),                            # (L*T, 3, 1, n_hid)
        "oma": jnp.stack(oma).astype(jnp.float32),          # (L*T,)  SMEM scalars
        "out_w": params["out_w"],                           # (n_hid, n_out)
        "out_b": params["out_b"].reshape(1, N_OUT),
    }


# ----------------------------- main -------------------------------------------
if __name__ == "__main__":
    root = jax.random.PRNGKey(0)
    k_param, k_feat_a, k_feat_b, k_m0, k_m1, k_m2 = jax.random.split(root, 6)

    params = init_params(k_param)
    packed = pack_params(params)                 # one-time, outside the jit

    feats_a = jax.random.normal(k_feat_a, (N_NODES["A"], N_INP), jnp.float32)
    feats_b = jax.random.normal(k_feat_b, (N_NODES["B"], N_INP), jnp.float32)

    def make_mask(key, ndst, nsrc):
        m = jax.random.bernoulli(key, 0.4, (ndst, nsrc))
        m = m | jnp.eye(ndst, nsrc, dtype=bool)   # every dst gets >=1 in-edge
        return m.astype(jnp.float32)

    masks = {
        ("A", "ab", "B"): make_mask(k_m0, N_NODES["B"], N_NODES["A"]),
        ("B", "ba", "A"): make_mask(k_m1, N_NODES["A"], N_NODES["B"]),
        ("A", "aa", "A"): make_mask(k_m2, N_NODES["A"], N_NODES["A"]),
    }
    masks_stacked = jnp.stack([masks[et] for et in CANONICAL_ETYPES])

    out = hgt_forward(packed, feats_a, feats_b, masks_stacked, out_key="A")
    out = jax.block_until_ready(out)
    assert out.shape == (N_NODES["A"], N_OUT)
    assert bool(jnp.all(jnp.isfinite(out)))
    print("KERNEL_OK")
</pallas_src>

<mosaic_0001>
module attributes {stable_mosaic.version = 11 : i64} {
  func.func @_fused_hgt_kernel(%arg0: memref<8x16xf32, #tpu.memory_space<vmem>>, %arg1: memref<8x16xf32, #tpu.memory_space<vmem>>, %arg2: memref<3x8x8xf32, #tpu.memory_space<vmem>>, %arg3: memref<2x16x32xf32, #tpu.memory_space<vmem>>, %arg4: memref<2x1x32xf32, #tpu.memory_space<vmem>>, %arg5: memref<16x4x32x8xf32, #tpu.memory_space<vmem>>, %arg6: memref<16x4x1x8xf32, #tpu.memory_space<vmem>>, %arg7: memref<4x4x8x32xf32, #tpu.memory_space<vmem>>, %arg8: memref<4x3x1x32xf32, #tpu.memory_space<vmem>>, %arg9: memref<32x8xf32, #tpu.memory_space<vmem>>, %arg10: memref<1x8xf32, #tpu.memory_space<vmem>>, %arg11: memref<4xf32, #tpu.memory_space<smem>>, %arg12: memref<8x8xf32, #tpu.memory_space<vmem>>) attributes {dimension_semantics = [], scalar_prefetch = 0 : i64, scratch_operands = 0 : i64, tpu.core_type = #tpu.core_type<tc>} {
    %c0 = arith.constant 0 : index
    %c0_0 = arith.constant 0 : index
    %0 = vector.load %arg0[%c0, %c0_0] : memref<8x16xf32, #tpu.memory_space<vmem>>, vector<8x16xf32>
    %c0_1 = arith.constant 0 : index
    %c0_2 = arith.constant 0 : index
    %c0_3 = arith.constant 0 : index
    %1 = vector.load %arg3[%c0_1, %c0_2, %c0_3] : memref<2x16x32xf32, #tpu.memory_space<vmem>>, vector<1x16x32xf32>
    %2 = vector.shape_cast %1 : vector<1x16x32xf32> to vector<16x32xf32>
    %cst = arith.constant dense<0.000000e+00> : vector<8x32xf32>
    %3 = tpu.matmul %0, %2, %cst {dimension_numbers = #tpu.dot_dimension_numbers<[1], [0], [0], [1], [0, 0, 1, 1], [], []>} : vector<8x16xf32>, vector<16x32xf32>, vector<8x32xf32> -> vector<8x32xf32>
    %c0_4 = arith.constant 0 : index
    %c0_5 = arith.constant 0 : index
    %c0_6 = arith.constant 0 : index
    %4 = vector.load %arg4[%c0_4, %c0_5, %c0_6] : memref<2x1x32xf32, #tpu.memory_space<vmem>>, vector<1x1x32xf32>
    %5 = vector.shape_cast %4 : vector<1x1x32xf32> to vector<1x32xf32>
    %6 = vector.broadcast %5 : vector<1x32xf32> to vector<8x32xf32>
    %7 = arith.addf %3, %6 : vector<8x32xf32>
    %cst_7 = arith.constant 5.000000e-01 : f32
    %8 = vector.broadcast %cst_7 : f32 to vector<8x32xf32>
    %9 = arith.mulf %8, %7 : vector<8x32xf32>
    %cst_8 = arith.constant 0.707106769 : f32
    %10 = vector.broadcast %cst_8 : f32 to vector<8x32xf32>
    %11 = arith.mulf %7, %10 : vector<8x32xf32>
    %12 = math.erf %11 : vector<8x32xf32>
    %cst_9 = arith.constant 1.000000e+00 : f32
    %13 = vector.broadcast %cst_9 : f32 to vector<8x32xf32>
    %14 = arith.addf %13, %12 : vector<8x32xf32>
    %15 = arith.mulf %9, %14 : vector<8x32xf32>
    %c0_10 = arith.constant 0 : index
    %c0_11 = arith.constant 0 : index
    %16 = vector.load %arg1[%c0_10, %c0_11] : memref<8x16xf32, #tpu.memory_space<vmem>>, vector<8x16xf32>
    %c1 = arith.constant 1 : index
    %c0_12 = arith.constant 0 : index
    %c0_13 = arith.constant 0 : index
    %17 = vector.load %arg3[%c1, %c0_12, %c0_13] : memref<2x16x32xf32, #tpu.memory_space<vmem>>, vector<1x16x32xf32>
    %18 = vector.shape_cast %17 : vector<1x16x32xf32> to vector<16x32xf32>
    %cst_14 = arith.constant dense<0.000000e+00> : vector<8x32xf32>
    %19 = tpu.matmul %16, %18, %cst_14 {dimension_numbers = #tpu.dot_dimension_numbers<[1], [0], [0], [1], [0, 0, 1, 1], [], []>} : vector<8x16xf32>, vector<16x32xf32>, vector<8x32xf32> -> vector<8x32xf32>
    %c1_15 = arith.constant 1 : index
    %c0_16 = arith.constant 0 : index
    %c0_17 = arith.constant 0 : index
    %20 = vector.load %arg4[%c1_15, %c0_16, %c0_17] : memref<2x1x32xf32, #tpu.memory_space<vmem>>, vector<1x1x32xf32>
    %21 = vector.shape_cast %20 : vector<1x1x32xf32> to vector<1x32xf32>
    %22 = vector.broadcast %21 : vector<1x32xf32> to vector<8x32xf32>
    %23 = arith.addf %19, %22 : vector<8x32xf32>
    %cst_18 = arith.constant 5.000000e-01 : f32
    %24 = vector.broadcast %cst_18 : f32 to vector<8x32xf32>
    %25 = arith.mulf %24, %23 : vector<8x32xf32>
    %cst_19 = arith.constant 0.707106769 : f32
    %26 = vector.broadcast %cst_19 : f32 to vector<8x32xf32>
    %27 = arith.mulf %23, %26 : vector<8x32xf32>
    %28 = math.erf %27 : vector<8x32xf32>
    %cst_20 = arith.constant 1.000000e+00 : f32
    %29 = vector.broadcast %cst_20 : f32 to vector<8x32xf32>
    %30 = arith.addf %29, %28 : vector<8x32xf32>
    %31 = arith.mulf %25, %30 : vector<8x32xf32>
    %32 = vector.shape_cast %15 : vector<8x32xf32> to vector<1x8x32xf32>
    %33 = vector.shape_cast %32 : vector<1x8x32xf32> to vector<1x8x32xf32>
    %34 = vector.broadcast %33 : vector<1x8x32xf32> to vector<4x8x32xf32>
    %35 = vector.shape_cast %31 : vector<8x32xf32> to vector<1x8x32xf32>
    %36 = vector.shape_cast %35 : vector<1x8x32xf32> to vector<1x8x32xf32>
    %37 = vector.broadcast %36 : vector<1x8x32xf32> to vector<4x8x32xf32>
    %c0_21 = arith.constant 0 : index
    %c0_22 = arith.constant 0 : index
    %c0_23 = arith.constant 0 : index
    %c0_24 = arith.constant 0 : index
    %38 = vector.load %arg5[%c0_21, %c0_22, %c0_23, %c0_24] : memref<16x4x32x8xf32, #tpu.memory_space<vmem>>, vector<1x4x32x8xf32>
    %39 = vector.shape_cast %38 : vector<1x4x32x8xf32> to vector<4x32x8xf32>
    "tpu.trace_start"() <{level = 10 : i32, message = "hnd,hdf->hnf"}> : () -> ()
    %cst_25 = arith.constant dense<0.000000e+00> : vector<4x8x8xf32>
    %40 = tpu.matmul %34, %39, %cst_25 {dimension_numbers = #tpu.dot_dimension_numbers<[2], [1], [1], [2], [0, 0, 0, 1, 1, 2], [0], [0]>} : vector<4x8x32xf32>, vector<4x32x8xf32>, vector<4x8x8xf32> -> vector<4x8x8xf32>
    "tpu.trace_stop"() : () -> ()
    %c0_26 = arith.constant 0 : index
    %c0_27 = arith.constant 0 : index
    %c0_28 = arith.constant 0 : index
    %c0_29 = arith.constant 0 : index
    %41 = vector.load %arg6[%c0_26, %c0_27, %c0_28, %c0_29] : memref<16x4x1x8xf32, #tpu.memory_space<vmem>>, vector<1x4x1x8xf32>
    %42 = vector.shape_cast %41 : vector<1x4x1x8xf32> to vector<4x1x8xf32>
    %43 = vector.broadcast %42 : vector<4x1x8xf32> to vector<4x8x8xf32>
    %44 = arith.addf %40, %43 : vector<4x8x8xf32>
    %c1_30 = arith.constant 1 : index
    %c0_31 = arith.constant 0 : index
    %c0_32 = arith.constant 0 : index
    %c0_33 = arith.constant 0 : index
    %45 = vector.load %arg5[%c1_30, %c0_31, %c0_32, %c0_33] : memref<16x4x32x8xf32, #tpu.memory_space<vmem>>, vector<1x4x32x8xf32>
    %46 = vector.shape_cast %45 : vector<1x4x32x8xf32> to vector<4x32x8xf32>
    "tpu.trace_start"() <{level = 10 : i32, message = "hnd,hdf->hnf"}> : () -> ()
    %cst_34 = arith.constant dense<0.000000e+00> : vector<4x8x8xf32>
    %47 = tpu.matmul %37, %46, %cst_34 {dimension_numbers = #tpu.dot_dimension_numbers<[2], [1], [1], [2], [0, 0, 0, 1, 1, 2], [0], [0]>} : vector<4x8x32xf32>, vector<4x32x8xf32>, vector<4x8x8xf32> -> vector<4x8x8xf32>
    "tpu.trace_stop"() : () -> ()
    %c1_35 = arith.constant 1 : index
    %c0_36 = arith.constant 0 : index
    %c0_37 = arith.constant 0 : index
    %c0_38 = arith.constant 0 : index
    %48 = vector.load %arg6[%c1_35, %c0_36, %c0_37, %c0_38] : memref<16x4x1x8xf32, #tpu.memory_space<vmem>>, vector<1x4x1x8xf32>
    %49 = vector.shape_cast %48 : vector<1x4x1x8xf32> to vector<4x1x8xf32>
    %50 = vector.broadcast %49 : vector<4x1x8xf32> to vector<4x8x8xf32>
    %51 = arith.addf %47, %50 : vector<4x8x8xf32>
    %c4 = arith.constant 4 : index
    %c0_39 = arith.constant 0 : index
    %c0_40 = arith.constant 0 : index
    %c0_41 = arith.constant 0 : index
    %52 = vector.load %arg5[%c4, %c0_39, %c0_40, %c0_41] : memref<16x4x32x8xf32, #tpu.memory_space<vmem>>, vector<1x4x32x8xf32>
    %53 = vector.shape_cast %52 : vector<1x4x32x8xf32> to vector<4x32x8xf32>
    "tpu.trace_start"() <{level = 10 : i32, message = "hnd,hdf->hnf"}> : () -> ()
    %cst_42 = arith.constant dense<0.000000e+00> : vector<4x8x8xf32>
    %54 = tpu.matmul %34, %53, %cst_42 {dimension_numbers = #tpu.dot_dimension_numbers<[2], [1], [1], [2], [0, 0, 0, 1, 1, 2], [0], [0]>} : vector<4x8x32xf32>, vector<4x32x8xf32>, vector<4x8x8xf32> -> vector<4x8x8xf32>
    "tpu.trace_stop"() : () -> ()
    %c4_43 = arith.constant 4 : index
    %c0_44 = arith.constant 0 : index
    %c0_45 = arith.constant 0 : index
    %c0_46 = arith.constant 0 : index
    %55 = vector.load %arg6[%c4_43, %c0_44, %c0_45, %c0_46] : memref<16x4x1x8xf32, #tpu.memory_space<vmem>>, vector<1x4x1x8xf32>
    %56 = vector.shape_cast %55 : vector<1x4x1x8xf32> to vector<4x1x8xf32>
    %57 = vector.broadcast %56 : vector<4x1x8xf32> to vector<4x8x8xf32>
    %58 = arith.addf %54, %57 : vector<4x8x8xf32>
    %c10 = arith.constant 10 : index
    %c0_47 = arith.constant 0 : index
    %c0_48 = arith.constant 0 : index
    %c0_49 = arith.constant 0 : index
    %59 = vector.load %arg5[%c10, %c0_47, %c0_48, %c0_49] : memref<16x4x32x8xf32, #tpu.memory_space<vmem>>, vector<1x4x32x8xf32>
    %60 = vector.shape_cast %59 : vector<1x4x32x8xf32> to vector<4x32x8xf32>
    "tpu.trace_start"() <{level = 10 : i32, message = "hnd,hdf->hnf"}> : () -> ()
    %cst_50 = arith.constant dense<0.000000e+00> : vector<4x8x8xf32>
    %61 = tpu.matmul %34, %60, %cst_50 {dimension_numbers = #tpu.dot_dimension_numbers<[2], [1], [1], [2], [0, 0, 0, 1, 1, 2], [0], [0]>} : vector<4x8x32xf32>, vector<4x32x8xf32>, vector<4x8x8xf32> -> vector<4x8x8xf32>
    "tpu.trace_stop"() : () -> ()
    %c10_51 = arith.constant 10 : index
    %c0_52 = arith.constant 0 : index
    %c0_53 = arith.constant 0 : index
    %c0_54 = arith.constant 0 : index
    %62 = vector.load %arg6[%c10_51, %c0_52, %c0_53, %c0_54] : memref<16x4x1x8xf32, #tpu.memory_space<vmem>>, vector<1x4x1x8xf32>
    %63 = vector.shape_cast %62 : vector<1x4x1x8xf32> to vector<4x1x8xf32>
    %64 = vector.broadcast %63 : vector<4x1x8xf32> to vector<4x8x8xf32>
    %65 = arith.addf %61, %64 : vector<4x8x8xf32>
    "tpu.trace_start"() <{level = 10 : i32, message = "hqd,hkd->hqk"}> : () -> ()
    %cst_55 = arith.constant dense<0.000000e+00> : vector<4x8x8xf32>
    %66 = tpu.matmul %51, %58, %cst_55 {dimension_numbers = #tpu.dot_dimension_numbers<[2], [2], [1], [1], [0, 0, 0, 1, 1, 1], [0], [0]>} : vector<4x8x8xf32>, vector<4x8x8xf32>, vector<4x8x8xf32> -> vector<4x8x8xf32>
    "tpu.trace_stop"() : () -> ()
    %c0_56 = arith.constant 0 : index
    %c0_57 = arith.constant 0 : index
    %c0_58 = arith.constant 0 : index
    %67 = vector.load %arg2[%c0_56, %c0_57, %c0_58] : memref<3x8x8xf32, #tpu.memory_space<vmem>>, vector<1x8x8xf32>
    %68 = vector.shape_cast %67 : vector<1x8x8xf32> to vector<8x8xf32>
    %69 = vector.shape_cast %68 : vector<8x8xf32> to vector<1x8x8xf32>
    %cst_59 = arith.constant 5.000000e-01 : f32
    %70 = vector.broadcast %cst_59 : f32 to vector<1x8x8xf32>
    %71 = arith.cmpf ogt, %69, %70 : vector<1x8x8xf32>
    %cst_60 = arith.constant -1.000000e+30 : f32
    %72 = vector.shape_cast %71 : vector<1x8x8xi1> to vector<1x8x8xi1>
    %73 = vector.broadcast %72 : vector<1x8x8xi1> to vector<4x8x8xi1>
    %74 = vector.broadcast %cst_60 : f32 to vector<4x8x8xf32>
    %75 = arith.select %73, %66, %74 : vector<4x8x8xi1>, vector<4x8x8xf32>
    %cst_61 = arith.constant dense<0xFF800000> : vector<4x8xf32>
    %76 = vector.multi_reduction <maximumf>, %75, %cst_61 [2] : vector<4x8x8xf32> to vector<4x8xf32>
    %77 = vector.shape_cast %76 : vector<4x8xf32> to vector<4x8x1xf32>
    %78 = vector.broadcast %77 : vector<4x8x1xf32> to vector<4x8x8xf32>
    %79 = arith.subf %75, %78 : vector<4x8x8xf32>
    %80 = math.exp %79 : vector<4x8x8xf32>
    %81 = vector.broadcast %69 : vector<1x8x8xf32> to vector<4x8x8xf32>
    %82 = arith.mulf %80, %81 : vector<4x8x8xf32>
    %cst_62 = arith.constant dense<0.000000e+00> : vector<4x8xf32>
    %83 = vector.multi_reduction <add>, %82, %cst_62 [2] : vector<4x8x8xf32> to vector<4x8xf32>
    %84 = vector.shape_cast %83 : vector<4x8xf32> to vector<4x8x1xf32>
    %cst_63 = arith.constant 1.000000e-30 : f32
    %85 = vector.broadcast %cst_63 : f32 to vector<4x8x1xf32>
    %86 = arith.maximumf %84, %85 : vector<4x8x1xf32>
    %cst_64 = arith.constant 1.000000e+00 : f32
    %87 = vector.broadcast %cst_64 : f32 to vector<4x8x1xf32>
    %88 = arith.divf %87, %86 : vector<4x8x1xf32>
    "tpu.trace_start"() <{level = 10 : i32, message = "hqk,hkd->hqd"}> : () -> ()
    %cst_65 = arith.constant dense<0.000000e+00> : vector<4x8x8xf32>
    %89 = tpu.matmul %82, %65, %cst_65 {dimension_numbers = #tpu.dot_dimension_numbers<[2], [1], [1], [2], [0, 0, 0, 1, 1, 2], [0], [0]>} : vector<4x8x8xf32>, vector<4x8x8xf32>, vector<4x8x8xf32> -> vector<4x8x8xf32>
    "tpu.trace_stop"() : () -> ()
    %90 = vector.broadcast %88 : vector<4x8x1xf32> to vector<4x8x8xf32>
    %91 = arith.mulf %89, %90 : vector<4x8x8xf32>
    %c5 = arith.constant 5 : index
    %c0_66 = arith.constant 0 : index
    %c0_67 = arith.constant 0 : index
    %c0_68 = arith.constant 0 : index
    %92 = vector.load %arg5[%c5, %c0_66, %c0_67, %c0_68] : memref<16x4x32x8xf32, #tpu.memory_space<vmem>>, vector<1x4x32x8xf32>
    %93 = vector.shape_cast %92 : vector<1x4x32x8xf32> to vector<4x32x8xf32>
    "tpu.trace_start"() <{level = 10 : i32, message = "hnd,hdf->hnf"}> : () -> ()
    %cst_69 = arith.constant dense<0.000000e+00> : vector<4x8x8xf32>
    %94 = tpu.matmul %37, %93, %cst_69 {dimension_numbers = #tpu.dot_dimension_numbers<[2], [1], [1], [2], [0, 0, 0, 1, 1, 2], [0], [0]>} : vector<4x8x32xf32>, vector<4x32x8xf32>, vector<4x8x8xf32> -> vector<4x8x8xf32>
    "tpu.trace_stop"() : () -> ()
    %c5_70 = arith.constant 5 : index
    %c0_71 = arith.constant 0 : index
    %c0_72 = arith.constant 0 : index
    %c0_73 = arith.constant 0 : index
    %95 = vector.load %arg6[%c5_70, %c0_71, %c0_72, %c0_73] : memref<16x4x1x8xf32, #tpu.memory_space<vmem>>, vector<1x4x1x8xf32>
    %96 = vector.shape_cast %95 : vector<1x4x1x8xf32> to vector<4x1x8xf32>
    %97 = vector.broadcast %96 : vector<4x1x8xf32> to vector<4x8x8xf32>
    %98 = arith.addf %94, %97 : vector<4x8x8xf32>
    %c11 = arith.constant 11 : index
    %c0_74 = arith.constant 0 : index
    %c0_75 = arith.constant 0 : index
    %c0_76 = arith.constant 0 : index
    %99 = vector.load %arg5[%c11, %c0_74, %c0_75, %c0_76] : memref<16x4x32x8xf32, #tpu.memory_space<vmem>>, vector<1x4x32x8xf32>
    %100 = vector.shape_cast %99 : vector<1x4x32x8xf32> to vector<4x32x8xf32>
    "tpu.trace_start"() <{level = 10 : i32, message = "hnd,hdf->hnf"}> : () -> ()
    %cst_77 = arith.constant dense<0.000000e+00> : vector<4x8x8xf32>
    %101 = tpu.matmul %37, %100, %cst_77 {dimension_numbers = #tpu.dot_dimension_numbers<[2], [1], [1], [2], [0, 0, 0, 1, 1, 2], [0], [0]>} : vector<4x8x32xf32>, vector<4x32x8xf32>, vector<4x8x8xf32> -> vector<4x8x8xf32>
    "tpu.trace_stop"() : () -> ()
    %c11_78 = arith.constant 11 : index
    %c0_79 = arith.constant 0 : index
    %c0_80 = arith.constant 0 : index
    %c0_81 = arith.constant 0 : index
    %102 = vector.load %arg6[%c11_78, %c0_79, %c0_80, %c0_81] : memref<16x4x1x8xf32, #tpu.memory_space<vmem>>, vector<1x4x1x8xf32>
    %103 = vector.shape_cast %102 : vector<1x4x1x8xf32> to vector<4x1x8xf32>
    %104 = vector.broadcast %103 : vector<4x1x8xf32> to vector<4x8x8xf32>
    %105 = arith.addf %101, %104 : vector<4x8x8xf32>
    "tpu.trace_start"() <{level = 10 : i32, message = "hqd,hkd->hqk"}> : () -> ()
    %cst_82 = arith.constant dense<0.000000e+00> : vector<4x8x8xf32>
    %106 = tpu.matmul %44, %98, %cst_82 {dimension_numbers = #tpu.dot_dimension_numbers<[2], [2], [1], [1], [0, 0, 0, 1, 1, 1], [0], [0]>} : vector<4x8x8xf32>, vector<4x8x8xf32>, vector<4x8x8xf32> -> vector<4x8x8xf32>
    "tpu.trace_stop"() : () -> ()
    %c1_83 = arith.constant 1 : index
    %c0_84 = arith.constant 0 : index
    %c0_85 = arith.constant 0 : index
    %107 = vector.load %arg2[%c1_83, %c0_84, %c0_85] : memref<3x8x8xf32, #tpu.memory_space<vmem>>, vector<1x8x8xf32>
    %108 = vector.shape_cast %107 : vector<1x8x8xf32> to vector<8x8xf32>
    %109 = vector.shape_cast %108 : vector<8x8xf32> to vector<1x8x8xf32>
    %cst_86 = arith.constant 5.000000e-01 : f32
    %110 = vector.broadcast %cst_86 : f32 to vector<1x8x8xf32>
    %111 = arith.cmpf ogt, %109, %110 : vector<1x8x8xf32>
    %cst_87 = arith.constant -1.000000e+30 : f32
    %112 = vector.shape_cast %111 : vector<1x8x8xi1> to vector<1x8x8xi1>
    %113 = vector.broadcast %112 : vector<1x8x8xi1> to vector<4x8x8xi1>
    %114 = vector.broadcast %cst_87 : f32 to vector<4x8x8xf32>
    %115 = arith.select %113, %106, %114 : vector<4x8x8xi1>, vector<4x8x8xf32>
    %cst_88 = arith.constant dense<0xFF800000> : vector<4x8xf32>
    %116 = vector.multi_reduction <maximumf>, %115, %cst_88 [2] : vector<4x8x8xf32> to vector<4x8xf32>
    %117 = vector.shape_cast %116 : vector<4x8xf32> to vector<4x8x1xf32>
    %118 = vector.broadcast %117 : vector<4x8x1xf32> to vector<4x8x8xf32>
    %119 = arith.subf %115, %118 : vector<4x8x8xf32>
    %120 = math.exp %119 : vector<4x8x8xf32>
    %121 = vector.broadcast %109 : vector<1x8x8xf32> to vector<4x8x8xf32>
    %122 = arith.mulf %120, %121 : vector<4x8x8xf32>
    %cst_89 = arith.constant dense<0.000000e+00> : vector<4x8xf32>
    %123 = vector.multi_reduction <add>, %122, %cst_89 [2] : vector<4x8x8xf32> to vector<4x8xf32>
    %124 = vector.shape_cast %123 : vector<4x8xf32> to vector<4x8x1xf32>
    %cst_90 = arith.constant 1.000000e-30 : f32
    %125 = vector.broadcast %cst_90 : f32 to vector<4x8x1xf32>
    %126 = arith.maximumf %124, %125 : vector<4x8x1xf32>
    %cst_91 = arith.constant 1.000000e+00 : f32
    %127 = vector.broadcast %cst_91 : f32 to vector<4x8x1xf32>
    %128 = arith.divf %127, %126 : vector<4x8x1xf32>
    "tpu.trace_start"() <{level = 10 : i32, message = "hqk,hkd->hqd"}> : () -> ()
    %cst_92 = arith.constant dense<0.000000e+00> : vector<4x8x8xf32>
    %129 = tpu.matmul %122, %105, %cst_92 {dimension_numbers = #tpu.dot_dimension_numbers<[2], [1], [1], [2], [0, 0, 0, 1, 1, 2], [0], [0]>} : vector<4x8x8xf32>, vector<4x8x8xf32>, vector<4x8x8xf32> -> vector<4x8x8xf32>
    "tpu.trace_stop"() : () -> ()
    %130 = vector.broadcast %128 : vector<4x8x1xf32> to vector<4x8x8xf32>
    %131 = arith.mulf %129, %130 : vector<4x8x8xf32>
    %c6 = arith.constant 6 : index
    %c0_93 = arith.constant 0 : index
    %c0_94 = arith.constant 0 : index
    %c0_95 = arith.constant 0 : index
    %132 = vector.load %arg5[%c6, %c0_93, %c0_94, %c0_95] : memref<16x4x32x8xf32, #tpu.memory_space<vmem>>, vector<1x4x32x8xf32>
    %133 = vector.shape_cast %132 : vector<1x4x32x8xf32> to vector<4x32x8xf32>
    "tpu.trace_start"() <{level = 10 : i32, message = "hnd,hdf->hnf"}> : () -> ()
    %cst_96 = arith.constant dense<0.000000e+00> : vector<4x8x8xf32>
    %134 = tpu.matmul %34, %133, %cst_96 {dimension_numbers = #tpu.dot_dimension_numbers<[2], [1], [1], [2], [0, 0, 0, 1, 1, 2], [0], [0]>} : vector<4x8x32xf32>, vector<4x32x8xf32>, vector<4x8x8xf32> -> vector<4x8x8xf32>
    "tpu.trace_stop"() : () -> ()
    %c6_97 = arith.constant 6 : index
    %c0_98 = arith.constant 0 : index
    %c0_99 = arith.constant 0 : index
    %c0_100 = arith.constant 0 : index
    %135 = vector.load %arg6[%c6_97, %c0_98, %c0_99, %c0_100] : memref<16x4x1x8xf32, #tpu.memory_space<vmem>>, vector<1x4x1x8xf32>
    %136 = vector.shape_cast %135 : vector<1x4x1x8xf32> to vector<4x1x8xf32>
    %137 = vector.broadcast %136 : vector<4x1x8xf32> to vector<4x8x8xf32>
    %138 = arith.addf %134, %137 : vector<4x8x8xf32>
    %c12 = arith.constant 12 : index
    %c0_101 = arith.constant 0 : index
    %c0_102 = arith.constant 0 : index
    %c0_103 = arith.constant 0 : index
    %139 = vector.load %arg5[%c12, %c0_101, %c0_102, %c0_103] : memref<16x4x32x8xf32, #tpu.memory_space<vmem>>, vector<1x4x32x8xf32>
    %140 = vector.shape_cast %139 : vector<1x4x32x8xf32> to vector<4x32x8xf32>
    "tpu.trace_start"() <{level = 10 : i32, message = "hnd,hdf->hnf"}> : () -> ()
    %cst_104 = arith.constant dense<0.000000e+00> : vector<4x8x8xf32>
    %141 = tpu.matmul %34, %140, %cst_104 {dimension_numbers = #tpu.dot_dimension_numbers<[2], [1], [1], [2], [0, 0, 0, 1, 1, 2], [0], [0]>} : vector<4x8x32xf32>, vector<4x32x8xf32>, vector<4x8x8xf32> -> vector<4x8x8xf32>
    "tpu.trace_stop"() : () -> ()
    %c12_105 = arith.constant 12 : index
    %c0_106 = arith.constant 0 : index
    %c0_107 = arith.constant 0 : index
    %c0_108 = arith.constant 0 : index
    %142 = vector.load %arg6[%c12_105, %c0_106, %c0_107, %c0_108] : memref<16x4x1x8xf32, #tpu.memory_space<vmem>>, vector<1x4x1x8xf32>
    %143 = vector.shape_cast %142 : vector<1x4x1x8xf32> to vector<4x1x8xf32>
    %144 = vector.broadcast %143 : vector<4x1x8xf32> to vector<4x8x8xf32>
    %145 = arith.addf %141, %144 : vector<4x8x8xf32>
    "tpu.trace_start"() <{level = 10 : i32, message = "hqd,hkd->hqk"}> : () -> ()
    %cst_109 = arith.constant dense<0.000000e+00> : vector<4x8x8xf32>
    %146 = tpu.matmul %44, %138, %cst_109 {dimension_numbers = #tpu.dot_dimension_numbers<[2], [2], [1], [1], [0, 0, 0, 1, 1, 1], [0], [0]>} : vector<4x8x8xf32>, vector<4x8x8xf32>, vector<4x8x8xf32> -> vector<4x8x8xf32>
    "tpu.trace_stop"() : () -> ()
    %c2 = arith.constant 2 : index
    %c0_110 = arith.constant 0 : index
    %c0_111 = arith.constant 0 : index
    %147 = vector.load %arg2[%c2, %c0_110, %c0_111] : memref<3x8x8xf32, #tpu.memory_space<vmem>>, vector<1x8x8xf32>
    %148 = vector.shape_cast %147 : vector<1x8x8xf32> to vector<8x8xf32>
    %149 = vector.shape_cast %148 : vector<8x8xf32> to vector<1x8x8xf32>
    %cst_112 = arith.constant 5.000000e-01 : f32
    %150 = vector.broadcast %cst_112 : f32 to vector<1x8x8xf32>
    %151 = arith.cmpf ogt, %149, %150 : vector<1x8x8xf32>
    %cst_113 = arith.constant -1.000000e+30 : f32
    %152 = vector.shape_cast %151 : vector<1x8x8xi1> to vector<1x8x8xi1>
    %153 = vector.broadcast %152 : vector<1x8x8xi1> to vector<4x8x8xi1>
    %154 = vector.broadcast %cst_113 : f32 to vector<4x8x8xf32>
    %155 = arith.select %153, %146, %154 : vector<4x8x8xi1>, vector<4x8x8xf32>
    %cst_114 = arith.constant dense<0xFF800000> : vector<4x8xf32>
    %156 = vector.multi_reduction <maximumf>, %155, %cst_114 [2] : vector<4x8x8xf32> to vector<4x8xf32>
    %157 = vector.shape_cast %156 : vector<4x8xf32> to vector<4x8x1xf32>
    %158 = vector.broadcast %157 : vector<4x8x1xf32> to vector<4x8x8xf32>
    %159 = arith.subf %155, %158 : vector<4x8x8xf32>
    %160 = math.exp %159 : vector<4x8x8xf32>
    %161 = vector.broadcast %149 : vector<1x8x8xf32> to vector<4x8x8xf32>
    %162 = arith.mulf %160, %161 : vector<4x8x8xf32>
    %cst_115 = arith.constant dense<0.000000e+00> : vector<4x8xf32>
    %163 = vector.multi_reduction <add>, %162, %cst_115 [2] : vector<4x8x8xf32> to vector<4x8xf32>
    %164 = vector.shape_cast %163 : vector<4x8xf32> to vector<4x8x1xf32>
    %cst_116 = arith.constant 1.000000e-30 : f32
    %165 = vector.broadcast %cst_116 : f32 to vector<4x8x1xf32>
    %166 = arith.maximumf %164, %165 : vector<4x8x1xf32>
    %cst_117 = arith.constant 1.000000e+00 : f32
    %167 = vector.broadcast %cst_117 : f32 to vector<4x8x1xf32>
    %168 = arith.divf %167, %166 : vector<4x8x1xf32>
    "tpu.trace_start"() <{level = 10 : i32, message = "hqk,hkd->hqd"}> : () -> ()
    %cst_118 = arith.constant dense<0.000000e+00> : vector<4x8x8xf32>
    %169 = tpu.matmul %162, %145, %cst_118 {dimension_numbers = #tpu.dot_dimension_numbers<[2], [1], [1], [2], [0, 0, 0, 1, 1, 2], [0], [0]>} : vector<4x8x8xf32>, vector<4x8x8xf32>, vector<4x8x8xf32> -> vector<4x8x8xf32>
    "tpu.trace_stop"() : () -> ()
    %170 = vector.broadcast %168 : vector<4x8x1xf32> to vector<4x8x8xf32>
    %171 = arith.mulf %169, %170 : vector<4x8x8xf32>
    %172 = arith.addf %131, %171 : vector<4x8x8xf32>
    %cst_119 = arith.constant 5.000000e-01 : f32
    %173 = vector.broadcast %cst_119 : f32 to vector<4x8x8xf32>
    %174 = arith.mulf %172, %173 : vector<4x8x8xf32>
    %c0_120 = arith.constant 0 : index
    %c0_121 = arith.constant 0 : index
    %c0_122 = arith.constant 0 : index
    %c0_123 = arith.constant 0 : index
    %175 = vector.load %arg8[%c0_120, %c0_121, %c0_122, %c0_123] : memref<4x3x1x32xf32, #tpu.memory_space<vmem>>, vector<1x1x1x32xf32>
    %176 = vector.shape_cast %175 : vector<1x1x1x32xf32> to vector<1x32xf32>
    %177 = vector.extract_strided_slice %174 {offsets = [0, 0, 0], sizes = [1, 8, 8], strides = [1, 1, 1]} : vector<4x8x8xf32> to vector<1x8x8xf32>
    %178 = vector.shape_cast %177 : vector<1x8x8xf32> to vector<8x8xf32>
    %c0_124 = arith.constant 0 : index
    %c0_125 = arith.constant 0 : index
    %c0_126 = arith.constant 0 : index
    %c0_127 = arith.constant 0 : index
    %179 = vector.load %arg7[%c0_124, %c0_125, %c0_126, %c0_127] : memref<4x4x8x32xf32, #tpu.memory_space<vmem>>, vector<1x1x8x32xf32>
    %180 = vector.shape_cast %179 : vector<1x1x8x32xf32> to vector<8x32xf32>
    %cst_128 = arith.constant dense<0.000000e+00> : vector<8x32xf32>
    %181 = tpu.matmul %178, %180, %cst_128 {dimension_numbers = #tpu.dot_dimension_numbers<[1], [0], [0], [1], [0, 0, 1, 1], [], []>} : vector<8x8xf32>, vector<8x32xf32>, vector<8x32xf32> -> vector<8x32xf32>
    %182 = vector.broadcast %176 : vector<1x32xf32> to vector<8x32xf32>
    %183 = arith.addf %182, %181 : vector<8x32xf32>
    %184 = vector.extract_strided_slice %174 {offsets = [1, 0, 0], sizes = [1, 8, 8], strides = [1, 1, 1]} : vector<4x8x8xf32> to vector<1x8x8xf32>
    %185 = vector.shape_cast %184 : vector<1x8x8xf32> to vector<8x8xf32>
    %c0_129 = arith.constant 0 : index
    %c1_130 = arith.constant 1 : index
    %c0_131 = arith.constant 0 : index
    %c0_132 = arith.constant 0 : index
    %186 = vector.load %arg7[%c0_129, %c1_130, %c0_131, %c0_132] : memref<4x4x8x32xf32, #tpu.memory_space<vmem>>, vector<1x1x8x32xf32>
    %187 = vector.shape_cast %186 : vector<1x1x8x32xf32> to vector<8x32xf32>
    %cst_133 = arith.constant dense<0.000000e+00> : vector<8x32xf32>
    %188 = tpu.matmul %185, %187, %cst_133 {dimension_numbers = #tpu.dot_dimension_numbers<[1], [0], [0], [1], [0, 0, 1, 1], [], []>} : vector<8x8xf32>, vector<8x32xf32>, vector<8x32xf32> -> vector<8x32xf32>
    %189 = arith.addf %183, %188 : vector<8x32xf32>
    %190 = vector.extract_strided_slice %174 {offsets = [2, 0, 0], sizes = [1, 8, 8], strides = [1, 1, 1]} : vector<4x8x8xf32> to vector<1x8x8xf32>
    %191 = vector.shape_cast %190 : vector<1x8x8xf32> to vector<8x8xf32>
    %c0_134 = arith.constant 0 : index
    %c2_135 = arith.constant 2 : index
    %c0_136 = arith.constant 0 : index
    %c0_137 = arith.constant 0 : index
    %192 = vector.load %arg7[%c0_134, %c2_135, %c0_136, %c0_137] : memref<4x4x8x32xf32, #tpu.memory_space<vmem>>, vector<1x1x8x32xf32>
    %193 = vector.shape_cast %192 : vector<1x1x8x32xf32> to vector<8x32xf32>
    %cst_138 = arith.constant dense<0.000000e+00> : vector<8x32xf32>
    %194 = tpu.matmul %191, %193, %cst_138 {dimension_numbers = #tpu.dot_dimension_numbers<[1], [0], [0], [1], [0, 0, 1, 1], [], []>} : vector<8x8xf32>, vector<8x32xf32>, vector<8x32xf32> -> vector<8x32xf32>
    %195 = arith.addf %189, %194 : vector<8x32xf32>
    %196 = vector.extract_strided_slice %174 {offsets = [3, 0, 0], sizes = [1, 8, 8], strides = [1, 1, 1]} : vector<4x8x8xf32> to vector<1x8x8xf32>
    %197 = vector.shape_cast %196 : vector<1x8x8xf32> to vector<8x8xf32>
    %c0_139 = arith.constant 0 : index
    %c3 = arith.constant 3 : index
    %c0_140 = arith.constant 0 : index
    %c0_141 = arith.constant 0 : index
    %198 = vector.load %arg7[%c0_139, %c3, %c0_140, %c0_141] : memref<4x4x8x32xf32, #tpu.memory_space<vmem>>, vector<1x1x8x32xf32>
    %199 = vector.shape_cast %198 : vector<1x1x8x32xf32> to vector<8x32xf32>
    %cst_142 = arith.constant dense<0.000000e+00> : vector<8x32xf32>
    %200 = tpu.matmul %197, %199, %cst_142 {dimension_numbers = #tpu.dot_dimension_numbers<[1], [0], [0], [1], [0, 0, 1, 1], [], []>} : vector<8x8xf32>, vector<8x32xf32>, vector<8x32xf32> -> vector<8x32xf32>
    %201 = arith.addf %195, %200 : vector<8x32xf32>
    %c0_143 = arith.constant 0 : index
    %202 = memref.load %arg11[%c0_143] : memref<4xf32, #tpu.memory_space<smem>>
    %203 = vector.broadcast %202 : f32 to vector<8x32xf32>
    %204 = arith.mulf %15, %203 : vector<8x32xf32>
    %205 = arith.addf %201, %204 : vector<8x32xf32>
    %cst_144 = arith.constant dense<0.000000e+00> : vector<8xf32>
    %206 = vector.multi_reduction <add>, %205, %cst_144 [1] : vector<8x32xf32> to vector<8xf32>
    %207 = vector.shape_cast %206 : vector<8xf32> to vector<8x1xf32>
    %cst_145 = arith.constant 3.200000e+01 : f32
    %208 = vector.broadcast %cst_145 : f32 to vector<8x1xf32>
    %209 = arith.divf %207, %208 : vector<8x1xf32>
    %210 = vector.broadcast %209 : vector<8x1xf32> to vector<8x32xf32>
    %211 = arith.subf %205, %210 : vector<8x32xf32>
    %212 = arith.mulf %211, %211 : vector<8x32xf32>
    %cst_146 = arith.constant dense<0.000000e+00> : vector<8xf32>
    %213 = vector.multi_reduction <add>, %212, %cst_146 [1] : vector<8x32xf32> to vector<8xf32>
    %214 = vector.shape_cast %213 : vector<8xf32> to vector<8x1xf32>
    %cst_147 = arith.constant 3.200000e+01 : f32
    %215 = vector.broadcast %cst_147 : f32 to vector<8x1xf32>
    %216 = arith.divf %214, %215 : vector<8x1xf32>
    %217 = vector.broadcast %209 : vector<8x1xf32> to vector<8x32xf32>
    %218 = arith.subf %205, %217 : vector<8x32xf32>
    %cst_148 = arith.constant 9.99999974E-6 : f32
    %219 = vector.broadcast %cst_148 : f32 to vector<8x1xf32>
    %220 = arith.addf %216, %219 : vector<8x1xf32>
    %221 = math.rsqrt %220 : vector<8x1xf32>
    %222 = vector.broadcast %221 : vector<8x1xf32> to vector<8x32xf32>
    %223 = arith.mulf %218, %222 : vector<8x32xf32>
    %c0_149 = arith.constant 0 : index
    %c1_150 = arith.constant 1 : index
    %c0_151 = arith.constant 0 : index
    %c0_152 = arith.constant 0 : index
    %224 = vector.load %arg8[%c0_149, %c1_150, %c0_151, %c0_152] : memref<4x3x1x32xf32, #tpu.memory_space<vmem>>, vector<1x1x1x32xf32>
    %225 = vector.shape_cast %224 : vector<1x1x1x32xf32> to vector<1x32xf32>
    %226 = vector.broadcast %225 : vector<1x32xf32> to vector<8x32xf32>
    %227 = arith.mulf %223, %226 : vector<8x32xf32>
    %c0_153 = arith.constant 0 : index
    %c2_154 = arith.constant 2 : index
    %c0_155 = arith.constant 0 : index
    %c0_156 = arith.constant 0 : index
    %228 = vector.load %arg8[%c0_153, %c2_154, %c0_155, %c0_156] : memref<4x3x1x32xf32, #tpu.memory_space<vmem>>, vector<1x1x1x32xf32>
    %229 = vector.shape_cast %228 : vector<1x1x1x32xf32> to vector<1x32xf32>
    %230 = vector.broadcast %229 : vector<1x32xf32> to vector<8x32xf32>
    %231 = arith.addf %227, %230 : vector<8x32xf32>
    %cst_157 = arith.constant 1.000000e+00 : f32
    %232 = vector.broadcast %cst_157 : f32 to vector<4x8x8xf32>
    %233 = arith.mulf %91, %232 : vector<4x8x8xf32>
    %c1_158 = arith.constant 1 : index
    %c0_159 = arith.constant 0 : index
    %c0_160 = arith.constant 0 : index
    %c0_161 = arith.constant 0 : index
    %234 = vector.load %arg8[%c1_158, %c0_159, %c0_160, %c0_161] : memref<4x3x1x32xf32, #tpu.memory_space<vmem>>, vector<1x1x1x32xf32>
    %235 = vector.shape_cast %234 : vector<1x1x1x32xf32> to vector<1x32xf32>
    %236 = vector.extract_strided_slice %233 {offsets = [0, 0, 0], sizes = [1, 8, 8], strides = [1, 1, 1]} : vector<4x8x8xf32> to vector<1x8x8xf32>
    %237 = vector.shape_cast %236 : vector<1x8x8xf32> to vector<8x8xf32>
    %c1_162 = arith.constant 1 : index
    %c0_163 = arith.constant 0 : index
    %c0_164 = arith.constant 0 : index
    %c0_165 = arith.constant 0 : index
    %238 = vector.load %arg7[%c1_162, %c0_163, %c0_164, %c0_165] : memref<4x4x8x32xf32, #tpu.memory_space<vmem>>, vector<1x1x8x32xf32>
    %239 = vector.shape_cast %238 : vector<1x1x8x32xf32> to vector<8x32xf32>
    %cst_166 = arith.constant dense<0.000000e+00> : vector<8x32xf32>
    %240 = tpu.matmul %237, %239, %cst_166 {dimension_numbers = #tpu.dot_dimension_numbers<[1], [0], [0], [1], [0, 0, 1, 1], [], []>} : vector<8x8xf32>, vector<8x32xf32>, vector<8x32xf32> -> vector<8x32xf32>
    %241 = vector.broadcast %235 : vector<1x32xf32> to vector<8x32xf32>
    %242 = arith.addf %241, %240 : vector<8x32xf32>
    %243 = vector.extract_strided_slice %233 {offsets = [1, 0, 0], sizes = [1, 8, 8], strides = [1, 1, 1]} : vector<4x8x8xf32> to vector<1x8x8xf32>
    %244 = vector.shape_cast %243 : vector<1x8x8xf32> to vector<8x8xf32>
    %c1_167 = arith.constant 1 : index
    %c1_168 = arith.constant 1 : index
    %c0_169 = arith.constant 0 : index
    %c0_170 = arith.constant 0 : index
    %245 = vector.load %arg7[%c1_167, %c1_168, %c0_169, %c0_170] : memref<4x4x8x32xf32, #tpu.memory_space<vmem>>, vector<1x1x8x32xf32>
    %246 = vector.shape_cast %245 : vector<1x1x8x32xf32> to vector<8x32xf32>
    %cst_171 = arith.constant dense<0.000000e+00> : vector<8x32xf32>
    %247 = tpu.matmul %244, %246, %cst_171 {dimension_numbers = #tpu.dot_dimension_numbers<[1], [0], [0], [1], [0, 0, 1, 1], [], []>} : vector<8x8xf32>, vector<8x32xf32>, vector<8x32xf32> -> vector<8x32xf32>
    %248 = arith.addf %242, %247 : vector<8x32xf32>
    %249 = vector.extract_strided_slice %233 {offsets = [2, 0, 0], sizes = [1, 8, 8], strides = [1, 1, 1]} : vector<4x8x8xf32> to vector<1x8x8xf32>
    %250 = vector.shape_cast %249 : vector<1x8x8xf32> to vector<8x8xf32>
    %c1_172 = arith.constant 1 : index
    %c2_173 = arith.constant 2 : index
    %c0_174 = arith.constant 0 : index
    %c0_175 = arith.constant 0 : index
    %251 = vector.load %arg7[%c1_172, %c2_173, %c0_174, %c0_175] : memref<4x4x8x32xf32, #tpu.memory_space<vmem>>, vector<1x1x8x32xf32>
    %252 = vector.shape_cast %251 : vector<1x1x8x32xf32> to vector<8x32xf32>
    %cst_176 = arith.constant dense<0.000000e+00> : vector<8x32xf32>
    %253 = tpu.matmul %250, %252, %cst_176 {dimension_numbers = #tpu.dot_dimension_numbers<[1], [0], [0], [1], [0, 0, 1, 1], [], []>} : vector<8x8xf32>, vector<8x32xf32>, vector<8x32xf32> -> vector<8x32xf32>
    %254 = arith.addf %248, %253 : vector<8x32xf32>
    %255 = vector.extract_strided_slice %233 {offsets = [3, 0, 0], sizes = [1, 8, 8], strides = [1, 1, 1]} : vector<4x8x8xf32> to vector<1x8x8xf32>
    %256 = vector.shape_cast %255 : vector<1x8x8xf32> to vector<8x8xf32>
    %c1_177 = arith.constant 1 : index
    %c3_178 = arith.constant 3 : index
    %c0_179 = arith.constant 0 : index
    %c0_180 = arith.constant 0 : index
    %257 = vector.load %arg7[%c1_177, %c3_178, %c0_179, %c0_180] : memref<4x4x8x32xf32, #tpu.memory_space<vmem>>, vector<1x1x8x32xf32>
    %258 = vector.shape_cast %257 : vector<1x1x8x32xf32> to vector<8x32xf32>
    %cst_181 = arith.constant dense<0.000000e+00> : vector<8x32xf32>
    %259 = tpu.matmul %256, %258, %cst_181 {dimension_numbers = #tpu.dot_dimension_numbers<[1], [0], [0], [1], [0, 0, 1, 1], [], []>} : vector<8x8xf32>, vector<8x32xf32>, vector<8x32xf32> -> vector<8x32xf32>
    %260 = arith.addf %254, %259 : vector<8x32xf32>
    %c1_182 = arith.constant 1 : index
    %261 = memref.load %arg11[%c1_182] : memref<4xf32, #tpu.memory_space<smem>>
    %262 = vector.broadcast %261 : f32 to vector<8x32xf32>
    %263 = arith.mulf %31, %262 : vector<8x32xf32>
    %264 = arith.addf %260, %263 : vector<8x32xf32>
    %cst_183 = arith.constant dense<0.000000e+00> : vector<8xf32>
    %265 = vector.multi_reduction <add>, %264, %cst_183 [1] : vector<8x32xf32> to vector<8xf32>
    %266 = vector.shape_cast %265 : vector<8xf32> to vector<8x1xf32>
    %cst_184 = arith.constant 3.200000e+01 : f32
    %267 = vector.broadcast %cst_184 : f32 to vector<8x1xf32>
    %268 = arith.divf %266, %267 : vector<8x1xf32>
    %269 = vector.broadcast %268 : vector<8x1xf32> to vector<8x32xf32>
    %270 = arith.subf %264, %269 : vector<8x32xf32>
    %271 = arith.mulf %270, %270 : vector<8x32xf32>
    %cst_185 = arith.constant dense<0.000000e+00> : vector<8xf32>
    %272 = vector.multi_reduction <add>, %271, %cst_185 [1] : vector<8x32xf32> to vector<8xf32>
    %273 = vector.shape_cast %272 : vector<8xf32> to vector<8x1xf32>
    %cst_186 = arith.constant 3.200000e+01 : f32
    %274 = vector.broadcast %cst_186 : f32 to vector<8x1xf32>
    %275 = arith.divf %273, %274 : vector<8x1xf32>
    %276 = vector.broadcast %268 : vector<8x1xf32> to vector<8x32xf32>
    %277 = arith.subf %264, %276 : vector<8x32xf32>
    %cst_187 = arith.constant 9.99999974E-6 : f32
    %278 = vector.broadcast %cst_187 : f32 to vector<8x1xf32>
    %279 = arith.addf %275, %278 : vector<8x1xf32>
    %280 = math.rsqrt %279 : vector<8x1xf32>
    %281 = vector.broadcast %280 : vector<8x1xf32> to vector<8x32xf32>
    %282 = arith.mulf %277, %281 : vector<8x32xf32>
    %c1_188 = arith.constant 1 : index
    %c1_189 = arith.constant 1 : index
    %c0_190 = arith.constant 0 : index
    %c0_191 = arith.constant 0 : index
    %283 = vector.load %arg8[%c1_188, %c1_189, %c0_190, %c0_191] : memref<4x3x1x32xf32, #tpu.memory_space<vmem>>, vector<1x1x1x32xf32>
    %284 = vector.shape_cast %283 : vector<1x1x1x32xf32> to vector<1x32xf32>
    %285 = vector.broadcast %284 : vector<1x32xf32> to vector<8x32xf32>
    %286 = arith.mulf %282, %285 : vector<8x32xf32>
    %c1_192 = arith.constant 1 : index
    %c2_193 = arith.constant 2 : index
    %c0_194 = arith.constant 0 : index
    %c0_195 = arith.constant 0 : index
    %287 = vector.load %arg8[%c1_192, %c2_193, %c0_194, %c0_195] : memref<4x3x1x32xf32, #tpu.memory_space<vmem>>, vector<1x1x1x32xf32>
    %288 = vector.shape_cast %287 : vector<1x1x1x32xf32> to vector<1x32xf32>
    %289 = vector.broadcast %288 : vector<1x32xf32> to vector<8x32xf32>
    %290 = arith.addf %286, %289 : vector<8x32xf32>
    %291 = vector.shape_cast %231 : vector<8x32xf32> to vector<1x8x32xf32>
    %292 = vector.shape_cast %291 : vector<1x8x32xf32> to vector<1x8x32xf32>
    %293 = vector.broadcast %292 : vector<1x8x32xf32> to vector<4x8x32xf32>
    %294 = vector.shape_cast %290 : vector<8x32xf32> to vector<1x8x32xf32>
    %295 = vector.shape_cast %294 : vector<1x8x32xf32> to vector<1x8x32xf32>
    %296 = vector.broadcast %295 : vector<1x8x32xf32> to vector<4x8x32xf32>
    %c2_196 = arith.constant 2 : index
    %c0_197 = arith.constant 0 : index
    %c0_198 = arith.constant 0 : index
    %c0_199 = arith.constant 0 : index
    %297 = vector.load %arg5[%c2_196, %c0_197, %c0_198, %c0_199] : memref<16x4x32x8xf32, #tpu.memory_space<vmem>>, vector<1x4x32x8xf32>
    %298 = vector.shape_cast %297 : vector<1x4x32x8xf32> to vector<4x32x8xf32>
    "tpu.trace_start"() <{level = 10 : i32, message = "hnd,hdf->hnf"}> : () -> ()
    %cst_200 = arith.constant dense<0.000000e+00> : vector<4x8x8xf32>
    %299 = tpu.matmul %293, %298, %cst_200 {dimension_numbers = #tpu.dot_dimension_numbers<[2], [1], [1], [2], [0, 0, 0, 1, 1, 2], [0], [0]>} : vector<4x8x32xf32>, vector<4x32x8xf32>, vector<4x8x8xf32> -> vector<4x8x8xf32>
    "tpu.trace_stop"() : () -> ()
    %c2_201 = arith.constant 2 : index
    %c0_202 = arith.constant 0 : index
    %c0_203 = arith.constant 0 : index
    %c0_204 = arith.constant 0 : index
    %300 = vector.load %arg6[%c2_201, %c0_202, %c0_203, %c0_204] : memref<16x4x1x8xf32, #tpu.memory_space<vmem>>, vector<1x4x1x8xf32>
    %301 = vector.shape_cast %300 : vector<1x4x1x8xf32> to vector<4x1x8xf32>
    %302 = vector.broadcast %301 : vector<4x1x8xf32> to vector<4x8x8xf32>
    %303 = arith.addf %299, %302 : vector<4x8x8xf32>
    %c8 = arith.constant 8 : index
    %c0_205 = arith.constant 0 : index
    %c0_206 = arith.constant 0 : index
    %c0_207 = arith.constant 0 : index
    %304 = vector.load %arg5[%c8, %c0_205, %c0_206, %c0_207] : memref<16x4x32x8xf32, #tpu.memory_space<vmem>>, vector<1x4x32x8xf32>
    %305 = vector.shape_cast %304 : vector<1x4x32x8xf32> to vector<4x32x8xf32>
    "tpu.trace_start"() <{level = 10 : i32, message = "hnd,hdf->hnf"}> : () -> ()
    %cst_208 = arith.constant dense<0.000000e+00> : vector<4x8x8xf32>
    %306 = tpu.matmul %296, %305, %cst_208 {dimension_numbers = #tpu.dot_dimension_numbers<[2], [1], [1], [2], [0, 0, 0, 1, 1, 2], [0], [0]>} : vector<4x8x32xf32>, vector<4x32x8xf32>, vector<4x8x8xf32> -> vector<4x8x8xf32>
    "tpu.trace_stop"() : () -> ()
    %c8_209 = arith.constant 8 : index
    %c0_210 = arith.constant 0 : index
    %c0_211 = arith.constant 0 : index
    %c0_212 = arith.constant 0 : index
    %307 = vector.load %arg6[%c8_209, %c0_210, %c0_211, %c0_212] : memref<16x4x1x8xf32, #tpu.memory_space<vmem>>, vector<1x4x1x8xf32>
    %308 = vector.shape_cast %307 : vector<1x4x1x8xf32> to vector<4x1x8xf32>
    %309 = vector.broadcast %308 : vector<4x1x8xf32> to vector<4x8x8xf32>
    %310 = arith.addf %306, %309 : vector<4x8x8xf32>
    %c14 = arith.constant 14 : index
    %c0_213 = arith.constant 0 : index
    %c0_214 = arith.constant 0 : index
    %c0_215 = arith.constant 0 : index
    %311 = vector.load %arg5[%c14, %c0_213, %c0_214, %c0_215] : memref<16x4x32x8xf32, #tpu.memory_space<vmem>>, vector<1x4x32x8xf32>
    %312 = vector.shape_cast %311 : vector<1x4x32x8xf32> to vector<4x32x8xf32>
    "tpu.trace_start"() <{level = 10 : i32, message = "hnd,hdf->hnf"}> : () -> ()
    %cst_216 = arith.constant dense<0.000000e+00> : vector<4x8x8xf32>
    %313 = tpu.matmul %296, %312, %cst_216 {dimension_numbers = #tpu.dot_dimension_numbers<[2], [1], [1], [2], [0, 0, 0, 1, 1, 2], [0], [0]>} : vector<4x8x32xf32>, vector<4x32x8xf32>, vector<4x8x8xf32> -> vector<4x8x8xf32>
    "tpu.trace_stop"() : () -> ()
    %c14_217 = arith.constant 14 : index
    %c0_218 = arith.constant 0 : index
    %c0_219 = arith.constant 0 : index
    %c0_220 = arith.constant 0 : index
    %314 = vector.load %arg6[%c14_217, %c0_218, %c0_219, %c0_220] : memref<16x4x1x8xf32, #tpu.memory_space<vmem>>, vector<1x4x1x8xf32>
    %315 = vector.shape_cast %314 : vector<1x4x1x8xf32> to vector<4x1x8xf32>
    %316 = vector.broadcast %315 : vector<4x1x8xf32> to vector<4x8x8xf32>
    %317 = arith.addf %313, %316 : vector<4x8x8xf32>
    "tpu.trace_start"() <{level = 10 : i32, message = "hqd,hkd->hqk"}> : () -> ()
    %cst_221 = arith.constant dense<0.000000e+00> : vector<4x8x8xf32>
    %318 = tpu.matmul %303, %310, %cst_221 {dimension_numbers = #tpu.dot_dimension_numbers<[2], [2], [1], [1], [0, 0, 0, 1, 1, 1], [0], [0]>} : vector<4x8x8xf32>, vector<4x8x8xf32>, vector<4x8x8xf32> -> vector<4x8x8xf32>
    "tpu.trace_stop"() : () -> ()
    %c1_222 = arith.constant 1 : index
    %c0_223 = arith.constant 0 : index
    %c0_224 = arith.constant 0 : index
    %319 = vector.load %arg2[%c1_222, %c0_223, %c0_224] : memref<3x8x8xf32, #tpu.memory_space<vmem>>, vector<1x8x8xf32>
    %320 = vector.shape_cast %319 : vector<1x8x8xf32> to vector<8x8xf32>
    %321 = vector.shape_cast %320 : vector<8x8xf32> to vector<1x8x8xf32>
    %cst_225 = arith.constant 5.000000e-01 : f32
    %322 = vector.broadcast %cst_225 : f32 to vector<1x8x8xf32>
    %323 = arith.cmpf ogt, %321, %322 : vector<1x8x8xf32>
    %cst_226 = arith.constant -1.000000e+30 : f32
    %324 = vector.shape_cast %323 : vector<1x8x8xi1> to vector<1x8x8xi1>
    %325 = vector.broadcast %324 : vector<1x8x8xi1> to vector<4x8x8xi1>
    %326 = vector.broadcast %cst_226 : f32 to vector<4x8x8xf32>
    %327 = arith.select %325, %318, %326 : vector<4x8x8xi1>, vector<4x8x8xf32>
    %cst_227 = arith.constant dense<0xFF800000> : vector<4x8xf32>
    %328 = vector.multi_reduction <maximumf>, %327, %cst_227 [2] : vector<4x8x8xf32> to vector<4x8xf32>
    %329 = vector.shape_cast %328 : vector<4x8xf32> to vector<4x8x1xf32>
    %330 = vector.broadcast %329 : vector<4x8x1xf32> to vector<4x8x8xf32>
    %331 = arith.subf %327, %330 : vector<4x8x8xf32>
    %332 = math.exp %331 : vector<4x8x8xf32>
    %333 = vector.broadcast %321 : vector<1x8x8xf32> to vector<4x8x8xf32>
    %334 = arith.mulf %332, %333 : vector<4x8x8xf32>
    %cst_228 = arith.constant dense<0.000000e+00> : vector<4x8xf32>
    %335 = vector.multi_reduction <add>, %334, %cst_228 [2] : vector<4x8x8xf32> to vector<4x8xf32>
    %336 = vector.shape_cast %335 : vector<4x8xf32> to vector<4x8x1xf32>
    %cst_229 = arith.constant 1.000000e-30 : f32
    %337 = vector.broadcast %cst_229 : f32 to vector<4x8x1xf32>
    %338 = arith.maximumf %336, %337 : vector<4x8x1xf32>
    %cst_230 = arith.constant 1.000000e+00 : f32
    %339 = vector.broadcast %cst_230 : f32 to vector<4x8x1xf32>
    %340 = arith.divf %339, %338 : vector<4x8x1xf32>
    "tpu.trace_start"() <{level = 10 : i32, message = "hqk,hkd->hqd"}> : () -> ()
    %cst_231 = arith.constant dense<0.000000e+00> : vector<4x8x8xf32>
    %341 = tpu.matmul %334, %317, %cst_231 {dimension_numbers = #tpu.dot_dimension_numbers<[2], [1], [1], [2], [0, 0, 0, 1, 1, 2], [0], [0]>} : vector<4x8x8xf32>, vector<4x8x8xf32>, vector<4x8x8xf32> -> vector<4x8x8xf32>
    "tpu.trace_stop"() : () -> ()
    %342 = vector.broadcast %340 : vector<4x8x1xf32> to vector<4x8x8xf32>
    %343 = arith.mulf %341, %342 : vector<4x8x8xf32>
    %c9 = arith.constant 9 : index
    %c0_232 = arith.constant 0 : index
    %c0_233 = arith.constant 0 : index
    %c0_234 = arith.constant 0 : index
    %344 = vector.load %arg5[%c9, %c0_232, %c0_233, %c0_234] : memref<16x4x32x8xf32, #tpu.memory_space<vmem>>, vector<1x4x32x8xf32>
    %345 = vector.shape_cast %344 : vector<1x4x32x8xf32> to vector<4x32x8xf32>
    "tpu.trace_start"() <{level = 10 : i32, message = "hnd,hdf->hnf"}> : () -> ()
    %cst_235 = arith.constant dense<0.000000e+00> : vector<4x8x8xf32>
    %346 = tpu.matmul %293, %345, %cst_235 {dimension_numbers = #tpu.dot_dimension_numbers<[2], [1], [1], [2], [0, 0, 0, 1, 1, 2], [0], [0]>} : vector<4x8x32xf32>, vector<4x32x8xf32>, vector<4x8x8xf32> -> vector<4x8x8xf32>
    "tpu.trace_stop"() : () -> ()
    %c9_236 = arith.constant 9 : index
    %c0_237 = arith.constant 0 : index
    %c0_238 = arith.constant 0 : index
    %c0_239 = arith.constant 0 : index
    %347 = vector.load %arg6[%c9_236, %c0_237, %c0_238, %c0_239] : memref<16x4x1x8xf32, #tpu.memory_space<vmem>>, vector<1x4x1x8xf32>
    %348 = vector.shape_cast %347 : vector<1x4x1x8xf32> to vector<4x1x8xf32>
    %349 = vector.broadcast %348 : vector<4x1x8xf32> to vector<4x8x8xf32>
    %350 = arith.addf %346, %349 : vector<4x8x8xf32>
    %c15 = arith.constant 15 : index
    %c0_240 = arith.constant 0 : index
    %c0_241 = arith.constant 0 : index
    %c0_242 = arith.constant 0 : index
    %351 = vector.load %arg5[%c15, %c0_240, %c0_241, %c0_242] : memref<16x4x32x8xf32, #tpu.memory_space<vmem>>, vector<1x4x32x8xf32>
    %352 = vector.shape_cast %351 : vector<1x4x32x8xf32> to vector<4x32x8xf32>
    "tpu.trace_start"() <{level = 10 : i32, message = "hnd,hdf->hnf"}> : () -> ()
    %cst_243 = arith.constant dense<0.000000e+00> : vector<4x8x8xf32>
    %353 = tpu.matmul %293, %352, %cst_243 {dimension_numbers = #tpu.dot_dimension_numbers<[2], [1], [1], [2], [0, 0, 0, 1, 1, 2], [0], [0]>} : vector<4x8x32xf32>, vector<4x32x8xf32>, vector<4x8x8xf32> -> vector<4x8x8xf32>
    "tpu.trace_stop"() : () -> ()
    %c15_244 = arith.constant 15 : index
    %c0_245 = arith.constant 0 : index
    %c0_246 = arith.constant 0 : index
    %c0_247 = arith.constant 0 : index
    %354 = vector.load %arg6[%c15_244, %c0_245, %c0_246, %c0_247] : memref<16x4x1x8xf32, #tpu.memory_space<vmem>>, vector<1x4x1x8xf32>
    %355 = vector.shape_cast %354 : vector<1x4x1x8xf32> to vector<4x1x8xf32>
    %356 = vector.broadcast %355 : vector<4x1x8xf32> to vector<4x8x8xf32>
    %357 = arith.addf %353, %356 : vector<4x8x8xf32>
    "tpu.trace_start"() <{level = 10 : i32, message = "hqd,hkd->hqk"}> : () -> ()
    %cst_248 = arith.constant dense<0.000000e+00> : vector<4x8x8xf32>
    %358 = tpu.matmul %303, %350, %cst_248 {dimension_numbers = #tpu.dot_dimension_numbers<[2], [2], [1], [1], [0, 0, 0, 1, 1, 1], [0], [0]>} : vector<4x8x8xf32>, vector<4x8x8xf32>, vector<4x8x8xf32> -> vector<4x8x8xf32>
    "tpu.trace_stop"() : () -> ()
    %c2_249 = arith.constant 2 : index
    %c0_250 = arith.constant 0 : index
    %c0_251 = arith.constant 0 : index
    %359 = vector.load %arg2[%c2_249, %c0_250, %c0_251] : memref<3x8x8xf32, #tpu.memory_space<vmem>>, vector<1x8x8xf32>
    %360 = vector.shape_cast %359 : vector<1x8x8xf32> to vector<8x8xf32>
    %361 = vector.shape_cast %360 : vector<8x8xf32> to vector<1x8x8xf32>
    %cst_252 = arith.constant 5.000000e-01 : f32
    %362 = vector.broadcast %cst_252 : f32 to vector<1x8x8xf32>
    %363 = arith.cmpf ogt, %361, %362 : vector<1x8x8xf32>
    %cst_253 = arith.constant -1.000000e+30 : f32
    %364 = vector.shape_cast %363 : vector<1x8x8xi1> to vector<1x8x8xi1>
    %365 = vector.broadcast %364 : vector<1x8x8xi1> to vector<4x8x8xi1>
    %366 = vector.broadcast %cst_253 : f32 to vector<4x8x8xf32>
    %367 = arith.select %365, %358, %366 : vector<4x8x8xi1>, vector<4x8x8xf32>
    %cst_254 = arith.constant dense<0xFF800000> : vector<4x8xf32>
    %368 = vector.multi_reduction <maximumf>, %367, %cst_254 [2] : vector<4x8x8xf32> to vector<4x8xf32>
    %369 = vector.shape_cast %368 : vector<4x8xf32> to vector<4x8x1xf32>
    %370 = vector.broadcast %369 : vector<4x8x1xf32> to vector<4x8x8xf32>
    %371 = arith.subf %367, %370 : vector<4x8x8xf32>
    %372 = math.exp %371 : vector<4x8x8xf32>
    %373 = vector.broadcast %361 : vector<1x8x8xf32> to vector<4x8x8xf32>
    %374 = arith.mulf %372, %373 : vector<4x8x8xf32>
    %cst_255 = arith.constant dense<0.000000e+00> : vector<4x8xf32>
    %375 = vector.multi_reduction <add>, %374, %cst_255 [2] : vector<4x8x8xf32> to vector<4x8xf32>
    %376 = vector.shape_cast %375 : vector<4x8xf32> to vector<4x8x1xf32>
    %cst_256 = arith.constant 1.000000e-30 : f32
    %377 = vector.broadcast %cst_256 : f32 to vector<4x8x1xf32>
    %378 = arith.maximumf %376, %377 : vector<4x8x1xf32>
    %cst_257 = arith.constant 1.000000e+00 : f32
    %379 = vector.broadcast %cst_257 : f32 to vector<4x8x1xf32>
    %380 = arith.divf %379, %378 : vector<4x8x1xf32>
    "tpu.trace_start"() <{level = 10 : i32, message = "hqk,hkd->hqd"}> : () -> ()
    %cst_258 = arith.constant dense<0.000000e+00> : vector<4x8x8xf32>
    %381 = tpu.matmul %374, %357, %cst_258 {dimension_numbers = #tpu.dot_dimension_numbers<[2], [1], [1], [2], [0, 0, 0, 1, 1, 2], [0], [0]>} : vector<4x8x8xf32>, vector<4x8x8xf32>, vector<4x8x8xf32> -> vector<4x8x8xf32>
    "tpu.trace_stop"() : () -> ()
    %382 = vector.broadcast %380 : vector<4x8x1xf32> to vector<4x8x8xf32>
    %383 = arith.mulf %381, %382 : vector<4x8x8xf32>
    %384 = arith.addf %343, %383 : vector<4x8x8xf32>
    %cst_259 = arith.constant 5.000000e-01 : f32
    %385 = vector.broadcast %cst_259 : f32 to vector<4x8x8xf32>
    %386 = arith.mulf %384, %385 : vector<4x8x8xf32>
    %c2_260 = arith.constant 2 : index
    %c0_261 = arith.constant 0 : index
    %c0_262 = arith.constant 0 : index
    %c0_263 = arith.constant 0 : index
    %387 = vector.load %arg8[%c2_260, %c0_261, %c0_262, %c0_263] : memref<4x3x1x32xf32, #tpu.memory_space<vmem>>, vector<1x1x1x32xf32>
    %388 = vector.shape_cast %387 : vector<1x1x1x32xf32> to vector<1x32xf32>
    %389 = vector.extract_strided_slice %386 {offsets = [0, 0, 0], sizes = [1, 8, 8], strides = [1, 1, 1]} : vector<4x8x8xf32> to vector<1x8x8xf32>
    %390 = vector.shape_cast %389 : vector<1x8x8xf32> to vector<8x8xf32>
    %c2_264 = arith.constant 2 : index
    %c0_265 = arith.constant 0 : index
    %c0_266 = arith.constant 0 : index
    %c0_267 = arith.constant 0 : index
    %391 = vector.load %arg7[%c2_264, %c0_265, %c0_266, %c0_267] : memref<4x4x8x32xf32, #tpu.memory_space<vmem>>, vector<1x1x8x32xf32>
    %392 = vector.shape_cast %391 : vector<1x1x8x32xf32> to vector<8x32xf32>
    %cst_268 = arith.constant dense<0.000000e+00> : vector<8x32xf32>
    %393 = tpu.matmul %390, %392, %cst_268 {dimension_numbers = #tpu.dot_dimension_numbers<[1], [0], [0], [1], [0, 0, 1, 1], [], []>} : vector<8x8xf32>, vector<8x32xf32>, vector<8x32xf32> -> vector<8x32xf32>
    %394 = vector.broadcast %388 : vector<1x32xf32> to vector<8x32xf32>
    %395 = arith.addf %394, %393 : vector<8x32xf32>
    %396 = vector.extract_strided_slice %386 {offsets = [1, 0, 0], sizes = [1, 8, 8], strides = [1, 1, 1]} : vector<4x8x8xf32> to vector<1x8x8xf32>
    %397 = vector.shape_cast %396 : vector<1x8x8xf32> to vector<8x8xf32>
    %c2_269 = arith.constant 2 : index
    %c1_270 = arith.constant 1 : index
    %c0_271 = arith.constant 0 : index
    %c0_272 = arith.constant 0 : index
    %398 = vector.load %arg7[%c2_269, %c1_270, %c0_271, %c0_272] : memref<4x4x8x32xf32, #tpu.memory_space<vmem>>, vector<1x1x8x32xf32>
    %399 = vector.shape_cast %398 : vector<1x1x8x32xf32> to vector<8x32xf32>
    %cst_273 = arith.constant dense<0.000000e+00> : vector<8x32xf32>
    %400 = tpu.matmul %397, %399, %cst_273 {dimension_numbers = #tpu.dot_dimension_numbers<[1], [0], [0], [1], [0, 0, 1, 1], [], []>} : vector<8x8xf32>, vector<8x32xf32>, vector<8x32xf32> -> vector<8x32xf32>
    %401 = arith.addf %395, %400 : vector<8x32xf32>
    %402 = vector.extract_strided_slice %386 {offsets = [2, 0, 0], sizes = [1, 8, 8], strides = [1, 1, 1]} : vector<4x8x8xf32> to vector<1x8x8xf32>
    %403 = vector.shape_cast %402 : vector<1x8x8xf32> to vector<8x8xf32>
    %c2_274 = arith.constant 2 : index
    %c2_275 = arith.constant 2 : index
    %c0_276 = arith.constant 0 : index
    %c0_277 = arith.constant 0 : index
    %404 = vector.load %arg7[%c2_274, %c2_275, %c0_276, %c0_277] : memref<4x4x8x32xf32, #tpu.memory_space<vmem>>, vector<1x1x8x32xf32>
    %405 = vector.shape_cast %404 : vector<1x1x8x32xf32> to vector<8x32xf32>
    %cst_278 = arith.constant dense<0.000000e+00> : vector<8x32xf32>
    %406 = tpu.matmul %403, %405, %cst_278 {dimension_numbers = #tpu.dot_dimension_numbers<[1], [0], [0], [1], [0, 0, 1, 1], [], []>} : vector<8x8xf32>, vector<8x32xf32>, vector<8x32xf32> -> vector<8x32xf32>
    %407 = arith.addf %401, %406 : vector<8x32xf32>
    %408 = vector.extract_strided_slice %386 {offsets = [3, 0, 0], sizes = [1, 8, 8], strides = [1, 1, 1]} : vector<4x8x8xf32> to vector<1x8x8xf32>
    %409 = vector.shape_cast %408 : vector<1x8x8xf32> to vector<8x8xf32>
    %c2_279 = arith.constant 2 : index
    %c3_280 = arith.constant 3 : index
    %c0_281 = arith.constant 0 : index
    %c0_282 = arith.constant 0 : index
    %410 = vector.load %arg7[%c2_279, %c3_280, %c0_281, %c0_282] : memref<4x4x8x32xf32, #tpu.memory_space<vmem>>, vector<1x1x8x32xf32>
    %411 = vector.shape_cast %410 : vector<1x1x8x32xf32> to vector<8x32xf32>
    %cst_283 = arith.constant dense<0.000000e+00> : vector<8x32xf32>
    %412 = tpu.matmul %409, %411, %cst_283 {dimension_numbers = #tpu.dot_dimension_numbers<[1], [0], [0], [1], [0, 0, 1, 1], [], []>} : vector<8x8xf32>, vector<8x32xf32>, vector<8x32xf32> -> vector<8x32xf32>
    %413 = arith.addf %407, %412 : vector<8x32xf32>
    %c2_284 = arith.constant 2 : index
    %414 = memref.load %arg11[%c2_284] : memref<4xf32, #tpu.memory_space<smem>>
    %415 = vector.broadcast %414 : f32 to vector<8x32xf32>
    %416 = arith.mulf %231, %415 : vector<8x32xf32>
    %417 = arith.addf %413, %416 : vector<8x32xf32>
    %cst_285 = arith.constant dense<0.000000e+00> : vector<8xf32>
    %418 = vector.multi_reduction <add>, %417, %cst_285 [1] : vector<8x32xf32> to vector<8xf32>
    %419 = vector.shape_cast %418 : vector<8xf32> to vector<8x1xf32>
    %cst_286 = arith.constant 3.200000e+01 : f32
    %420 = vector.broadcast %cst_286 : f32 to vector<8x1xf32>
    %421 = arith.divf %419, %420 : vector<8x1xf32>
    %422 = vector.broadcast %421 : vector<8x1xf32> to vector<8x32xf32>
    %423 = arith.subf %417, %422 : vector<8x32xf32>
    %424 = arith.mulf %423, %423 : vector<8x32xf32>
    %cst_287 = arith.constant dense<0.000000e+00> : vector<8xf32>
    %425 = vector.multi_reduction <add>, %424, %cst_287 [1] : vector<8x32xf32> to vector<8xf32>
    %426 = vector.shape_cast %425 : vector<8xf32> to vector<8x1xf32>
    %cst_288 = arith.constant 3.200000e+01 : f32
    %427 = vector.broadcast %cst_288 : f32 to vector<8x1xf32>
    %428 = arith.divf %426, %427 : vector<8x1xf32>
    %429 = vector.broadcast %421 : vector<8x1xf32> to vector<8x32xf32>
    %430 = arith.subf %417, %429 : vector<8x32xf32>
    %cst_289 = arith.constant 9.99999974E-6 : f32
    %431 = vector.broadcast %cst_289 : f32 to vector<8x1xf32>
    %432 = arith.addf %428, %431 : vector<8x1xf32>
    %433 = math.rsqrt %432 : vector<8x1xf32>
    %434 = vector.broadcast %433 : vector<8x1xf32> to vector<8x32xf32>
    %435 = arith.mulf %430, %434 : vector<8x32xf32>
    %c2_290 = arith.constant 2 : index
    %c1_291 = arith.constant 1 : index
    %c0_292 = arith.constant 0 : index
    %c0_293 = arith.constant 0 : index
    %436 = vector.load %arg8[%c2_290, %c1_291, %c0_292, %c0_293] : memref<4x3x1x32xf32, #tpu.memory_space<vmem>>, vector<1x1x1x32xf32>
    %437 = vector.shape_cast %436 : vector<1x1x1x32xf32> to vector<1x32xf32>
    %438 = vector.broadcast %437 : vector<1x32xf32> to vector<8x32xf32>
    %439 = arith.mulf %435, %438 : vector<8x32xf32>
    %c2_294 = arith.constant 2 : index
    %c2_295 = arith.constant 2 : index
    %c0_296 = arith.constant 0 : index
    %c0_297 = arith.constant 0 : index
    %440 = vector.load %arg8[%c2_294, %c2_295, %c0_296, %c0_297] : memref<4x3x1x32xf32, #tpu.memory_space<vmem>>, vector<1x1x1x32xf32>
    %441 = vector.shape_cast %440 : vector<1x1x1x32xf32> to vector<1x32xf32>
    %442 = vector.broadcast %441 : vector<1x32xf32> to vector<8x32xf32>
    %443 = arith.addf %439, %442 : vector<8x32xf32>
    %c0_298 = arith.constant 0 : index
    %c0_299 = arith.constant 0 : index
    %444 = vector.load %arg9[%c0_298, %c0_299] : memref<32x8xf32, #tpu.memory_space<vmem>>, vector<32x8xf32>
    %cst_300 = arith.constant dense<0.000000e+00> : vector<8x8xf32>
    %445 = tpu.matmul %443, %444, %cst_300 {dimension_numbers = #tpu.dot_dimension_numbers<[1], [0], [0], [1], [0, 0, 1, 1], [], []>} : vector<8x32xf32>, vector<32x8xf32>, vector<8x8xf32> -> vector<8x8xf32>
    %c0_301 = arith.constant 0 : index
    %c0_302 = arith.constant 0 : index
    %446 = vector.load %arg10[%c0_301, %c0_302] : memref<1x8xf32, #tpu.memory_space<vmem>>, vector<1x8xf32>
    %447 = vector.broadcast %446 : vector<1x8xf32> to vector<8x8xf32>
    %448 = arith.addf %445, %447 : vector<8x8xf32>
    %c0_303 = arith.constant 0 : index
    %c0_304 = arith.constant 0 : index
    %449 = vector.load %arg12[%c0_303, %c0_304] : memref<8x8xf32, #tpu.memory_space<vmem>>, vector<8x8xf32>
    tpu.vector_store %arg12[%c0_303, %c0_304], %448 {strides = array<i32>} : memref<8x8xf32, #tpu.memory_space<vmem>>, vector<8x8xf32>,
    return
  }
}

</mosaic_0001>

<llo_original>
// kernel: hgt_forward.1
$region0: #{hgt_forward.1}
  #allocation0 [shape = 'u32[]', space=smem, size = 0x4, offset = 0x4, fixed_abs, tag = 'smem constant byte address 0x4 - core index']
  #allocation1 [shape = 'u32[72,128]{1,0:T(1,128)}', space=vmem, size = 0x9000, scoped, tag = 'internal scratch']
  %s0 = inlined_call_operand.vmem [shape: f32[8,16], index: 0, kind: input, shape index: {}]
  %s1 = inlined_call_operand.vmem [shape: f32[8,16], index: 1, kind: input, shape index: {}]
  %s2 = inlined_call_operand.vmem [shape: f32[3,8,8], index: 2, kind: input, shape index: {}]
  %s3 = inlined_call_operand.vmem [shape: f32[2,16,32], index: 3, kind: input, shape index: {}]
  %s4 = inlined_call_operand.vmem [shape: f32[2,1,32], index: 4, kind: input, shape index: {}]
  %s5 = inlined_call_operand.vmem [shape: f32[16,4,32,8], index: 5, kind: input, shape index: {}]
  %s6 = inlined_call_operand.vmem [shape: f32[16,4,1,8], index: 6, kind: input, shape index: {}]
  %s7 = inlined_call_operand.vmem [shape: f32[4,4,8,32], index: 7, kind: input, shape index: {}]
  %s8 = inlined_call_operand.vmem [shape: f32[4,3,1,32], index: 8, kind: input, shape index: {}]
  %s9 = inlined_call_operand.vmem [shape: f32[32,8], index: 9, kind: input, shape index: {}]
  %s10 = inlined_call_operand.vmem [shape: f32[1,8], index: 10, kind: input, shape index: {}]
  %s11 = inlined_call_operand.vmem [shape: f32[4], index: 11, kind: input, shape index: {}]
  %s12 = inlined_call_operand.hbm [shape: f32[8,8], index: 12, kind: output, shape index: {}]
  %s13 = sld [smem:[#allocation0]]
  $region62: #{hgt_forward.1} parent=0
    _
  %s15 = ssub.s32 1, %s13
  %s16 = scalar_select 0, %s15, %s13
  $region1: #{hgt_forward.1} parent=0
    #allocation2 [shape = 'u8[512]{0}', space=smem, size = 0x200, scoped, tag = 'input window, operand 11, single buffered']
    #allocation3 [shape = 's32[1]{0}', space=sflag, size = 0x4, scoped, tag = 'scoped memory for hgt_forward.1']
    #allocation4 [shape = 's32[1]{0}', space=sflag, size = 0x4, scoped, tag = 'scoped memory for hgt_forward.1']
    #allocation5 [shape = 'u8[4096]{0}', space=vmem, size = 0x1000, scoped, tag = 'output window, operand 0, single buffered']
    %17 = vsyncpa [#allocation4], 0
    %18 = vsyncpa [#allocation3], 0
    // Predicated region
    $region2: #{hgt_forward.1} parent=1 // pred_check
      _
    $region3: #{hgt_forward.1} parent=1 // pred_check_branch
      %20 = sbr.rel (0) target = $region5
    $region4: #{hgt_forward.1} parent=1 // pred_region
      _
    $region5: #{hgt_forward.1} parent=1 // pred_fallthru
      _
    // Predicated region
    $region6: #{hgt_forward.1} parent=1 // pred_check
      _
    $region7: #{hgt_forward.1} parent=1 // pred_check_branch
      %22 = sbr.rel (0) target = $region9
    $region8: #{hgt_forward.1} parent=1 // pred_region
      _
    $region9: #{hgt_forward.1} parent=1 // pred_fallthru
      _
    // Predicated region
    $region10: #{hgt_forward.1} parent=1 // pred_check
      _
    $region11: #{hgt_forward.1} parent=1 // pred_check_branch
      %24 = sbr.rel (0) target = $region13
    $region12: #{hgt_forward.1} parent=1 // pred_region
      _
    $region13: #{hgt_forward.1} parent=1 // pred_fallthru
      _
    // Predicated region
    $region14: #{hgt_forward.1} parent=1 // pred_check
      _
    $region15: #{hgt_forward.1} parent=1 // pred_check_branch
      %26 = sbr.rel (0) target = $region17
    $region16: #{hgt_forward.1} parent=1 // pred_region
      _
    $region17: #{hgt_forward.1} parent=1 // pred_fallthru
      _
    // Predicated region
    $region18: #{hgt_forward.1} parent=1 // pred_check
      _
    $region19: #{hgt_forward.1} parent=1 // pred_check_branch
      %28 = sbr.rel (0) target = $region21
    $region20: #{hgt_forward.1} parent=1 // pred_region
      _
    $region21: #{hgt_forward.1} parent=1 // pred_fallthru
      _
    // Predicated region
    $region22: #{hgt_forward.1} parent=1 // pred_check
      _
    $region23: #{hgt_forward.1} parent=1 // pred_check_branch
      %30 = sbr.rel (0) target = $region25
    $region24: #{hgt_forward.1} parent=1 // pred_region
      _
    $region25: #{hgt_forward.1} parent=1 // pred_fallthru
      _
    // Predicated region
    $region26: #{hgt_forward.1} parent=1 // pred_check
      _
    $region27: #{hgt_forward.1} parent=1 // pred_check_branch
      %32 = sbr.rel (0) target = $region29
    $region28: #{hgt_forward.1} parent=1 // pred_region
      _
    $region29: #{hgt_forward.1} parent=1 // pred_fallthru
      _
    // Predicated region
    $region30: #{hgt_forward.1} parent=1 // pred_check
      _
    $region31: #{hgt_forward.1} parent=1 // pred_check_branch
      %34 = sbr.rel (0) target = $region33
    $region32: #{hgt_forward.1} parent=1 // pred_region
      _
    $region33: #{hgt_forward.1} parent=1 // pred_fallthru
      _
    // Predicated region
    $region34: #{hgt_forward.1} parent=1 // pred_check
      _
    $region35: #{hgt_forward.1} parent=1 // pred_check_branch
      %36 = sbr.rel (0) target = $region37
    $region36: #{hgt_forward.1} parent=1 // pred_region
      _
    $region37: #{hgt_forward.1} parent=1 // pred_fallthru
      _
    // Predicated region
    $region38: #{hgt_forward.1} parent=1 // pred_check
      _
    $region39: #{hgt_forward.1} parent=1 // pred_check_branch
      %38 = sbr.rel (0) target = $region41
    $region40: #{hgt_forward.1} parent=1 // pred_region
      _
    $region41: #{hgt_forward.1} parent=1 // pred_fallthru
      _
    // Predicated region
    $region42: #{hgt_forward.1} parent=1 // pred_check
      _
    $region43: #{hgt_forward.1} parent=1 // pred_check_branch
      %40 = sbr.rel (0) target = $region45
    $region44: #{hgt_forward.1} parent=1 // pred_region
      _
    $region45: #{hgt_forward.1} parent=1 // pred_fallthru
      _
    // Predicated region
    $region46: #{hgt_forward.1} parent=1 // pred_check
      _
    $region47: #{hgt_forward.1} parent=1 // pred_check_branch
      %42 = sbr.rel (0) target = $region49
    $region48: #{hgt_forward.1} parent=1 // pred_region
      %44 = vsyncadd [#allocation4], 0
      %s46 = sshll.u32 %s11, 4
      %s47 = int_to_ptr.vmem [resolvable:$true] %s46
      %49 = dma.vmem_to_smem %s47, 16, [#allocation2], [#allocation4]
    $region49: #{hgt_forward.1} parent=1 // pred_fallthru
      _
    // Predicated region
    $region50: #{hgt_forward.1} parent=1 // pred_check
      _
    $region51: #{hgt_forward.1} parent=1 // pred_check_branch
      %51 = sbr.rel (0) target = $region53
    $region52: #{hgt_forward.1} parent=1 // pred_region
      %53 = dma.done [#allocation4], 16
    $region53: #{hgt_forward.1} parent=1 // pred_fallthru
      _
    %54 = sfence
    %v55 = vld [vmem:[%s0] sm:$0xff]
    %v56 = vld [vmem:[%s3] sm:$0xff]
    %v57 = vld [vmem:[%s3 + $0x8] sm:$0xff]
    %v58 = vld [vmem:[%s4] sm:$0x1]
    %v60 = vperm.slane %v58, 0
    %vm62 = vcmask 130048
    %v64 = vsel %vm62, %v55, 0
    %66 = vmatpush.msra.mxu0 0.0
    %67 = vmatpush.msra.mxu0 0.0
    %68 = vmatpush.msra.mxu0 0.0
    %69 = vmatpush.msra.mxu0 0.0
    %70 = vmatpush.msra.mxu0 0.0
    %71 = vmatpush.msra.mxu0 0.0
    %72 = vmatpush.msra.mxu0 0.0
    %73 = vmatpush.msra.mxu0 0.0
    %74 = vmatpush.msra.mxu0 0.0
    %75 = vmatpush.msra.mxu0 0.0
    %76 = vmatpush.msra.mxu0 0.0
    %77 = vmatpush.msra.mxu0 0.0
    %78 = vmatpush.msra.mxu0 0.0
    %79 = vmatpush.msra.mxu0 0.0
    %80 = vmatpush.msra.mxu0 %v57
    %81 = vmatpush.msra.mxu0 %v56
    %82 = vmatmul.f32.gmra.mxu0 %v64
    %v83 = vpop.f32.mrf.mxu0
    %v84 = vadd.f32 %v60, %v83
    %85 = vdwg.mxu0
    %v86 = vmul.f32 %v84, 0.5
    %v87 = vmul.f32 %v84, 0.70710677
    %v88 = vmul.f32 %v87, %v87
    %v89 = vmin.f32 16.0, %v88
    %v90 = vmul.f32 %v89, 2.1237322e-06
    %v91 = vadd.f32 %v90, 0.00028619796
    %v92 = vmul.f32 %v89, %v91
    %v93 = vadd.f32 %v92, 0.0036580483
    %v94 = vmul.f32 %v89, %v93
    %v95 = vadd.f32 %v94, 0.05243302
    %v96 = vmul.f32 %v89, %v95
    %v97 = vadd.f32 %v96, 0.18741608
    %v98 = vmul.f32 %v89, %v97
    %v99 = vadd.f32 %v98, 1.1283791
    %v100 = vmul.f32 %v87, %v99
    %v101 = vmul.f32 %v89, 3.8918573e-05
    %v102 = vadd.f32 %v101, 0.001143296
    %v103 = vmul.f32 %v89, %v102
    %v104 = vadd.f32 %v103, 0.014752088
    %v105 = vmul.f32 %v89, %v104
    %v106 = vadd.f32 %v105, 0.112945676
    %v107 = vmul.f32 %v89, %v106
    %v108 = vadd.f32 %v107, 0.4994258
    %v109 = vmul.f32 %v89, %v108
    %v110 = vadd.f32 %v109, 1.0
    %v111 = vrcp.pop %v110
    %v112 = vmul.f32 %v110, %v111
    %v113 = vsub.f32 1.0, %v112
    %v114 = vmul.f32 %v111, %v113
    %v115 = vadd.f32 %v111, %v114
    %vm116 = vweird.f32 %v110
    %vm117 = vweird.f32 %v111
    %vm118 = vmor %vm116, %vm117
    %v119 = vsel %vm118, %v111, %v115
    %v120 = vand.u32 2147483647, %v110
    %vm121 = vcmp.eq.f32.partialorder %v120, 8.507059e+37
    %v122 = vand.u32 %v110, 2147483648
    %v123 = vor.u32 1.1754944e-38, %v122
    %v124 = vsel %vm121, %v123, %v119
    %v125 = vmul.f32 %v100, %v124
    %v126 = vmin.f32 %v125, 1.0
    %v127 = vmax.f32 %v126, -1.0
    %v128 = vadd.f32 %v127, 1.0
    %v129 = vmul.f32 %v86, %v128
    %v130 = vld [vmem:[%s1] sm:$0xff]
    %s131 = scalar_lea.vmem %s3, 16
    %v132 = vld [vmem:[%s131] sm:$0xff]
    %v133 = vld [vmem:[%s131 + $0x8] sm:$0xff]
    %s134 = scalar_lea.vmem %s4, 1
    %v135 = vld [vmem:[%s134] sm:$0x1]
    %v137 = vperm.slane %v135, 0
    %v140 = vsel %vm62, %v130, 0
    %142 = vmatpush.msra.mxu0 0.0
    %143 = vmatpush.msra.mxu0 0.0
    %144 = vmatpush.msra.mxu0 0.0
    %145 = vmatpush.msra.mxu0 0.0
    %146 = vmatpush.msra.mxu0 0.0
    %147 = vmatpush.msra.mxu0 0.0
    %148 = vmatpush.msra.mxu0 0.0
    %149 = vmatpush.msra.mxu0 0.0
    %150 = vmatpush.msra.mxu0 0.0
    %151 = vmatpush.msra.mxu0 0.0
    %152 = vmatpush.msra.mxu0 0.0
    %153 = vmatpush.msra.mxu0 0.0
    %154 = vmatpush.msra.mxu0 0.0
    %155 = vmatpush.msra.mxu0 0.0
    %156 = vmatpush.msra.mxu0 %v133
    %157 = vmatpush.msra.mxu0 %v132
    %158 = vmatmul.f32.gmra.mxu0 %v140
    %v159 = vpop.f32.mrf.mxu0
    %v160 = vadd.f32 %v137, %v159
    %161 = vdwg.mxu0
    %v162 = vmul.f32 %v160, 0.5
    %v163 = vmul.f32 %v160, 0.70710677
    %v164 = vmul.f32 %v163, %v163
    %v165 = vmin.f32 16.0, %v164
    %v166 = vmul.f32 %v165, 2.1237322e-06
    %v167 = vadd.f32 %v166, 0.00028619796
    %v168 = vmul.f32 %v165, %v167
    %v169 = vadd.f32 %v168, 0.0036580483
    %v170 = vmul.f32 %v165, %v169
    %v171 = vadd.f32 %v170, 0.05243302
    %v172 = vmul.f32 %v165, %v171
    %v173 = vadd.f32 %v172, 0.18741608
    %v174 = vmul.f32 %v165, %v173
    %v175 = vadd.f32 %v174, 1.1283791
    %v176 = vmul.f32 %v163, %v175
    %v177 = vmul.f32 %v165, 3.8918573e-05
    %v178 = vadd.f32 %v177, 0.001143296
    %v179 = vmul.f32 %v165, %v178
    %v180 = vadd.f32 %v179, 0.014752088
    %v181 = vmul.f32 %v165, %v180
    %v182 = vadd.f32 %v181, 0.112945676
    %v183 = vmul.f32 %v165, %v182
    %v184 = vadd.f32 %v183, 0.4994258
    %v185 = vmul.f32 %v165, %v184
    %v186 = vadd.f32 %v185, 1.0
    %v187 = vrcp.pop %v186
    %v188 = vmul.f32 %v186, %v187
    %v189 = vsub.f32 1.0, %v188
    %v190 = vmul.f32 %v187, %v189
    %v191 = vadd.f32 %v187, %v190
    %vm192 = vweird.f32 %v186
    %vm193 = vweird.f32 %v187
    %vm194 = vmor %vm192, %vm193
    %v195 = vsel %vm194, %v187, %v191
    %v196 = vand.u32 2147483647, %v186
    %vm197 = vcmp.eq.f32.partialorder %v196, 8.507059e+37
    %v198 = vand.u32 %v186, 2147483648
    %v199 = vor.u32 1.1754944e-38, %v198
    %v200 = vsel %vm197, %v199, %v195
    %v201 = vmul.f32 %v176, %v200
    %v202 = vmin.f32 %v201, 1.0
    %v203 = vmax.f32 %v202, -1.0
    %v204 = vadd.f32 %v203, 1.0
    %v205 = vmul.f32 %v162, %v204
    %v206 = vld [vmem:[%s5] sm:$0xff]
    %v207 = vld [vmem:[%s5 + $0x8] sm:$0xff]
    %v208 = vld [vmem:[%s5 + $0x10] sm:$0xff]
    %v209 = vld [vmem:[%s5 + $0x18] sm:$0xff]
    %v210 = vld [vmem:[%s5 + $0x20] sm:$0xff]
    %v211 = vld [vmem:[%s5 + $0x28] sm:$0xff]
    %v212 = vld [vmem:[%s5 + $0x30] sm:$0xff]
    %v213 = vld [vmem:[%s5 + $0x38] sm:$0xff]
    %v214 = vld [vmem:[%s5 + $0x40] sm:$0xff]
    %v215 = vld [vmem:[%s5 + $0x48] sm:$0xff]
    %v216 = vld [vmem:[%s5 + $0x50] sm:$0xff]
    %v217 = vld [vmem:[%s5 + $0x58] sm:$0xff]
    %v218 = vld [vmem:[%s5 + $0x60] sm:$0xff]
    %v219 = vld [vmem:[%s5 + $0x68] sm:$0xff]
    %v220 = vld [vmem:[%s5 + $0x70] sm:$0xff]
    %v221 = vld [vmem:[%s5 + $0x78] sm:$0xff]
    %v222 = vld [vmem:[%s6] sm:$0x1]
    %v223 = vld [vmem:[%s6 + $0x1] sm:$0x1]
    %v224 = vld [vmem:[%s6 + $0x2] sm:$0x1]
    %v225 = vld [vmem:[%s6 + $0x3] sm:$0x1]
    %v230 = vperm.slane %v222, 0
    %v231 = vperm.slane %v223, 0
    %v232 = vperm.slane %v224, 0
    %v233 = vperm.slane %v225, 0
    %vm238 = vcmask 261120
    %v240 = vsel %vm238, %v129, 0
    %242 = vmatpush.msra.mxu0 0.0
    %243 = vmatpush.msra.mxu0 0.0
    %244 = vmatpush.msra.mxu0 0.0
    %245 = vmatpush.msra.mxu0 0.0
    %246 = vmatpush.msra.mxu0 0.0
    %247 = vmatpush.msra.mxu0 0.0
    %248 = vmatpush.msra.mxu0 0.0
    %249 = vmatpush.msra.mxu0 0.0
    %250 = vmatpush.msra.mxu0 0.0
    %251 = vmatpush.msra.mxu0 0.0
    %252 = vmatpush.msra.mxu0 0.0
    %253 = vmatpush.msra.mxu0 0.0
    %254 = vmatpush.msra.mxu0 %v209
    %255 = vmatpush.msra.mxu0 %v208
    %256 = vmatpush.msra.mxu0 %v207
    %257 = vmatpush.msra.mxu0 %v206
    %258 = vmatmul.f32.gmra.mxu0 %v240
    %v259 = vpop.f32.mrf.mxu0
    %v260 = vadd.f32 %v230, %v259
    %261 = vdwg.mxu0
    %262 = vmatpush.msra.mxu0 0.0
    %263 = vmatpush.msra.mxu0 0.0
    %264 = vmatpush.msra.mxu0 0.0
    %265 = vmatpush.msra.mxu0 0.0
    %266 = vmatpush.msra.mxu0 0.0
    %267 = vmatpush.msra.mxu0 0.0
    %268 = vmatpush.msra.mxu0 0.0
    %269 = vmatpush.msra.mxu0 0.0
    %270 = vmatpush.msra.mxu0 0.0
    %271 = vmatpush.msra.mxu0 0.0
    %272 = vmatpush.msra.mxu0 0.0
    %273 = vmatpush.msra.mxu0 0.0
    %274 = vmatpush.msra.mxu0 %v213
    %275 = vmatpush.msra.mxu0 %v212
    %276 = vmatpush.msra.mxu0 %v211
    %277 = vmatpush.msra.mxu0 %v210
    %278 = vmatmul.f32.gmra.mxu0 %v240
    %v279 = vpop.f32.mrf.mxu0
    %v280 = vadd.f32 %v231, %v279
    %281 = vdwg.mxu0
    %282 = vmatpush.msra.mxu0 0.0
    %283 = vmatpush.msra.mxu0 0.0
    %284 = vmatpush.msra.mxu0 0.0
    %285 = vmatpush.msra.mxu0 0.0
    %286 = vmatpush.msra.mxu0 0.0
    %287 = vmatpush.msra.mxu0 0.0
    %288 = vmatpush.msra.mxu0 0.0
    %289 = vmatpush.msra.mxu0 0.0
    %290 = vmatpush.msra.mxu0 0.0
    %291 = vmatpush.msra.mxu0 0.0
    %292 = vmatpush.msra.mxu0 0.0
    %293 = vmatpush.msra.mxu0 0.0
    %294 = vmatpush.msra.mxu0 %v217
    %295 = vmatpush.msra.mxu0 %v216
    %296 = vmatpush.msra.mxu0 %v215
    %297 = vmatpush.msra.mxu0 %v214
    %298 = vmatmul.f32.gmra.mxu0 %v240
    %v299 = vpop.f32.mrf.mxu0
    %v300 = vadd.f32 %v232, %v299
    %301 = vdwg.mxu0
    %302 = vmatpush.msra.mxu0 0.0
    %303 = vmatpush.msra.mxu0 0.0
    %304 = vmatpush.msra.mxu0 0.0
    %305 = vmatpush.msra.mxu0 0.0
    %306 = vmatpush.msra.mxu0 0.0
    %307 = vmatpush.msra.mxu0 0.0
    %308 = vmatpush.msra.mxu0 0.0
    %309 = vmatpush.msra.mxu0 0.0
    %310 = vmatpush.msra.mxu0 0.0
    %311 = vmatpush.msra.mxu0 0.0
    %312 = vmatpush.msra.mxu0 0.0
    %313 = vmatpush.msra.mxu0 0.0
    %314 = vmatpush.msra.mxu0 %v221
    %315 = vmatpush.msra.mxu0 %v220
    %316 = vmatpush.msra.mxu0 %v219
    %317 = vmatpush.msra.mxu0 %v218
    %318 = vmatmul.f32.gmra.mxu0 %v240
    %v319 = vpop.f32.mrf.mxu0
    %v320 = vadd.f32 %v233, %v319
    %321 = vdwg.mxu0
    %s322 = scalar_lea.vmem %s5, 128
    %v323 = vld [vmem:[%s322] sm:$0xff]
    %v324 = vld [vmem:[%s322 + $0x8] sm:$0xff]
    %v325 = vld [vmem:[%s322 + $0x10] sm:$0xff]
    %v326 = vld [vmem:[%s322 + $0x18] sm:$0xff]
    %v327 = vld [vmem:[%s322 + $0x20] sm:$0xff]
    %v328 = vld [vmem:[%s322 + $0x28] sm:$0xff]
    %v329 = vld [vmem:[%s322 + $0x30] sm:$0xff]
    %v330 = vld [vmem:[%s322 + $0x38] sm:$0xff]
    %v331 = vld [vmem:[%s322 + $0x40] sm:$0xff]
    %v332 = vld [vmem:[%s322 + $0x48] sm:$0xff]
    %v333 = vld [vmem:[%s322 + $0x50] sm:$0xff]
    %v334 = vld [vmem:[%s322 + $0x58] sm:$0xff]
    %v335 = vld [vmem:[%s322 + $0x60] sm:$0xff]
    %v336 = vld [vmem:[%s322 + $0x68] sm:$0xff]
    %v337 = vld [vmem:[%s322 + $0x70] sm:$0xff]
    %v338 = vld [vmem:[%s322 + $0x78] sm:$0xff]
    %s339 = scalar_lea.vmem %s6, 4
    %v340 = vld [vmem:[%s339] sm:$0x1]
    %v341 = vld [vmem:[%s339 + $0x1] sm:$0x1]
    %v342 = vld [vmem:[%s339 + $0x2] sm:$0x1]
    %v343 = vld [vmem:[%s339 + $0x3] sm:$0x1]
    %v348 = vperm.slane %v340, 0
    %v349 = vperm.slane %v341, 0
    %v350 = vperm.slane %v342, 0
    %v351 = vperm.slane %v343, 0
    %v357 = vsel %vm238, %v205, 0
    %359 = vmatpush.msra.mxu0 0.0
    %360 = vmatpush.msra.mxu0 0.0
    %361 = vmatpush.msra.mxu0 0.0
    %362 = vmatpush.msra.mxu0 0.0
    %363 = vmatpush.msra.mxu0 0.0
    %364 = vmatpush.msra.mxu0 0.0
    %365 = vmatpush.msra.mxu0 0.0
    %366 = vmatpush.msra.mxu0 0.0
    %367 = vmatpush.msra.mxu0 0.0
    %368 = vmatpush.msra.mxu0 0.0
    %369 = vmatpush.msra.mxu0 0.0
    %370 = vmatpush.msra.mxu0 0.0
    %371 = vmatpush.msra.mxu0 %v326
    %372 = vmatpush.msra.mxu0 %v325
    %373 = vmatpush.msra.mxu0 %v324
    %374 = vmatpush.msra.mxu0 %v323
    %375 = vmatmul.f32.gmra.mxu0 %v357
    %v376 = vpop.f32.mrf.mxu0
    %v377 = vadd.f32 %v348, %v376
    %378 = vdwg.mxu0
    %379 = vmatpush.msra.mxu0 0.0
    %380 = vmatpush.msra.mxu0 0.0
    %381 = vmatpush.msra.mxu0 0.0
    %382 = vmatpush.msra.mxu0 0.0
    %383 = vmatpush.msra.mxu0 0.0
    %384 = vmatpush.msra.mxu0 0.0
    %385 = vmatpush.msra.mxu0 0.0
    %386 = vmatpush.msra.mxu0 0.0
    %387 = vmatpush.msra.mxu0 0.0
    %388 = vmatpush.msra.mxu0 0.0
    %389 = vmatpush.msra.mxu0 0.0
    %390 = vmatpush.msra.mxu0 0.0
    %391 = vmatpush.msra.mxu0 %v330
    %392 = vmatpush.msra.mxu0 %v329
    %393 = vmatpush.msra.mxu0 %v328
    %394 = vmatpush.msra.mxu0 %v327
    %395 = vmatmul.f32.gmra.mxu0 %v357
    %v396 = vpop.f32.mrf.mxu0
    %v397 = vadd.f32 %v349, %v396
    %398 = vdwg.mxu0
    %399 = vmatpush.msra.mxu0 0.0
    %400 = vmatpush.msra.mxu0 0.0
    %401 = vmatpush.msra.mxu0 0.0
    %402 = vmatpush.msra.mxu0 0.0
    %403 = vmatpush.msra.mxu0 0.0
    %404 = vmatpush.msra.mxu0 0.0
    %405 = vmatpush.msra.mxu0 0.0
    %406 = vmatpush.msra.mxu0 0.0
    %407 = vmatpush.msra.mxu0 0.0
    %408 = vmatpush.msra.mxu0 0.0
    %409 = vmatpush.msra.mxu0 0.0
    %410 = vmatpush.msra.mxu0 0.0
    %411 = vmatpush.msra.mxu0 %v334
    %412 = vmatpush.msra.mxu0 %v333
    %413 = vmatpush.msra.mxu0 %v332
    %414 = vmatpush.msra.mxu0 %v331
    %415 = vmatmul.f32.gmra.mxu0 %v357
    %v416 = vpop.f32.mrf.mxu0
    %v417 = vadd.f32 %v350, %v416
    %418 = vdwg.mxu0
    %419 = vmatpush.msra.mxu0 0.0
    %420 = vmatpush.msra.mxu0 0.0
    %421 = vmatpush.msra.mxu0 0.0
    %422 = vmatpush.msra.mxu0 0.0
    %423 = vmatpush.msra.mxu0 0.0
    %424 = vmatpush.msra.mxu0 0.0
    %425 = vmatpush.msra.mxu0 0.0
    %426 = vmatpush.msra.mxu0 0.0
    %427 = vmatpush.msra.mxu0 0.0
    %428 = vmatpush.msra.mxu0 0.0
    %429 = vmatpush.msra.mxu0 0.0
    %430 = vmatpush.msra.mxu0 0.0
    %431 = vmatpush.msra.mxu0 %v338
    %432 = vmatpush.msra.mxu0 %v337
    %433 = vmatpush.msra.mxu0 %v336
    %434 = vmatpush.msra.mxu0 %v335
    %435 = vmatmul.f32.gmra.mxu0 %v357
    %v436 = vpop.f32.mrf.mxu0
    %v437 = vadd.f32 %v351, %v436
    %438 = vdwg.mxu0
    %s439 = scalar_lea.vmem %s5, 512
    %v440 = vld [vmem:[%s439] sm:$0xff]
    %v441 = vld [vmem:[%s439 + $0x8] sm:$0xff]
    %v442 = vld [vmem:[%s439 + $0x10] sm:$0xff]
    %v443 = vld [vmem:[%s439 + $0x18] sm:$0xff]
    %v444 = vld [vmem:[%s439 + $0x20] sm:$0xff]
    %v445 = vld [vmem:[%s439 + $0x28] sm:$0xff]
    %v446 = vld [vmem:[%s439 + $0x30] sm:$0xff]
    %v447 = vld [vmem:[%s439 + $0x38] sm:$0xff]
    %v448 = vld [vmem:[%s439 + $0x40] sm:$0xff]
    %v449 = vld [vmem:[%s439 + $0x48] sm:$0xff]
    %v450 = vld [vmem:[%s439 + $0x50] sm:$0xff]
    %v451 = vld [vmem:[%s439 + $0x58] sm:$0xff]
    %v452 = vld [vmem:[%s439 + $0x60] sm:$0xff]
    %v453 = vld [vmem:[%s439 + $0x68] sm:$0xff]
    %v454 = vld [vmem:[%s439 + $0x70] sm:$0xff]
    %v455 = vld [vmem:[%s439 + $0x78] sm:$0xff]
    %s456 = scalar_lea.vmem %s6, 16
    %v457 = vld [vmem:[%s456] sm:$0x1]
    %v458 = vld [vmem:[%s456 + $0x1] sm:$0x1]
    %v459 = vld [vmem:[%s456 + $0x2] sm:$0x1]
    %v460 = vld [vmem:[%s456 + $0x3] sm:$0x1]
    %v465 = vperm.slane %v457, 0
    %v466 = vperm.slane %v458, 0
    %v467 = vperm.slane %v459, 0
    %v468 = vperm.slane %v460, 0
    %473 = vmatpush.msra.mxu0 0.0
    %474 = vmatpush.msra.mxu0 0.0
    %475 = vmatpush.msra.mxu0 0.0
    %476 = vmatpush.msra.mxu0 0.0
    %477 = vmatpush.msra.mxu0 0.0
    %478 = vmatpush.msra.mxu0 0.0
    %479 = vmatpush.msra.mxu0 0.0
    %480 = vmatpush.msra.mxu0 0.0
    %481 = vmatpush.msra.mxu0 0.0
    %482 = vmatpush.msra.mxu0 0.0
    %483 = vmatpush.msra.mxu0 0.0
    %484 = vmatpush.msra.mxu0 0.0
    %485 = vmatpush.msra.mxu0 %v443
    %486 = vmatpush.msra.mxu0 %v442
    %487 = vmatpush.msra.mxu0 %v441
    %488 = vmatpush.msra.mxu0 %v440
    %489 = vmatmul.f32.gmra.mxu0 %v240
    %v490 = vpop.f32.mrf.mxu0
    %v491 = vadd.f32 %v465, %v490
    %492 = vdwg.mxu0
    %493 = vmatpush.msra.mxu0 0.0
    %494 = vmatpush.msra.mxu0 0.0
    %495 = vmatpush.msra.mxu0 0.0
    %496 = vmatpush.msra.mxu0 0.0
    %497 = vmatpush.msra.mxu0 0.0
    %498 = vmatpush.msra.mxu0 0.0
    %499 = vmatpush.msra.mxu0 0.0
    %500 = vmatpush.msra.mxu0 0.0
    %501 = vmatpush.msra.mxu0 0.0
    %502 = vmatpush.msra.mxu0 0.0
    %503 = vmatpush.msra.mxu0 0.0
    %504 = vmatpush.msra.mxu0 0.0
    %505 = vmatpush.msra.mxu0 %v447
    %506 = vmatpush.msra.mxu0 %v446
    %507 = vmatpush.msra.mxu0 %v445
    %508 = vmatpush.msra.mxu0 %v444
    %509 = vmatmul.f32.gmra.mxu0 %v240
    %v510 = vpop.f32.mrf.mxu0
    %v511 = vadd.f32 %v466, %v510
    %512 = vdwg.mxu0
    %513 = vmatpush.msra.mxu0 0.0
    %514 = vmatpush.msra.mxu0 0.0
    %515 = vmatpush.msra.mxu0 0.0
    %516 = vmatpush.msra.mxu0 0.0
    %517 = vmatpush.msra.mxu0 0.0
    %518 = vmatpush.msra.mxu0 0.0
    %519 = vmatpush.msra.mxu0 0.0
    %520 = vmatpush.msra.mxu0 0.0
    %521 = vmatpush.msra.mxu0 0.0
    %522 = vmatpush.msra.mxu0 0.0
    %523 = vmatpush.msra.mxu0 0.0
    %524 = vmatpush.msra.mxu0 0.0
    %525 = vmatpush.msra.mxu0 %v451
    %526 = vmatpush.msra.mxu0 %v450
    %527 = vmatpush.msra.mxu0 %v449
    %528 = vmatpush.msra.mxu0 %v448
    %529 = vmatmul.f32.gmra.mxu0 %v240
    %v530 = vpop.f32.mrf.mxu0
    %v531 = vadd.f32 %v467, %v530
    %532 = vdwg.mxu0
    %533 = vmatpush.msra.mxu0 0.0
    %534 = vmatpush.msra.mxu0 0.0
    %535 = vmatpush.msra.mxu0 0.0
    %536 = vmatpush.msra.mxu0 0.0
    %537 = vmatpush.msra.mxu0 0.0
    %538 = vmatpush.msra.mxu0 0.0
    %539 = vmatpush.msra.mxu0 0.0
    %540 = vmatpush.msra.mxu0 0.0
    %541 = vmatpush.msra.mxu0 0.0
    %542 = vmatpush.msra.mxu0 0.0
    %543 = vmatpush.msra.mxu0 0.0
    %544 = vmatpush.msra.mxu0 0.0
    %545 = vmatpush.msra.mxu0 %v455
    %546 = vmatpush.msra.mxu0 %v454
    %547 = vmatpush.msra.mxu0 %v453
    %548 = vmatpush.msra.mxu0 %v452
    %549 = vmatmul.f32.gmra.mxu0 %v240
    %v550 = vpop.f32.mrf.mxu0
    %v551 = vadd.f32 %v468, %v550
    %552 = vdwg.mxu0
    %s553 = scalar_lea.vmem %s5, 1280
    %v554 = vld [vmem:[%s553] sm:$0xff]
    %v555 = vld [vmem:[%s553 + $0x8] sm:$0xff]
    %v556 = vld [vmem:[%s553 + $0x10] sm:$0xff]
    %v557 = vld [vmem:[%s553 + $0x18] sm:$0xff]
    %v558 = vld [vmem:[%s553 + $0x20] sm:$0xff]
    %v559 = vld [vmem:[%s553 + $0x28] sm:$0xff]
    %v560 = vld [vmem:[%s553 + $0x30] sm:$0xff]
    %v561 = vld [vmem:[%s553 + $0x38] sm:$0xff]
    %v562 = vld [vmem:[%s553 + $0x40] sm:$0xff]
    %v563 = vld [vmem:[%s553 + $0x48] sm:$0xff]
    %v564 = vld [vmem:[%s553 + $0x50] sm:$0xff]
    %v565 = vld [vmem:[%s553 + $0x58] sm:$0xff]
    %v566 = vld [vmem:[%s553 + $0x60] sm:$0xff]
    %v567 = vld [vmem:[%s553 + $0x68] sm:$0xff]
    %v568 = vld [vmem:[%s553 + $0x70] sm:$0xff]
    %v569 = vld [vmem:[%s553 + $0x78] sm:$0xff]
    %s570 = scalar_lea.vmem %s6, 40
    %v571 = vld [vmem:[%s570] sm:$0x1]
    %v572 = vld [vmem:[%s570 + $0x1] sm:$0x1]
    %v573 = vld [vmem:[%s570 + $0x2] sm:$0x1]
    %v574 = vld [vmem:[%s570 + $0x3] sm:$0x1]
    %v579 = vperm.slane %v571, 0
    %v580 = vperm.slane %v572, 0
    %v581 = vperm.slane %v573, 0
    %v582 = vperm.slane %v574, 0
    %587 = vmatpush.msra.mxu0 0.0
    %588 = vmatpush.msra.mxu0 0.0
    %589 = vmatpush.msra.mxu0 0.0
    %590 = vmatpush.msra.mxu0 0.0
    %591 = vmatpush.msra.mxu0 0.0
    %592 = vmatpush.msra.mxu0 0.0
    %593 = vmatpush.msra.mxu0 0.0
    %594 = vmatpush.msra.mxu0 0.0
    %595 = vmatpush.msra.mxu0 0.0
    %596 = vmatpush.msra.mxu0 0.0
    %597 = vmatpush.msra.mxu0 0.0
    %598 = vmatpush.msra.mxu0 0.0
    %599 = vmatpush.msra.mxu0 %v557
    %600 = vmatpush.msra.mxu0 %v556
    %601 = vmatpush.msra.mxu0 %v555
    %602 = vmatpush.msra.mxu0 %v554
    %603 = vmatmul.f32.gmra.mxu0 %v240
    %v604 = vpop.f32.mrf.mxu0
    %v605 = vadd.f32 %v579, %v604
    %606 = vdwg.mxu0
    %607 = vmatpush.msra.mxu0 0.0
    %608 = vmatpush.msra.mxu0 0.0
    %609 = vmatpush.msra.mxu0 0.0
    %610 = vmatpush.msra.mxu0 0.0
    %611 = vmatpush.msra.mxu0 0.0
    %612 = vmatpush.msra.mxu0 0.0
    %613 = vmatpush.msra.mxu0 0.0
    %614 = vmatpush.msra.mxu0 0.0
    %615 = vmatpush.msra.mxu0 0.0
    %616 = vmatpush.msra.mxu0 0.0
    %617 = vmatpush.msra.mxu0 0.0
    %618 = vmatpush.msra.mxu0 0.0
    %619 = vmatpush.msra.mxu0 %v561
    %620 = vmatpush.msra.mxu0 %v560
    %621 = vmatpush.msra.mxu0 %v559
    %622 = vmatpush.msra.mxu0 %v558
    %623 = vmatmul.f32.gmra.mxu0 %v240
    %v624 = vpop.f32.mrf.mxu0
    %v625 = vadd.f32 %v580, %v624
    %626 = vdwg.mxu0
    %627 = vmatpush.msra.mxu0 0.0
    %628 = vmatpush.msra.mxu0 0.0
    %629 = vmatpush.msra.mxu0 0.0
    %630 = vmatpush.msra.mxu0 0.0
    %631 = vmatpush.msra.mxu0 0.0
    %632 = vmatpush.msra.mxu0 0.0
    %633 = vmatpush.msra.mxu0 0.0
    %634 = vmatpush.msra.mxu0 0.0
    %635 = vmatpush.msra.mxu0 0.0
    %636 = vmatpush.msra.mxu0 0.0
    %637 = vmatpush.msra.mxu0 0.0
    %638 = vmatpush.msra.mxu0 0.0
    %639 = vmatpush.msra.mxu0 %v565
    %640 = vmatpush.msra.mxu0 %v564
    %641 = vmatpush.msra.mxu0 %v563
    %642 = vmatpush.msra.mxu0 %v562
    %643 = vmatmul.f32.gmra.mxu0 %v240
    %v644 = vpop.f32.mrf.mxu0
    %v645 = vadd.f32 %v581, %v644
    %646 = vdwg.mxu0
    %647 = vmatpush.msra.mxu0 0.0
    %648 = vmatpush.msra.mxu0 0.0
    %649 = vmatpush.msra.mxu0 0.0
    %650 = vmatpush.msra.mxu0 0.0
    %651 = vmatpush.msra.mxu0 0.0
    %652 = vmatpush.msra.mxu0 0.0
    %653 = vmatpush.msra.mxu0 0.0
    %654 = vmatpush.msra.mxu0 0.0
    %655 = vmatpush.msra.mxu0 0.0
    %656 = vmatpush.msra.mxu0 0.0
    %657 = vmatpush.msra.mxu0 0.0
    %658 = vmatpush.msra.mxu0 0.0
    %659 = vmatpush.msra.mxu0 %v569
    %660 = vmatpush.msra.mxu0 %v568
    %661 = vmatpush.msra.mxu0 %v567
    %662 = vmatpush.msra.mxu0 %v566
    %663 = vmatmul.f32.gmra.mxu0 %v240
    %v664 = vpop.f32.mrf.mxu0
    %v665 = vadd.f32 %v582, %v664
    %666 = vdwg.mxu0
    %vm667 = vcmask 64512
    %v669 = vsel %vm667, %v377, 0
    %v672 = vsel %vm667, %v491, 0
    %674 = vmatpush.xpose.msra.mxu0 0.0
    %675 = vmatpush.xpose.msra.mxu0 0.0
    %676 = vmatpush.xpose.msra.mxu0 0.0
    %677 = vmatpush.xpose.msra.mxu0 0.0
    %678 = vmatpush.xpose.msra.mxu0 0.0
    %679 = vmatpush.xpose.msra.mxu0 0.0
    %680 = vmatpush.xpose.msra.mxu0 0.0
    %681 = vmatpush.xpose.msra.mxu0 0.0
    %682 = vmatpush.xpose.msra.mxu0 0.0
    %683 = vmatpush.xpose.msra.mxu0 0.0
    %684 = vmatpush.xpose.msra.mxu0 0.0
    %685 = vmatpush.xpose.msra.mxu0 0.0
    %686 = vmatpush.xpose.msra.mxu0 0.0
    %687 = vmatpush.xpose.msra.mxu0 0.0
    %688 = vmatpush.xpose.msra.mxu0 0.0
    %689 = vmatpush.xpose.msra.mxu0 %v672
    %690 = vmatmul.f32.gmra.mxu0 %v669
    %v691 = vpop.f32.mrf.mxu0
    %v692 = vadd.f32 0.0, %v691
    %693 = vdwg.mxu0
    %v695 = vsel %vm667, %v397, 0
    %v698 = vsel %vm667, %v511, 0
    %700 = vmatpush.xpose.msra.mxu0 0.0
    %701 = vmatpush.xpose.msra.mxu0 0.0
    %702 = vmatpush.xpose.msra.mxu0 0.0
    %703 = vmatpush.xpose.msra.mxu0 0.0
    %704 = vmatpush.xpose.msra.mxu0 0.0
    %705 = vmatpush.xpose.msra.mxu0 0.0
    %706 = vmatpush.xpose.msra.mxu0 0.0
    %707 = vmatpush.xpose.msra.mxu0 0.0
    %708 = vmatpush.xpose.msra.mxu0 0.0
    %709 = vmatpush.xpose.msra.mxu0 0.0
    %710 = vmatpush.xpose.msra.mxu0 0.0
    %711 = vmatpush.xpose.msra.mxu0 0.0
    %712 = vmatpush.xpose.msra.mxu0 0.0
    %713 = vmatpush.xpose.msra.mxu0 0.0
    %714 = vmatpush.xpose.msra.mxu0 0.0
    %715 = vmatpush.xpose.msra.mxu0 %v698
    %716 = vmatmul.f32.gmra.mxu0 %v695
    %v717 = vpop.f32.mrf.mxu0
    %v718 = vadd.f32 0.0, %v717
    %719 = vdwg.mxu0
    %v721 = vsel %vm667, %v417, 0
    %v724 = vsel %vm667, %v531, 0
    %726 = vmatpush.xpose.msra.mxu0 0.0
    %727 = vmatpush.xpose.msra.mxu0 0.0
    %728 = vmatpush.xpose.msra.mxu0 0.0
    %729 = vmatpush.xpose.msra.mxu0 0.0
    %730 = vmatpush.xpose.msra.mxu0 0.0
    %731 = vmatpush.xpose.msra.mxu0 0.0
    %732 = vmatpush.xpose.msra.mxu0 0.0
    %733 = vmatpush.xpose.msra.mxu0 0.0
    %734 = vmatpush.xpose.msra.mxu0 0.0
    %735 = vmatpush.xpose.msra.mxu0 0.0
    %736 = vmatpush.xpose.msra.mxu0 0.0
    %737 = vmatpush.xpose.msra.mxu0 0.0
    %738 = vmatpush.xpose.msra.mxu0 0.0
    %739 = vmatpush.xpose.msra.mxu0 0.0
    %740 = vmatpush.xpose.msra.mxu0 0.0
    %741 = vmatpush.xpose.msra.mxu0 %v724
    %742 = vmatmul.f32.gmra.mxu0 %v721
    %v743 = vpop.f32.mrf.mxu0
    %v744 = vadd.f32 0.0, %v743
    %745 = vdwg.mxu0
    %v747 = vsel %vm667, %v437, 0
    %v750 = vsel %vm667, %v551, 0
    %752 = vmatpush.xpose.msra.mxu0 0.0
    %753 = vmatpush.xpose.msra.mxu0 0.0
    %754 = vmatpush.xpose.msra.mxu0 0.0
    %755 = vmatpush.xpose.msra.mxu0 0.0
    %756 = vmatpush.xpose.msra.mxu0 0.0
    %757 = vmatpush.xpose.msra.mxu0 0.0
    %758 = vmatpush.xpose.msra.mxu0 0.0
    %759 = vmatpush.xpose.msra.mxu0 0.0
    %760 = vmatpush.xpose.msra.mxu0 0.0
    %761 = vmatpush.xpose.msra.mxu0 0.0
    %762 = vmatpush.xpose.msra.mxu0 0.0
    %763 = vmatpush.xpose.msra.mxu0 0.0
    %764 = vmatpush.xpose.msra.mxu0 0.0
    %765 = vmatpush.xpose.msra.mxu0 0.0
    %766 = vmatpush.xpose.msra.mxu0 0.0
    %767 = vmatpush.xpose.msra.mxu0 %v750
    %768 = vmatmul.f32.gmra.mxu0 %v747
    %v769 = vpop.f32.mrf.mxu0
    %v770 = vadd.f32 0.0, %v769
    %771 = vdwg.mxu0
    %v772 = vld [vmem:[%s2] sm:$0xff]
    %vm773 = vcmp.gt.f32.partialorder %v772, 0.5
    %v774 = vsel %vm773, 1, 0
    %vm775 = vcmp.eq.s32.totalorder %v774, 1
    %v776 = vsel %vm775, %v692, -1e+30
    %v777 = vsel %vm775, %v718, -1e+30
    %v778 = vsel %vm775, %v744, -1e+30
    %v779 = vsel %vm775, %v770, -1e+30
    %v780 = vsel %vm667, %v776, -inf
    %781 = vmax.xlane.f32.xlu0 %v780
    %v782 = vpop.xlane.xlu0 %781
    %v783 = vsel %vm667, %v777, -inf
    %784 = vmax.xlane.f32.xlu0 %v783
    %v785 = vpop.xlane.xlu0 %784
    %v786 = vsel %vm667, %v778, -inf
    %787 = vmax.xlane.f32.xlu0 %v786
    %v788 = vpop.xlane.xlu0 %787
    %v789 = vsel %vm667, %v779, -inf
    %790 = vmax.xlane.f32.xlu0 %v789
    %v791 = vpop.xlane.xlu0 %790
    %v792 = vsub.f32 %v776, %v782
    %v793 = vsub.f32 %v777, %v785
    %v794 = vsub.f32 %v778, %v788
    %v795 = vsub.f32 %v779, %v791
    %v796 = vmul.f32 %v792, 1.442695
    %v797 = vpow.pop %v796
    %v798 = vmul.f32 %v793, 1.442695
    %v799 = vpow.pop %v798
    %v800 = vmul.f32 %v794, 1.442695
    %v801 = vpow.pop %v800
    %v802 = vmul.f32 %v795, 1.442695
    %v803 = vpow.pop %v802
    %v804 = vmul.f32 %v797, %v772
    %v805 = vmul.f32 %v799, %v772
    %v806 = vmul.f32 %v801, %v772
    %v807 = vmul.f32 %v803, %v772
    %v808 = vsel %vm667, %v804, 0.0
    %809 = vadd.xlane.f32.xlu0 %v808
    %v810 = vpop.xlane.xlu0 %809
    %v811 = vsel %vm667, %v805, 0.0
    %812 = vadd.xlane.f32.xlu0 %v811
    %v813 = vpop.xlane.xlu0 %812
    %v814 = vsel %vm667, %v806, 0.0
    %815 = vadd.xlane.f32.xlu0 %v814
    %v816 = vpop.xlane.xlu0 %815
    %v817 = vsel %vm667, %v807, 0.0
    %818 = vadd.xlane.f32.xlu0 %v817
    %v819 = vpop.xlane.xlu0 %818
    %v820 = vmax.f32 %v810, 1e-30
    %v821 = vmax.f32 %v813, 1e-30
    %v822 = vmax.f32 %v816, 1e-30
    %v823 = vmax.f32 %v819, 1e-30
    %v824 = vrcp.pop %v820
    %v825 = vmul.f32 %v820, %v824
    %v826 = vsub.f32 1.0, %v825
    %v827 = vmul.f32 %v824, %v826
    %v828 = vadd.f32 %v824, %v827
    %vm829 = vweird.f32 %v820
    %vm830 = vweird.f32 %v824
    %vm831 = vmor %vm829, %vm830
    %v832 = vsel %vm831, %v824, %v828
    %v833 = vand.u32 2147483647, %v820
    %vm834 = vcmp.eq.f32.partialorder %v833, 8.507059e+37
    %v835 = vand.u32 %v820, 2147483648
    %v836 = vor.u32 1.1754944e-38, %v835
    %v837 = vsel %vm834, %v836, %v832
    %v838 = vmul.f32 1.0, %v837
    %v839 = vrcp.pop %v821
    %v840 = vmul.f32 %v821, %v839
    %v841 = vsub.f32 1.0, %v840
    %v842 = vmul.f32 %v839, %v841
    %v843 = vadd.f32 %v839, %v842
    %vm844 = vweird.f32 %v821
    %vm845 = vweird.f32 %v839
    %vm846 = vmor %vm844, %vm845
    %v847 = vsel %vm846, %v839, %v843
    %v848 = vand.u32 2147483647, %v821
    %vm849 = vcmp.eq.f32.partialorder %v848, 8.507059e+37
    %v850 = vand.u32 %v821, 2147483648
    %v851 = vor.u32 1.1754944e-38, %v850
    %v852 = vsel %vm849, %v851, %v847
    %v853 = vmul.f32 1.0, %v852
    %v854 = vrcp.pop %v822
    %v855 = vmul.f32 %v822, %v854
    %v856 = vsub.f32 1.0, %v855
    %v857 = vmul.f32 %v854, %v856
    %v858 = vadd.f32 %v854, %v857
    %vm859 = vweird.f32 %v822
    %vm860 = vweird.f32 %v854
    %vm861 = vmor %vm859, %vm860
    %v862 = vsel %vm861, %v854, %v858
    %v863 = vand.u32 2147483647, %v822
    %vm864 = vcmp.eq.f32.partialorder %v863, 8.507059e+37
    %v865 = vand.u32 %v822, 2147483648
    %v866 = vor.u32 1.1754944e-38, %v865
    %v867 = vsel %vm864, %v866, %v862
    %v868 = vmul.f32 1.0, %v867
    %v869 = vrcp.pop %v823
    %v870 = vmul.f32 %v823, %v869
    %v871 = vsub.f32 1.0, %v870
    %v872 = vmul.f32 %v869, %v871
    %v873 = vadd.f32 %v869, %v872
    %vm874 = vweird.f32 %v823
    %vm875 = vweird.f32 %v869
    %vm876 = vmor %vm874, %vm875
    %v877 = vsel %vm876, %v869, %v873
    %v878 = vand.u32 2147483647, %v823
    %vm879 = vcmp.eq.f32.partialorder %v878, 8.507059e+37
    %v880 = vand.u32 %v823, 2147483648
    %v881 = vor.u32 1.1754944e-38, %v880
    %v882 = vsel %vm879, %v881, %v877
    %v883 = vmul.f32 1.0, %v882
    %v885 = vsel %vm667, %v804, 0
    %887 = vmatpush.msra.mxu0 0.0
    %888 = vmatpush.msra.mxu0 0.0
    %889 = vmatpush.msra.mxu0 0.0
    %890 = vmatpush.msra.mxu0 0.0
    %891 = vmatpush.msra.mxu0 0.0
    %892 = vmatpush.msra.mxu0 0.0
    %893 = vmatpush.msra.mxu0 0.0
    %894 = vmatpush.msra.mxu0 0.0
    %895 = vmatpush.msra.mxu0 0.0
    %896 = vmatpush.msra.mxu0 0.0
    %897 = vmatpush.msra.mxu0 0.0
    %898 = vmatpush.msra.mxu0 0.0
    %899 = vmatpush.msra.mxu0 0.0
    %900 = vmatpush.msra.mxu0 0.0
    %901 = vmatpush.msra.mxu0 0.0
    %902 = vmatpush.msra.mxu0 %v605
    %903 = vmatmul.f32.gmra.mxu0 %v885
    %v904 = vpop.f32.mrf.mxu0
    %v905 = vadd.f32 0.0, %v904
    %906 = vdwg.mxu0
    %v908 = vsel %vm667, %v805, 0
    %910 = vmatpush.msra.mxu0 0.0
    %911 = vmatpush.msra.mxu0 0.0
    %912 = vmatpush.msra.mxu0 0.0
    %913 = vmatpush.msra.mxu0 0.0
    %914 = vmatpush.msra.mxu0 0.0
    %915 = vmatpush.msra.mxu0 0.0
    %916 = vmatpush.msra.mxu0 0.0
    %917 = vmatpush.msra.mxu0 0.0
    %918 = vmatpush.msra.mxu0 0.0
    %919 = vmatpush.msra.mxu0 0.0
    %920 = vmatpush.msra.mxu0 0.0
    %921 = vmatpush.msra.mxu0 0.0
    %922 = vmatpush.msra.mxu0 0.0
    %923 = vmatpush.msra.mxu0 0.0
    %924 = vmatpush.msra.mxu0 0.0
    %925 = vmatpush.msra.mxu0 %v625
    %926 = vmatmul.f32.gmra.mxu0 %v908
    %v927 = vpop.f32.mrf.mxu0
    %v928 = vadd.f32 0.0, %v927
    %929 = vdwg.mxu0
    %v931 = vsel %vm667, %v806, 0
    %933 = vmatpush.msra.mxu0 0.0
    %934 = vmatpush.msra.mxu0 0.0
    %935 = vmatpush.msra.mxu0 0.0
    %936 = vmatpush.msra.mxu0 0.0
    %937 = vmatpush.msra.mxu0 0.0
    %938 = vmatpush.msra.mxu0 0.0
    %939 = vmatpush.msra.mxu0 0.0
    %940 = vmatpush.msra.mxu0 0.0
    %941 = vmatpush.msra.mxu0 0.0
    %942 = vmatpush.msra.mxu0 0.0
    %943 = vmatpush.msra.mxu0 0.0
    %944 = vmatpush.msra.mxu0 0.0
    %945 = vmatpush.msra.mxu0 0.0
    %946 = vmatpush.msra.mxu0 0.0
    %947 = vmatpush.msra.mxu0 0.0
    %948 = vmatpush.msra.mxu0 %v645
    %949 = vmatmul.f32.gmra.mxu0 %v931
    %v950 = vpop.f32.mrf.mxu0
    %v951 = vadd.f32 0.0, %v950
    %952 = vdwg.mxu0
    %v954 = vsel %vm667, %v807, 0
    %956 = vmatpush.msra.mxu0 0.0
    %957 = vmatpush.msra.mxu0 0.0
    %958 = vmatpush.msra.mxu0 0.0
    %959 = vmatpush.msra.mxu0 0.0
    %960 = vmatpush.msra.mxu0 0.0
    %961 = vmatpush.msra.mxu0 0.0
    %962 = vmatpush.msra.mxu0 0.0
    %963 = vmatpush.msra.mxu0 0.0
    %964 = vmatpush.msra.mxu0 0.0
    %965 = vmatpush.msra.mxu0 0.0
    %966 = vmatpush.msra.mxu0 0.0
    %967 = vmatpush.msra.mxu0 0.0
    %968 = vmatpush.msra.mxu0 0.0
    %969 = vmatpush.msra.mxu0 0.0
    %970 = vmatpush.msra.mxu0 0.0
    %971 = vmatpush.msra.mxu0 %v665
    %972 = vmatmul.f32.gmra.mxu0 %v954
    %v973 = vpop.f32.mrf.mxu0
    %v974 = vadd.f32 0.0, %v973
    %975 = vdwg.mxu0
    %v976 = vmul.f32 %v905, %v838
    %v977 = vmul.f32 %v928, %v853
    %v978 = vmul.f32 %v951, %v868
    %v979 = vmul.f32 %v974, %v883
    %s980 = scalar_lea.vmem %s5, 640
    %v981 = vld [vmem:[%s980] sm:$0xff]
    %v982 = vld [vmem:[%s980 + $0x8] sm:$0xff]
    %v983 = vld [vmem:[%s980 + $0x10] sm:$0xff]
    %v984 = vld [vmem:[%s980 + $0x18] sm:$0xff]
    %v985 = vld [vmem:[%s980 + $0x20] sm:$0xff]
    %v986 = vld [vmem:[%s980 + $0x28] sm:$0xff]
    %v987 = vld [vmem:[%s980 + $0x30] sm:$0xff]
    %v988 = vld [vmem:[%s980 + $0x38] sm:$0xff]
    %v989 = vld [vmem:[%s980 + $0x40] sm:$0xff]
    %v990 = vld [vmem:[%s980 + $0x48] sm:$0xff]
    %v991 = vld [vmem:[%s980 + $0x50] sm:$0xff]
    %v992 = vld [vmem:[%s980 + $0x58] sm:$0xff]
    %v993 = vld [vmem:[%s980 + $0x60] sm:$0xff]
    %v994 = vld [vmem:[%s980 + $0x68] sm:$0xff]
    %v995 = vld [vmem:[%s980 + $0x70] sm:$0xff]
    %v996 = vld [vmem:[%s980 + $0x78] sm:$0xff]
    %s997 = scalar_lea.vmem %s6, 20
    %v998 = vld [vmem:[%s997] sm:$0x1]
    %v999 = vld [vmem:[%s997 + $0x1] sm:$0x1]
    %v1000 = vld [vmem:[%s997 + $0x2] sm:$0x1]
    %v1001 = vld [vmem:[%s997 + $0x3] sm:$0x1]
    %v1006 = vperm.slane %v998, 0
    %v1007 = vperm.slane %v999, 0
    %v1008 = vperm.slane %v1000, 0
    %v1009 = vperm.slane %v1001, 0
    %1014 = vmatpush.msra.mxu0 0.0
    %1015 = vmatpush.msra.mxu0 0.0
    %1016 = vmatpush.msra.mxu0 0.0
    %1017 = vmatpush.msra.mxu0 0.0
    %1018 = vmatpush.msra.mxu0 0.0
    %1019 = vmatpush.msra.mxu0 0.0
    %1020 = vmatpush.msra.mxu0 0.0
    %1021 = vmatpush.msra.mxu0 0.0
    %1022 = vmatpush.msra.mxu0 0.0
    %1023 = vmatpush.msra.mxu0 0.0
    %1024 = vmatpush.msra.mxu0 0.0
    %1025 = vmatpush.msra.mxu0 0.0
    %1026 = vmatpush.msra.mxu0 %v984
    %1027 = vmatpush.msra.mxu0 %v983
    %1028 = vmatpush.msra.mxu0 %v982
    %1029 = vmatpush.msra.mxu0 %v981
    %1030 = vmatmul.f32.gmra.mxu0 %v357
    %v1031 = vpop.f32.mrf.mxu0
    %v1032 = vadd.f32 %v1006, %v1031
    %1033 = vdwg.mxu0
    %1034 = vmatpush.msra.mxu0 0.0
    %1035 = vmatpush.msra.mxu0 0.0
    %1036 = vmatpush.msra.mxu0 0.0
    %1037 = vmatpush.msra.mxu0 0.0
    %1038 = vmatpush.msra.mxu0 0.0
    %1039 = vmatpush.msra.mxu0 0.0
    %1040 = vmatpush.msra.mxu0 0.0
    %1041 = vmatpush.msra.mxu0 0.0
    %1042 = vmatpush.msra.mxu0 0.0
    %1043 = vmatpush.msra.mxu0 0.0
    %1044 = vmatpush.msra.mxu0 0.0
    %1045 = vmatpush.msra.mxu0 0.0
    %1046 = vmatpush.msra.mxu0 %v988
    %1047 = vmatpush.msra.mxu0 %v987
    %1048 = vmatpush.msra.mxu0 %v986
    %1049 = vmatpush.msra.mxu0 %v985
    %1050 = vmatmul.f32.gmra.mxu0 %v357
    %v1051 = vpop.f32.mrf.mxu0
    %v1052 = vadd.f32 %v1007, %v1051
    %1053 = vdwg.mxu0
    %1054 = vmatpush.msra.mxu0 0.0
    %1055 = vmatpush.msra.mxu0 0.0
    %1056 = vmatpush.msra.mxu0 0.0
    %1057 = vmatpush.msra.mxu0 0.0
    %1058 = vmatpush.msra.mxu0 0.0
    %1059 = vmatpush.msra.mxu0 0.0
    %1060 = vmatpush.msra.mxu0 0.0
    %1061 = vmatpush.msra.mxu0 0.0
    %1062 = vmatpush.msra.mxu0 0.0
    %1063 = vmatpush.msra.mxu0 0.0
    %1064 = vmatpush.msra.mxu0 0.0
    %1065 = vmatpush.msra.mxu0 0.0
    %1066 = vmatpush.msra.mxu0 %v992
    %1067 = vmatpush.msra.mxu0 %v991
    %1068 = vmatpush.msra.mxu0 %v990
    %1069 = vmatpush.msra.mxu0 %v989
    %1070 = vmatmul.f32.gmra.mxu0 %v357
    %v1071 = vpop.f32.mrf.mxu0
    %v1072 = vadd.f32 %v1008, %v1071
    %1073 = vdwg.mxu0
    %1074 = vmatpush.msra.mxu0 0.0
    %1075 = vmatpush.msra.mxu0 0.0
    %1076 = vmatpush.msra.mxu0 0.0
    %1077 = vmatpush.msra.mxu0 0.0
    %1078 = vmatpush.msra.mxu0 0.0
    %1079 = vmatpush.msra.mxu0 0.0
    %1080 = vmatpush.msra.mxu0 0.0
    %1081 = vmatpush.msra.mxu0 0.0
    %1082 = vmatpush.msra.mxu0 0.0
    %1083 = vmatpush.msra.mxu0 0.0
    %1084 = vmatpush.msra.mxu0 0.0
    %1085 = vmatpush.msra.mxu0 0.0
    %1086 = vmatpush.msra.mxu0 %v996
    %1087 = vmatpush.msra.mxu0 %v995
    %1088 = vmatpush.msra.mxu0 %v994
    %1089 = vmatpush.msra.mxu0 %v993
    %1090 = vmatmul.f32.gmra.mxu0 %v357
    %v1091 = vpop.f32.mrf.mxu0
    %v1092 = vadd.f32 %v1009, %v1091
    %1093 = vdwg.mxu0
    %s1094 = scalar_lea.vmem %s5, 1408
    %v1095 = vld [vmem:[%s1094] sm:$0xff]
    %v1096 = vld [vmem:[%s1094 + $0x8] sm:$0xff]
    %v1097 = vld [vmem:[%s1094 + $0x10] sm:$0xff]
    %v1098 = vld [vmem:[%s1094 + $0x18] sm:$0xff]
    %v1099 = vld [vmem:[%s1094 + $0x20] sm:$0xff]
    %v1100 = vld [vmem:[%s1094 + $0x28] sm:$0xff]
    %v1101 = vld [vmem:[%s1094 + $0x30] sm:$0xff]
    %v1102 = vld [vmem:[%s1094 + $0x38] sm:$0xff]
    %v1103 = vld [vmem:[%s1094 + $0x40] sm:$0xff]
    %v1104 = vld [vmem:[%s1094 + $0x48] sm:$0xff]
    %v1105 = vld [vmem:[%s1094 + $0x50] sm:$0xff]
    %v1106 = vld [vmem:[%s1094 + $0x58] sm:$0xff]
    %v1107 = vld [vmem:[%s1094 + $0x60] sm:$0xff]
    %v1108 = vld [vmem:[%s1094 + $0x68] sm:$0xff]
    %v1109 = vld [vmem:[%s1094 + $0x70] sm:$0xff]
    %v1110 = vld [vmem:[%s1094 + $0x78] sm:$0xff]
    %s1111 = scalar_lea.vmem %s6, 44
    %v1112 = vld [vmem:[%s1111] sm:$0x1]
    %v1113 = vld [vmem:[%s1111 + $0x1] sm:$0x1]
    %v1114 = vld [vmem:[%s1111 + $0x2] sm:$0x1]
    %v1115 = vld [vmem:[%s1111 + $0x3] sm:$0x1]
    %v1120 = vperm.slane %v1112, 0
    %v1121 = vperm.slane %v1113, 0
    %v1122 = vperm.slane %v1114, 0
    %v1123 = vperm.slane %v1115, 0
    %1128 = vmatpush.msra.mxu0 0.0
    %1129 = vmatpush.msra.mxu0 0.0
    %1130 = vmatpush.msra.mxu0 0.0
    %1131 = vmatpush.msra.mxu0 0.0
    %1132 = vmatpush.msra.mxu0 0.0
    %1133 = vmatpush.msra.mxu0 0.0
    %1134 = vmatpush.msra.mxu0 0.0
    %1135 = vmatpush.msra.mxu0 0.0
    %1136 = vmatpush.msra.mxu0 0.0
    %1137 = vmatpush.msra.mxu0 0.0
    %1138 = vmatpush.msra.mxu0 0.0
    %1139 = vmatpush.msra.mxu0 0.0
    %1140 = vmatpush.msra.mxu0 %v1098
    %1141 = vmatpush.msra.mxu0 %v1097
    %1142 = vmatpush.msra.mxu0 %v1096
    %1143 = vmatpush.msra.mxu0 %v1095
    %1144 = vmatmul.f32.gmra.mxu0 %v357
    %v1145 = vpop.f32.mrf.mxu0
    %v1146 = vadd.f32 %v1120, %v1145
    %1147 = vdwg.mxu0
    %1148 = vmatpush.msra.mxu0 0.0
    %1149 = vmatpush.msra.mxu0 0.0
    %1150 = vmatpush.msra.mxu0 0.0
    %1151 = vmatpush.msra.mxu0 0.0
    %1152 = vmatpush.msra.mxu0 0.0
    %1153 = vmatpush.msra.mxu0 0.0
    %1154 = vmatpush.msra.mxu0 0.0
    %1155 = vmatpush.msra.mxu0 0.0
    %1156 = vmatpush.msra.mxu0 0.0
    %1157 = vmatpush.msra.mxu0 0.0
    %1158 = vmatpush.msra.mxu0 0.0
    %1159 = vmatpush.msra.mxu0 0.0
    %1160 = vmatpush.msra.mxu0 %v1102
    %1161 = vmatpush.msra.mxu0 %v1101
    %1162 = vmatpush.msra.mxu0 %v1100
    %1163 = vmatpush.msra.mxu0 %v1099
    %1164 = vmatmul.f32.gmra.mxu0 %v357
    %v1165 = vpop.f32.mrf.mxu0
    %v1166 = vadd.f32 %v1121, %v1165
    %1167 = vdwg.mxu0
    %1168 = vmatpush.msra.mxu0 0.0
    %1169 = vmatpush.msra.mxu0 0.0
    %1170 = vmatpush.msra.mxu0 0.0
    %1171 = vmatpush.msra.mxu0 0.0
    %1172 = vmatpush.msra.mxu0 0.0
    %1173 = vmatpush.msra.mxu0 0.0
    %1174 = vmatpush.msra.mxu0 0.0
    %1175 = vmatpush.msra.mxu0 0.0
    %1176 = vmatpush.msra.mxu0 0.0
    %1177 = vmatpush.msra.mxu0 0.0
    %1178 = vmatpush.msra.mxu0 0.0
    %1179 = vmatpush.msra.mxu0 0.0
    %1180 = vmatpush.msra.mxu0 %v1106
    %1181 = vmatpush.msra.mxu0 %v1105
    %1182 = vmatpush.msra.mxu0 %v1104
    %1183 = vmatpush.msra.mxu0 %v1103
    %1184 = vmatmul.f32.gmra.mxu0 %v357
    %v1185 = vpop.f32.mrf.mxu0
    %v1186 = vadd.f32 %v1122, %v1185
    %1187 = vdwg.mxu0
    %1188 = vmatpush.msra.mxu0 0.0
    %1189 = vmatpush.msra.mxu0 0.0
    %1190 = vmatpush.msra.mxu0 0.0
    %1191 = vmatpush.msra.mxu0 0.0
    %1192 = vmatpush.msra.mxu0 0.0
    %1193 = vmatpush.msra.mxu0 0.0
    %1194 = vmatpush.msra.mxu0 0.0
    %1195 = vmatpush.msra.mxu0 0.0
    %1196 = vmatpush.msra.mxu0 0.0
    %1197 = vmatpush.msra.mxu0 0.0
    %1198 = vmatpush.msra.mxu0 0.0
    %1199 = vmatpush.msra.mxu0 0.0
    %1200 = vmatpush.msra.mxu0 %v1110
    %1201 = vmatpush.msra.mxu0 %v1109
    %1202 = vmatpush.msra.mxu0 %v1108
    %1203 = vmatpush.msra.mxu0 %v1107
    %1204 = vmatmul.f32.gmra.mxu0 %v357
    %v1205 = vpop.f32.mrf.mxu0
    %v1206 = vadd.f32 %v1123, %v1205
    %1207 = vdwg.mxu0
    %v1209 = vsel %vm667, %v260, 0
    %v1212 = vsel %vm667, %v1032, 0
    %1214 = vmatpush.xpose.msra.mxu0 0.0
    %1215 = vmatpush.xpose.msra.mxu0 0.0
    %1216 = vmatpush.xpose.msra.mxu0 0.0
    %1217 = vmatpush.xpose.msra.mxu0 0.0
    %1218 = vmatpush.xpose.msra.mxu0 0.0
    %1219 = vmatpush.xpose.msra.mxu0 0.0
    %1220 = vmatpush.xpose.msra.mxu0 0.0
    %1221 = vmatpush.xpose.msra.mxu0 0.0
    %1222 = vmatpush.xpose.msra.mxu0 0.0
    %1223 = vmatpush.xpose.msra.mxu0 0.0
    %1224 = vmatpush.xpose.msra.mxu0 0.0
    %1225 = vmatpush.xpose.msra.mxu0 0.0
    %1226 = vmatpush.xpose.msra.mxu0 0.0
    %1227 = vmatpush.xpose.msra.mxu0 0.0
    %1228 = vmatpush.xpose.msra.mxu0 0.0
    %1229 = vmatpush.xpose.msra.mxu0 %v1212
    %1230 = vmatmul.f32.gmra.mxu0 %v1209
    %v1231 = vpop.f32.mrf.mxu0
    %v1232 = vadd.f32 0.0, %v1231
    %1233 = vdwg.mxu0
    %v1235 = vsel %vm667, %v280, 0
    %v1238 = vsel %vm667, %v1052, 0
    %1240 = vmatpush.xpose.msra.mxu0 0.0
    %1241 = vmatpush.xpose.msra.mxu0 0.0
    %1242 = vmatpush.xpose.msra.mxu0 0.0
    %1243 = vmatpush.xpose.msra.mxu0 0.0
    %1244 = vmatpush.xpose.msra.mxu0 0.0
    %1245 = vmatpush.xpose.msra.mxu0 0.0
    %1246 = vmatpush.xpose.msra.mxu0 0.0
    %1247 = vmatpush.xpose.msra.mxu0 0.0
    %1248 = vmatpush.xpose.msra.mxu0 0.0
    %1249 = vmatpush.xpose.msra.mxu0 0.0
    %1250 = vmatpush.xpose.msra.mxu0 0.0
    %1251 = vmatpush.xpose.msra.mxu0 0.0
    %1252 = vmatpush.xpose.msra.mxu0 0.0
    %1253 = vmatpush.xpose.msra.mxu0 0.0
    %1254 = vmatpush.xpose.msra.mxu0 0.0
    %1255 = vmatpush.xpose.msra.mxu0 %v1238
    %1256 = vmatmul.f32.gmra.mxu0 %v1235
    %v1257 = vpop.f32.mrf.mxu0
    %v1258 = vadd.f32 0.0, %v1257
    %1259 = vdwg.mxu0
    %v1261 = vsel %vm667, %v300, 0
    %v1264 = vsel %vm667, %v1072, 0
    %1266 = vmatpush.xpose.msra.mxu0 0.0
    %1267 = vmatpush.xpose.msra.mxu0 0.0
    %1268 = vmatpush.xpose.msra.mxu0 0.0
    %1269 = vmatpush.xpose.msra.mxu0 0.0
    %1270 = vmatpush.xpose.msra.mxu0 0.0
    %1271 = vmatpush.xpose.msra.mxu0 0.0
    %1272 = vmatpush.xpose.msra.mxu0 0.0
    %1273 = vmatpush.xpose.msra.mxu0 0.0
    %1274 = vmatpush.xpose.msra.mxu0 0.0
    %1275 = vmatpush.xpose.msra.mxu0 0.0
    %1276 = vmatpush.xpose.msra.mxu0 0.0
    %1277 = vmatpush.xpose.msra.mxu0 0.0
    %1278 = vmatpush.xpose.msra.mxu0 0.0
    %1279 = vmatpush.xpose.msra.mxu0 0.0
    %1280 = vmatpush.xpose.msra.mxu0 0.0
    %1281 = vmatpush.xpose.msra.mxu0 %v1264
    %1282 = vmatmul.f32.gmra.mxu0 %v1261
    %v1283 = vpop.f32.mrf.mxu0
    %v1284 = vadd.f32 0.0, %v1283
    %1285 = vdwg.mxu0
    %v1287 = vsel %vm667, %v320, 0
    %v1290 = vsel %vm667, %v1092, 0
    %1292 = vmatpush.xpose.msra.mxu0 0.0
    %1293 = vmatpush.xpose.msra.mxu0 0.0
    %1294 = vmatpush.xpose.msra.mxu0 0.0
    %1295 = vmatpush.xpose.msra.mxu0 0.0
    %1296 = vmatpush.xpose.msra.mxu0 0.0
    %1297 = vmatpush.xpose.msra.mxu0 0.0
    %1298 = vmatpush.xpose.msra.mxu0 0.0
    %1299 = vmatpush.xpose.msra.mxu0 0.0
    %1300 = vmatpush.xpose.msra.mxu0 0.0
    %1301 = vmatpush.xpose.msra.mxu0 0.0
    %1302 = vmatpush.xpose.msra.mxu0 0.0
    %1303 = vmatpush.xpose.msra.mxu0 0.0
    %1304 = vmatpush.xpose.msra.mxu0 0.0
    %1305 = vmatpush.xpose.msra.mxu0 0.0
    %1306 = vmatpush.xpose.msra.mxu0 0.0
    %1307 = vmatpush.xpose.msra.mxu0 %v1290
    %1308 = vmatmul.f32.gmra.mxu0 %v1287
    %v1309 = vpop.f32.mrf.mxu0
    %v1310 = vadd.f32 0.0, %v1309
    %1311 = vdwg.mxu0
    %s1312 = scalar_lea.vmem %s2, 8
    %v1313 = vld [vmem:[%s1312] sm:$0xff]
    %vm1314 = vcmp.gt.f32.partialorder %v1313, 0.5
    %v1315 = vsel %vm1314, 1, 0
    %vm1316 = vcmp.eq.s32.totalorder %v1315, 1
    %v1317 = vsel %vm1316, %v1232, -1e+30
    %v1318 = vsel %vm1316, %v1258, -1e+30
    %v1319 = vsel %vm1316, %v1284, -1e+30
    %v1320 = vsel %vm1316, %v1310, -1e+30
    %v1321 = vsel %vm667, %v1317, -inf
    %1322 = vmax.xlane.f32.xlu0 %v1321
    %v1323 = vpop.xlane.xlu0 %1322
    %v1324 = vsel %vm667, %v1318, -inf
    %1325 = vmax.xlane.f32.xlu0 %v1324
    %v1326 = vpop.xlane.xlu0 %1325
    %v1327 = vsel %vm667, %v1319, -inf
    %1328 = vmax.xlane.f32.xlu0 %v1327
    %v1329 = vpop.xlane.xlu0 %1328
    %v1330 = vsel %vm667, %v1320, -inf
    %1331 = vmax.xlane.f32.xlu0 %v1330
    %v1332 = vpop.xlane.xlu0 %1331
    %v1333 = vsub.f32 %v1317, %v1323
    %v1334 = vsub.f32 %v1318, %v1326
    %v1335 = vsub.f32 %v1319, %v1329
    %v1336 = vsub.f32 %v1320, %v1332
    %v1337 = vmul.f32 %v1333, 1.442695
    %v1338 = vpow.pop %v1337
    %v1339 = vmul.f32 %v1334, 1.442695
    %v1340 = vpow.pop %v1339
    %v1341 = vmul.f32 %v1335, 1.442695
    %v1342 = vpow.pop %v1341
    %v1343 = vmul.f32 %v1336, 1.442695
    %v1344 = vpow.pop %v1343
    %v1345 = vmul.f32 %v1338, %v1313
    %v1346 = vmul.f32 %v1340, %v1313
    %v1347 = vmul.f32 %v1342, %v1313
    %v1348 = vmul.f32 %v1344, %v1313
    %v1349 = vsel %vm667, %v1345, 0.0
    %1350 = vadd.xlane.f32.xlu0 %v1349
    %v1351 = vpop.xlane.xlu0 %1350
    %v1352 = vsel %vm667, %v1346, 0.0
    %1353 = vadd.xlane.f32.xlu0 %v1352
    %v1354 = vpop.xlane.xlu0 %1353
    %v1355 = vsel %vm667, %v1347, 0.0
    %1356 = vadd.xlane.f32.xlu0 %v1355
    %v1357 = vpop.xlane.xlu0 %1356
    %v1358 = vsel %vm667, %v1348, 0.0
    %1359 = vadd.xlane.f32.xlu0 %v1358
    %v1360 = vpop.xlane.xlu0 %1359
    %v1361 = vmax.f32 %v1351, 1e-30
    %v1362 = vmax.f32 %v1354, 1e-30
    %v1363 = vmax.f32 %v1357, 1e-30
    %v1364 = vmax.f32 %v1360, 1e-30
    %v1365 = vrcp.pop %v1361
    %v1366 = vmul.f32 %v1361, %v1365
    %v1367 = vsub.f32 1.0, %v1366
    %v1368 = vmul.f32 %v1365, %v1367
    %v1369 = vadd.f32 %v1365, %v1368
    %vm1370 = vweird.f32 %v1361
    %vm1371 = vweird.f32 %v1365
    %vm1372 = vmor %vm1370, %vm1371
    %v1373 = vsel %vm1372, %v1365, %v1369
    %v1374 = vand.u32 2147483647, %v1361
    %vm1375 = vcmp.eq.f32.partialorder %v1374, 8.507059e+37
    %v1376 = vand.u32 %v1361, 2147483648
    %v1377 = vor.u32 1.1754944e-38, %v1376
    %v1378 = vsel %vm1375, %v1377, %v1373
    %v1379 = vmul.f32 1.0, %v1378
    %v1380 = vrcp.pop %v1362
    %v1381 = vmul.f32 %v1362, %v1380
    %v1382 = vsub.f32 1.0, %v1381
    %v1383 = vmul.f32 %v1380, %v1382
    %v1384 = vadd.f32 %v1380, %v1383
    %vm1385 = vweird.f32 %v1362
    %vm1386 = vweird.f32 %v1380
    %vm1387 = vmor %vm1385, %vm1386
    %v1388 = vsel %vm1387, %v1380, %v1384
    %v1389 = vand.u32 2147483647, %v1362
    %vm1390 = vcmp.eq.f32.partialorder %v1389, 8.507059e+37
    %v1391 = vand.u32 %v1362, 2147483648
    %v1392 = vor.u32 1.1754944e-38, %v1391
    %v1393 = vsel %vm1390, %v1392, %v1388
    %v1394 = vmul.f32 1.0, %v1393
    %v1395 = vrcp.pop %v1363
    %v1396 = vmul.f32 %v1363, %v1395
    %v1397 = vsub.f32 1.0, %v1396
    %v1398 = vmul.f32 %v1395, %v1397
    %v1399 = vadd.f32 %v1395, %v1398
    %vm1400 = vweird.f32 %v1363
    %vm1401 = vweird.f32 %v1395
    %vm1402 = vmor %vm1400, %vm1401
    %v1403 = vsel %vm1402, %v1395, %v1399
    %v1404 = vand.u32 2147483647, %v1363
    %vm1405 = vcmp.eq.f32.partialorder %v1404, 8.507059e+37
    %v1406 = vand.u32 %v1363, 2147483648
    %v1407 = vor.u32 1.1754944e-38, %v1406
    %v1408 = vsel %vm1405, %v1407, %v1403
    %v1409 = vmul.f32 1.0, %v1408
    %v1410 = vrcp.pop %v1364
    %v1411 = vmul.f32 %v1364, %v1410
    %v1412 = vsub.f32 1.0, %v1411
    %v1413 = vmul.f32 %v1410, %v1412
    %v1414 = vadd.f32 %v1410, %v1413
    %vm1415 = vweird.f32 %v1364
    %vm1416 = vweird.f32 %v1410
    %vm1417 = vmor %vm1415, %vm1416
    %v1418 = vsel %vm1417, %v1410, %v1414
    %v1419 = vand.u32 2147483647, %v1364
    %vm1420 = vcmp.eq.f32.partialorder %v1419, 8.507059e+37
    %v1421 = vand.u32 %v1364, 2147483648
    %v1422 = vor.u32 1.1754944e-38, %v1421
    %v1423 = vsel %vm1420, %v1422, %v1418
    %v1424 = vmul.f32 1.0, %v1423
    %v1426 = vsel %vm667, %v1345, 0
    %1428 = vmatpush.msra.mxu0 0.0
    %1429 = vmatpush.msra.mxu0 0.0
    %1430 = vmatpush.msra.mxu0 0.0
    %1431 = vmatpush.msra.mxu0 0.0
    %1432 = vmatpush.msra.mxu0 0.0
    %1433 = vmatpush.msra.mxu0 0.0
    %1434 = vmatpush.msra.mxu0 0.0
    %1435 = vmatpush.msra.mxu0 0.0
    %1436 = vmatpush.msra.mxu0 0.0
    %1437 = vmatpush.msra.mxu0 0.0
    %1438 = vmatpush.msra.mxu0 0.0
    %1439 = vmatpush.msra.mxu0 0.0
    %1440 = vmatpush.msra.mxu0 0.0
    %1441 = vmatpush.msra.mxu0 0.0
    %1442 = vmatpush.msra.mxu0 0.0
    %1443 = vmatpush.msra.mxu0 %v1146
    %1444 = vmatmul.f32.gmra.mxu0 %v1426
    %v1445 = vpop.f32.mrf.mxu0
    %v1446 = vadd.f32 0.0, %v1445
    %1447 = vdwg.mxu0
    %v1449 = vsel %vm667, %v1346, 0
    %1451 = vmatpush.msra.mxu0 0.0
    %1452 = vmatpush.msra.mxu0 0.0
    %1453 = vmatpush.msra.mxu0 0.0
    %1454 = vmatpush.msra.mxu0 0.0
    %1455 = vmatpush.msra.mxu0 0.0
    %1456 = vmatpush.msra.mxu0 0.0
    %1457 = vmatpush.msra.mxu0 0.0
    %1458 = vmatpush.msra.mxu0 0.0
    %1459 = vmatpush.msra.mxu0 0.0
    %1460 = vmatpush.msra.mxu0 0.0
    %1461 = vmatpush.msra.mxu0 0.0
    %1462 = vmatpush.msra.mxu0 0.0
    %1463 = vmatpush.msra.mxu0 0.0
    %1464 = vmatpush.msra.mxu0 0.0
    %1465 = vmatpush.msra.mxu0 0.0
    %1466 = vmatpush.msra.mxu0 %v1166
    %1467 = vmatmul.f32.gmra.mxu0 %v1449
    %v1468 = vpop.f32.mrf.mxu0
    %v1469 = vadd.f32 0.0, %v1468
    %1470 = vdwg.mxu0
    %v1472 = vsel %vm667, %v1347, 0
    %1474 = vmatpush.msra.mxu0 0.0
    %1475 = vmatpush.msra.mxu0 0.0
    %1476 = vmatpush.msra.mxu0 0.0
    %1477 = vmatpush.msra.mxu0 0.0
    %1478 = vmatpush.msra.mxu0 0.0
    %1479 = vmatpush.msra.mxu0 0.0
    %1480 = vmatpush.msra.mxu0 0.0
    %1481 = vmatpush.msra.mxu0 0.0
    %1482 = vmatpush.msra.mxu0 0.0
    %1483 = vmatpush.msra.mxu0 0.0
    %1484 = vmatpush.msra.mxu0 0.0
    %1485 = vmatpush.msra.mxu0 0.0
    %1486 = vmatpush.msra.mxu0 0.0
    %1487 = vmatpush.msra.mxu0 0.0
    %1488 = vmatpush.msra.mxu0 0.0
    %1489 = vmatpush.msra.mxu0 %v1186
    %1490 = vmatmul.f32.gmra.mxu0 %v1472
    %v1491 = vpop.f32.mrf.mxu0
    %v1492 = vadd.f32 0.0, %v1491
    %1493 = vdwg.mxu0
    %v1495 = vsel %vm667, %v1348, 0
    %1497 = vmatpush.msra.mxu0 0.0
    %1498 = vmatpush.msra.mxu0 0.0
    %1499 = vmatpush.msra.mxu0 0.0
    %1500 = vmatpush.msra.mxu0 0.0
    %1501 = vmatpush.msra.mxu0 0.0
    %1502 = vmatpush.msra.mxu0 0.0
    %1503 = vmatpush.msra.mxu0 0.0
    %1504 = vmatpush.msra.mxu0 0.0
    %1505 = vmatpush.msra.mxu0 0.0
    %1506 = vmatpush.msra.mxu0 0.0
    %1507 = vmatpush.msra.mxu0 0.0
    %1508 = vmatpush.msra.mxu0 0.0
    %1509 = vmatpush.msra.mxu0 0.0
    %1510 = vmatpush.msra.mxu0 0.0
    %1511 = vmatpush.msra.mxu0 0.0
    %1512 = vmatpush.msra.mxu0 %v1206
    %1513 = vmatmul.f32.gmra.mxu0 %v1495
    %v1514 = vpop.f32.mrf.mxu0
    %v1515 = vadd.f32 0.0, %v1514
    %1516 = vdwg.mxu0
    %v1517 = vmul.f32 %v1446, %v1379
    %v1518 = vmul.f32 %v1469, %v1394
    %v1519 = vmul.f32 %v1492, %v1409
    %v1520 = vmul.f32 %v1515, %v1424
    %s1521 = scalar_lea.vmem %s5, 768
    %v1522 = vld [vmem:[%s1521] sm:$0xff]
    %v1523 = vld [vmem:[%s1521 + $0x8] sm:$0xff]
    %v1524 = vld [vmem:[%s1521 + $0x10] sm:$0xff]
    %v1525 = vld [vmem:[%s1521 + $0x18] sm:$0xff]
    %v1526 = vld [vmem:[%s1521 + $0x20] sm:$0xff]
    %v1527 = vld [vmem:[%s1521 + $0x28] sm:$0xff]
    %v1528 = vld [vmem:[%s1521 + $0x30] sm:$0xff]
    %v1529 = vld [vmem:[%s1521 + $0x38] sm:$0xff]
    %v1530 = vld [vmem:[%s1521 + $0x40] sm:$0xff]
    %v1531 = vld [vmem:[%s1521 + $0x48] sm:$0xff]
    %v1532 = vld [vmem:[%s1521 + $0x50] sm:$0xff]
    %v1533 = vld [vmem:[%s1521 + $0x58] sm:$0xff]
    %v1534 = vld [vmem:[%s1521 + $0x60] sm:$0xff]
    %v1535 = vld [vmem:[%s1521 + $0x68] sm:$0xff]
    %v1536 = vld [vmem:[%s1521 + $0x70] sm:$0xff]
    %v1537 = vld [vmem:[%s1521 + $0x78] sm:$0xff]
    %s1538 = scalar_lea.vmem %s6, 24
    %v1539 = vld [vmem:[%s1538] sm:$0x1]
    %v1540 = vld [vmem:[%s1538 + $0x1] sm:$0x1]
    %v1541 = vld [vmem:[%s1538 + $0x2] sm:$0x1]
    %v1542 = vld [vmem:[%s1538 + $0x3] sm:$0x1]
    %v1547 = vperm.slane %v1539, 0
    %v1548 = vperm.slane %v1540, 0
    %v1549 = vperm.slane %v1541, 0
    %v1550 = vperm.slane %v1542, 0
    %1555 = vmatpush.msra.mxu0 0.0
    %1556 = vmatpush.msra.mxu0 0.0
    %1557 = vmatpush.msra.mxu0 0.0
    %1558 = vmatpush.msra.mxu0 0.0
    %1559 = vmatpush.msra.mxu0 0.0
    %1560 = vmatpush.msra.mxu0 0.0
    %1561 = vmatpush.msra.mxu0 0.0
    %1562 = vmatpush.msra.mxu0 0.0
    %1563 = vmatpush.msra.mxu0 0.0
    %1564 = vmatpush.msra.mxu0 0.0
    %1565 = vmatpush.msra.mxu0 0.0
    %1566 = vmatpush.msra.mxu0 0.0
    %1567 = vmatpush.msra.mxu0 %v1525
    %1568 = vmatpush.msra.mxu0 %v1524
    %1569 = vmatpush.msra.mxu0 %v1523
    %1570 = vmatpush.msra.mxu0 %v1522
    %1571 = vmatmul.f32.gmra.mxu0 %v240
    %v1572 = vpop.f32.mrf.mxu0
    %v1573 = vadd.f32 %v1547, %v1572
    %1574 = vdwg.mxu0
    %1575 = vmatpush.msra.mxu0 0.0
    %1576 = vmatpush.msra.mxu0 0.0
    %1577 = vmatpush.msra.mxu0 0.0
    %1578 = vmatpush.msra.mxu0 0.0
    %1579 = vmatpush.msra.mxu0 0.0
    %1580 = vmatpush.msra.mxu0 0.0
    %1581 = vmatpush.msra.mxu0 0.0
    %1582 = vmatpush.msra.mxu0 0.0
    %1583 = vmatpush.msra.mxu0 0.0
    %1584 = vmatpush.msra.mxu0 0.0
    %1585 = vmatpush.msra.mxu0 0.0
    %1586 = vmatpush.msra.mxu0 0.0
    %1587 = vmatpush.msra.mxu0 %v1529
    %1588 = vmatpush.msra.mxu0 %v1528
    %1589 = vmatpush.msra.mxu0 %v1527
    %1590 = vmatpush.msra.mxu0 %v1526
    %1591 = vmatmul.f32.gmra.mxu0 %v240
    %v1592 = vpop.f32.mrf.mxu0
    %v1593 = vadd.f32 %v1548, %v1592
    %1594 = vdwg.mxu0
    %1595 = vmatpush.msra.mxu0 0.0
    %1596 = vmatpush.msra.mxu0 0.0
    %1597 = vmatpush.msra.mxu0 0.0
    %1598 = vmatpush.msra.mxu0 0.0
    %1599 = vmatpush.msra.mxu0 0.0
    %1600 = vmatpush.msra.mxu0 0.0
    %1601 = vmatpush.msra.mxu0 0.0
    %1602 = vmatpush.msra.mxu0 0.0
    %1603 = vmatpush.msra.mxu0 0.0
    %1604 = vmatpush.msra.mxu0 0.0
    %1605 = vmatpush.msra.mxu0 0.0
    %1606 = vmatpush.msra.mxu0 0.0
    %1607 = vmatpush.msra.mxu0 %v1533
    %1608 = vmatpush.msra.mxu0 %v1532
    %1609 = vmatpush.msra.mxu0 %v1531
    %1610 = vmatpush.msra.mxu0 %v1530
    %1611 = vmatmul.f32.gmra.mxu0 %v240
    %v1612 = vpop.f32.mrf.mxu0
    %v1613 = vadd.f32 %v1549, %v1612
    %1614 = vdwg.mxu0
    %1615 = vmatpush.msra.mxu0 0.0
    %1616 = vmatpush.msra.mxu0 0.0
    %1617 = vmatpush.msra.mxu0 0.0
    %1618 = vmatpush.msra.mxu0 0.0
    %1619 = vmatpush.msra.mxu0 0.0
    %1620 = vmatpush.msra.mxu0 0.0
    %1621 = vmatpush.msra.mxu0 0.0
    %1622 = vmatpush.msra.mxu0 0.0
    %1623 = vmatpush.msra.mxu0 0.0
    %1624 = vmatpush.msra.mxu0 0.0
    %1625 = vmatpush.msra.mxu0 0.0
    %1626 = vmatpush.msra.mxu0 0.0
    %1627 = vmatpush.msra.mxu0 %v1537
    %1628 = vmatpush.msra.mxu0 %v1536
    %1629 = vmatpush.msra.mxu0 %v1535
    %1630 = vmatpush.msra.mxu0 %v1534
    %1631 = vmatmul.f32.gmra.mxu0 %v240
    %v1632 = vpop.f32.mrf.mxu0
    %v1633 = vadd.f32 %v1550, %v1632
    %1634 = vdwg.mxu0
    %s1635 = scalar_lea.vmem %s5, 1536
    %v1636 = vld [vmem:[%s1635] sm:$0xff]
    %v1637 = vld [vmem:[%s1635 + $0x8] sm:$0xff]
    %v1638 = vld [vmem:[%s1635 + $0x10] sm:$0xff]
    %v1639 = vld [vmem:[%s1635 + $0x18] sm:$0xff]
    %v1640 = vld [vmem:[%s1635 + $0x20] sm:$0xff]
    %v1641 = vld [vmem:[%s1635 + $0x28] sm:$0xff]
    %v1642 = vld [vmem:[%s1635 + $0x30] sm:$0xff]
    %v1643 = vld [vmem:[%s1635 + $0x38] sm:$0xff]
    %v1644 = vld [vmem:[%s1635 + $0x40] sm:$0xff]
    %v1645 = vld [vmem:[%s1635 + $0x48] sm:$0xff]
    %v1646 = vld [vmem:[%s1635 + $0x50] sm:$0xff]
    %v1647 = vld [vmem:[%s1635 + $0x58] sm:$0xff]
    %v1648 = vld [vmem:[%s1635 + $0x60] sm:$0xff]
    %v1649 = vld [vmem:[%s1635 + $0x68] sm:$0xff]
    %v1650 = vld [vmem:[%s1635 + $0x70] sm:$0xff]
    %v1651 = vld [vmem:[%s1635 + $0x78] sm:$0xff]
    %s1652 = scalar_lea.vmem %s6, 48
    %v1653 = vld [vmem:[%s1652] sm:$0x1]
    %v1654 = vld [vmem:[%s1652 + $0x1] sm:$0x1]
    %v1655 = vld [vmem:[%s1652 + $0x2] sm:$0x1]
    %v1656 = vld [vmem:[%s1652 + $0x3] sm:$0x1]
    %v1661 = vperm.slane %v1653, 0
    %v1662 = vperm.slane %v1654, 0
    %v1663 = vperm.slane %v1655, 0
    %v1664 = vperm.slane %v1656, 0
    %1669 = vmatpush.msra.mxu0 0.0
    %1670 = vmatpush.msra.mxu0 0.0
    %1671 = vmatpush.msra.mxu0 0.0
    %1672 = vmatpush.msra.mxu0 0.0
    %1673 = vmatpush.msra.mxu0 0.0
    %1674 = vmatpush.msra.mxu0 0.0
    %1675 = vmatpush.msra.mxu0 0.0
    %1676 = vmatpush.msra.mxu0 0.0
    %1677 = vmatpush.msra.mxu0 0.0
    %1678 = vmatpush.msra.mxu0 0.0
    %1679 = vmatpush.msra.mxu0 0.0
    %1680 = vmatpush.msra.mxu0 0.0
    %1681 = vmatpush.msra.mxu0 %v1639
    %1682 = vmatpush.msra.mxu0 %v1638
    %1683 = vmatpush.msra.mxu0 %v1637
    %1684 = vmatpush.msra.mxu0 %v1636
    %1685 = vmatmul.f32.gmra.mxu0 %v240
    %v1686 = vpop.f32.mrf.mxu0
    %v1687 = vadd.f32 %v1661, %v1686
    %1688 = vdwg.mxu0
    %1689 = vmatpush.msra.mxu0 0.0
    %1690 = vmatpush.msra.mxu0 0.0
    %1691 = vmatpush.msra.mxu0 0.0
    %1692 = vmatpush.msra.mxu0 0.0
    %1693 = vmatpush.msra.mxu0 0.0
    %1694 = vmatpush.msra.mxu0 0.0
    %1695 = vmatpush.msra.mxu0 0.0
    %1696 = vmatpush.msra.mxu0 0.0
    %1697 = vmatpush.msra.mxu0 0.0
    %1698 = vmatpush.msra.mxu0 0.0
    %1699 = vmatpush.msra.mxu0 0.0
    %1700 = vmatpush.msra.mxu0 0.0
    %1701 = vmatpush.msra.mxu0 %v1643
    %1702 = vmatpush.msra.mxu0 %v1642
    %1703 = vmatpush.msra.mxu0 %v1641
    %1704 = vmatpush.msra.mxu0 %v1640
    %1705 = vmatmul.f32.gmra.mxu0 %v240
    %v1706 = vpop.f32.mrf.mxu0
    %v1707 = vadd.f32 %v1662, %v1706
    %1708 = vdwg.mxu0
    %1709 = vmatpush.msra.mxu0 0.0
    %1710 = vmatpush.msra.mxu0 0.0
    %1711 = vmatpush.msra.mxu0 0.0
    %1712 = vmatpush.msra.mxu0 0.0
    %1713 = vmatpush.msra.mxu0 0.0
    %1714 = vmatpush.msra.mxu0 0.0
    %1715 = vmatpush.msra.mxu0 0.0
    %1716 = vmatpush.msra.mxu0 0.0
    %1717 = vmatpush.msra.mxu0 0.0
    %1718 = vmatpush.msra.mxu0 0.0
    %1719 = vmatpush.msra.mxu0 0.0
    %1720 = vmatpush.msra.mxu0 0.0
    %1721 = vmatpush.msra.mxu0 %v1647
    %1722 = vmatpush.msra.mxu0 %v1646
    %1723 = vmatpush.msra.mxu0 %v1645
    %1724 = vmatpush.msra.mxu0 %v1644
    %1725 = vmatmul.f32.gmra.mxu0 %v240
    %v1726 = vpop.f32.mrf.mxu0
    %v1727 = vadd.f32 %v1663, %v1726
    %1728 = vdwg.mxu0
    %1729 = vmatpush.msra.mxu0 0.0
    %1730 = vmatpush.msra.mxu0 0.0
    %1731 = vmatpush.msra.mxu0 0.0
    %1732 = vmatpush.msra.mxu0 0.0
    %1733 = vmatpush.msra.mxu0 0.0
    %1734 = vmatpush.msra.mxu0 0.0
    %1735 = vmatpush.msra.mxu0 0.0
    %1736 = vmatpush.msra.mxu0 0.0
    %1737 = vmatpush.msra.mxu0 0.0
    %1738 = vmatpush.msra.mxu0 0.0
    %1739 = vmatpush.msra.mxu0 0.0
    %1740 = vmatpush.msra.mxu0 0.0
    %1741 = vmatpush.msra.mxu0 %v1651
    %1742 = vmatpush.msra.mxu0 %v1650
    %1743 = vmatpush.msra.mxu0 %v1649
    %1744 = vmatpush.msra.mxu0 %v1648
    %1745 = vmatmul.f32.gmra.mxu0 %v240
    %v1746 = vpop.f32.mrf.mxu0
    %v1747 = vadd.f32 %v1664, %v1746
    %1748 = vdwg.mxu0
    %v1750 = vsel %vm667, %v1573, 0
    %1752 = vmatpush.xpose.msra.mxu0 0.0
    %1753 = vmatpush.xpose.msra.mxu0 0.0
    %1754 = vmatpush.xpose.msra.mxu0 0.0
    %1755 = vmatpush.xpose.msra.mxu0 0.0
    %1756 = vmatpush.xpose.msra.mxu0 0.0
    %1757 = vmatpush.xpose.msra.mxu0 0.0
    %1758 = vmatpush.xpose.msra.mxu0 0.0
    %1759 = vmatpush.xpose.msra.mxu0 0.0
    %1760 = vmatpush.xpose.msra.mxu0 0.0
    %1761 = vmatpush.xpose.msra.mxu0 0.0
    %1762 = vmatpush.xpose.msra.mxu0 0.0
    %1763 = vmatpush.xpose.msra.mxu0 0.0
    %1764 = vmatpush.xpose.msra.mxu0 0.0
    %1765 = vmatpush.xpose.msra.mxu0 0.0
    %1766 = vmatpush.xpose.msra.mxu0 0.0
    %1767 = vmatpush.xpose.msra.mxu0 %v1750
    %1768 = vmatmul.f32.gmra.mxu0 %v1209
    %v1769 = vpop.f32.mrf.mxu0
    %v1770 = vadd.f32 0.0, %v1769
    %1771 = vdwg.mxu0
    %v1773 = vsel %vm667, %v1593, 0
    %1775 = vmatpush.xpose.msra.mxu0 0.0
    %1776 = vmatpush.xpose.msra.mxu0 0.0
    %1777 = vmatpush.xpose.msra.mxu0 0.0
    %1778 = vmatpush.xpose.msra.mxu0 0.0
    %1779 = vmatpush.xpose.msra.mxu0 0.0
    %1780 = vmatpush.xpose.msra.mxu0 0.0
    %1781 = vmatpush.xpose.msra.mxu0 0.0
    %1782 = vmatpush.xpose.msra.mxu0 0.0
    %1783 = vmatpush.xpose.msra.mxu0 0.0
    %1784 = vmatpush.xpose.msra.mxu0 0.0
    %1785 = vmatpush.xpose.msra.mxu0 0.0
    %1786 = vmatpush.xpose.msra.mxu0 0.0
    %1787 = vmatpush.xpose.msra.mxu0 0.0
    %1788 = vmatpush.xpose.msra.mxu0 0.0
    %1789 = vmatpush.xpose.msra.mxu0 0.0
    %1790 = vmatpush.xpose.msra.mxu0 %v1773
    %1791 = vmatmul.f32.gmra.mxu0 %v1235
    %v1792 = vpop.f32.mrf.mxu0
    %v1793 = vadd.f32 0.0, %v1792
    %1794 = vdwg.mxu0
    %v1796 = vsel %vm667, %v1613, 0
    %1798 = vmatpush.xpose.msra.mxu0 0.0
    %1799 = vmatpush.xpose.msra.mxu0 0.0
    %1800 = vmatpush.xpose.msra.mxu0 0.0
    %1801 = vmatpush.xpose.msra.mxu0 0.0
    %1802 = vmatpush.xpose.msra.mxu0 0.0
    %1803 = vmatpush.xpose.msra.mxu0 0.0
    %1804 = vmatpush.xpose.msra.mxu0 0.0
    %1805 = vmatpush.xpose.msra.mxu0 0.0
    %1806 = vmatpush.xpose.msra.mxu0 0.0
    %1807 = vmatpush.xpose.msra.mxu0 0.0
    %1808 = vmatpush.xpose.msra.mxu0 0.0
    %1809 = vmatpush.xpose.msra.mxu0 0.0
    %1810 = vmatpush.xpose.msra.mxu0 0.0
    %1811 = vmatpush.xpose.msra.mxu0 0.0
    %1812 = vmatpush.xpose.msra.mxu0 0.0
    %1813 = vmatpush.xpose.msra.mxu0 %v1796
    %1814 = vmatmul.f32.gmra.mxu0 %v1261
    %v1815 = vpop.f32.mrf.mxu0
    %v1816 = vadd.f32 0.0, %v1815
    %1817 = vdwg.mxu0
    %v1819 = vsel %vm667, %v1633, 0
    %1821 = vmatpush.xpose.msra.mxu0 0.0
    %1822 = vmatpush.xpose.msra.mxu0 0.0
    %1823 = vmatpush.xpose.msra.mxu0 0.0
    %1824 = vmatpush.xpose.msra.mxu0 0.0
    %1825 = vmatpush.xpose.msra.mxu0 0.0
    %1826 = vmatpush.xpose.msra.mxu0 0.0
    %1827 = vmatpush.xpose.msra.mxu0 0.0
    %1828 = vmatpush.xpose.msra.mxu0 0.0
    %1829 = vmatpush.xpose.msra.mxu0 0.0
    %1830 = vmatpush.xpose.msra.mxu0 0.0
    %1831 = vmatpush.xpose.msra.mxu0 0.0
    %1832 = vmatpush.xpose.msra.mxu0 0.0
    %1833 = vmatpush.xpose.msra.mxu0 0.0
    %1834 = vmatpush.xpose.msra.mxu0 0.0
    %1835 = vmatpush.xpose.msra.mxu0 0.0
    %1836 = vmatpush.xpose.msra.mxu0 %v1819
    %1837 = vmatmul.f32.gmra.mxu0 %v1287
    %v1838 = vpop.f32.mrf.mxu0
    %v1839 = vadd.f32 0.0, %v1838
    %1840 = vdwg.mxu0
    %s1841 = scalar_lea.vmem %s2, 16
    %v1842 = vld [vmem:[%s1841] sm:$0xff]
    %vm1843 = vcmp.gt.f32.partialorder %v1842, 0.5
    %v1844 = vsel %vm1843, 1, 0
    %vm1845 = vcmp.eq.s32.totalorder %v1844, 1
    %v1846 = vsel %vm1845, %v1770, -1e+30
    %v1847 = vsel %vm1845, %v1793, -1e+30
    %v1848 = vsel %vm1845, %v1816, -1e+30
    %v1849 = vsel %vm1845, %v1839, -1e+30
    %v1850 = vsel %vm667, %v1846, -inf
    %1851 = vmax.xlane.f32.xlu0 %v1850
    %v1852 = vpop.xlane.xlu0 %1851
    %v1853 = vsel %vm667, %v1847, -inf
    %1854 = vmax.xlane.f32.xlu0 %v1853
    %v1855 = vpop.xlane.xlu0 %1854
    %v1856 = vsel %vm667, %v1848, -inf
    %1857 = vmax.xlane.f32.xlu0 %v1856
    %v1858 = vpop.xlane.xlu0 %1857
    %v1859 = vsel %vm667, %v1849, -inf
    %1860 = vmax.xlane.f32.xlu0 %v1859
    %v1861 = vpop.xlane.xlu0 %1860
    %v1862 = vsub.f32 %v1846, %v1852
    %v1863 = vsub.f32 %v1847, %v1855
    %v1864 = vsub.f32 %v1848, %v1858
    %v1865 = vsub.f32 %v1849, %v1861
    %v1866 = vmul.f32 %v1862, 1.442695
    %v1867 = vpow.pop %v1866
    %v1868 = vmul.f32 %v1863, 1.442695
    %v1869 = vpow.pop %v1868
    %v1870 = vmul.f32 %v1864, 1.442695
    %v1871 = vpow.pop %v1870
    %v1872 = vmul.f32 %v1865, 1.442695
    %v1873 = vpow.pop %v1872
    %v1874 = vmul.f32 %v1867, %v1842
    %v1875 = vmul.f32 %v1869, %v1842
    %v1876 = vmul.f32 %v1871, %v1842
    %v1877 = vmul.f32 %v1873, %v1842
    %v1878 = vsel %vm667, %v1874, 0.0
    %1879 = vadd.xlane.f32.xlu0 %v1878
    %v1880 = vpop.xlane.xlu0 %1879
    %v1881 = vsel %vm667, %v1875, 0.0
    %1882 = vadd.xlane.f32.xlu0 %v1881
    %v1883 = vpop.xlane.xlu0 %1882
    %v1884 = vsel %vm667, %v1876, 0.0
    %1885 = vadd.xlane.f32.xlu0 %v1884
    %v1886 = vpop.xlane.xlu0 %1885
    %v1887 = vsel %vm667, %v1877, 0.0
    %1888 = vadd.xlane.f32.xlu0 %v1887
    %v1889 = vpop.xlane.xlu0 %1888
    %v1890 = vmax.f32 %v1880, 1e-30
    %v1891 = vmax.f32 %v1883, 1e-30
    %v1892 = vmax.f32 %v1886, 1e-30
    %v1893 = vmax.f32 %v1889, 1e-30
    %v1894 = vrcp.pop %v1890
    %v1895 = vmul.f32 %v1890, %v1894
    %v1896 = vsub.f32 1.0, %v1895
    %v1897 = vmul.f32 %v1894, %v1896
    %v1898 = vadd.f32 %v1894, %v1897
    %vm1899 = vweird.f32 %v1890
    %vm1900 = vweird.f32 %v1894
    %vm1901 = vmor %vm1899, %vm1900
    %v1902 = vsel %vm1901, %v1894, %v1898
    %v1903 = vand.u32 2147483647, %v1890
    %vm1904 = vcmp.eq.f32.partialorder %v1903, 8.507059e+37
    %v1905 = vand.u32 %v1890, 2147483648
    %v1906 = vor.u32 1.1754944e-38, %v1905
    %v1907 = vsel %vm1904, %v1906, %v1902
    %v1908 = vmul.f32 1.0, %v1907
    %v1909 = vrcp.pop %v1891
    %v1910 = vmul.f32 %v1891, %v1909
    %v1911 = vsub.f32 1.0, %v1910
    %v1912 = vmul.f32 %v1909, %v1911
    %v1913 = vadd.f32 %v1909, %v1912
    %vm1914 = vweird.f32 %v1891
    %vm1915 = vweird.f32 %v1909
    %vm1916 = vmor %vm1914, %vm1915
    %v1917 = vsel %vm1916, %v1909, %v1913
    %v1918 = vand.u32 2147483647, %v1891
    %vm1919 = vcmp.eq.f32.partialorder %v1918, 8.507059e+37
    %v1920 = vand.u32 %v1891, 2147483648
    %v1921 = vor.u32 1.1754944e-38, %v1920
    %v1922 = vsel %vm1919, %v1921, %v1917
    %v1923 = vmul.f32 1.0, %v1922
    %v1924 = vrcp.pop %v1892
    %v1925 = vmul.f32 %v1892, %v1924
    %v1926 = vsub.f32 1.0, %v1925
    %v1927 = vmul.f32 %v1924, %v1926
    %v1928 = vadd.f32 %v1924, %v1927
    %vm1929 = vweird.f32 %v1892
    %vm1930 = vweird.f32 %v1924
    %vm1931 = vmor %vm1929, %vm1930
    %v1932 = vsel %vm1931, %v1924, %v1928
    %v1933 = vand.u32 2147483647, %v1892
    %vm1934 = vcmp.eq.f32.partialorder %v1933, 8.507059e+37
    %v1935 = vand.u32 %v1892, 2147483648
    %v1936 = vor.u32 1.1754944e-38, %v1935
    %v1937 = vsel %vm1934, %v1936, %v1932
    %v1938 = vmul.f32 1.0, %v1937
    %v1939 = vrcp.pop %v1893
    %v1940 = vmul.f32 %v1893, %v1939
    %v1941 = vsub.f32 1.0, %v1940
    %v1942 = vmul.f32 %v1939, %v1941
    %v1943 = vadd.f32 %v1939, %v1942
    %vm1944 = vweird.f32 %v1893
    %vm1945 = vweird.f32 %v1939
    %vm1946 = vmor %vm1944, %vm1945
    %v1947 = vsel %vm1946, %v1939, %v1943
    %v1948 = vand.u32 2147483647, %v1893
    %vm1949 = vcmp.eq.f32.partialorder %v1948, 8.507059e+37
    %v1950 = vand.u32 %v1893, 2147483648
    %v1951 = vor.u32 1.1754944e-38, %v1950
    %v1952 = vsel %vm1949, %v1951, %v1947
    %v1953 = vmul.f32 1.0, %v1952
    %v1955 = vsel %vm667, %v1874, 0
    %1957 = vmatpush.msra.mxu0 0.0
    %1958 = vmatpush.msra.mxu0 0.0
    %1959 = vmatpush.msra.mxu0 0.0
    %1960 = vmatpush.msra.mxu0 0.0
    %1961 = vmatpush.msra.mxu0 0.0
    %1962 = vmatpush.msra.mxu0 0.0
    %1963 = vmatpush.msra.mxu0 0.0
    %1964 = vmatpush.msra.mxu0 0.0
    %1965 = vmatpush.msra.mxu0 0.0
    %1966 = vmatpush.msra.mxu0 0.0
    %1967 = vmatpush.msra.mxu0 0.0
    %1968 = vmatpush.msra.mxu0 0.0
    %1969 = vmatpush.msra.mxu0 0.0
    %1970 = vmatpush.msra.mxu0 0.0
    %1971 = vmatpush.msra.mxu0 0.0
    %1972 = vmatpush.msra.mxu0 %v1687
    %1973 = vmatmul.f32.gmra.mxu0 %v1955
    %v1974 = vpop.f32.mrf.mxu0
    %v1975 = vadd.f32 0.0, %v1974
    %1976 = vdwg.mxu0
    %v1978 = vsel %vm667, %v1875, 0
    %1980 = vmatpush.msra.mxu0 0.0
    %1981 = vmatpush.msra.mxu0 0.0
    %1982 = vmatpush.msra.mxu0 0.0
    %1983 = vmatpush.msra.mxu0 0.0
    %1984 = vmatpush.msra.mxu0 0.0
    %1985 = vmatpush.msra.mxu0 0.0
    %1986 = vmatpush.msra.mxu0 0.0
    %1987 = vmatpush.msra.mxu0 0.0
    %1988 = vmatpush.msra.mxu0 0.0
    %1989 = vmatpush.msra.mxu0 0.0
    %1990 = vmatpush.msra.mxu0 0.0
    %1991 = vmatpush.msra.mxu0 0.0
    %1992 = vmatpush.msra.mxu0 0.0
    %1993 = vmatpush.msra.mxu0 0.0
    %1994 = vmatpush.msra.mxu0 0.0
    %1995 = vmatpush.msra.mxu0 %v1707
    %1996 = vmatmul.f32.gmra.mxu0 %v1978
    %v1997 = vpop.f32.mrf.mxu0
    %v1998 = vadd.f32 0.0, %v1997
    %1999 = vdwg.mxu0
    %v2001 = vsel %vm667, %v1876, 0
    %2003 = vmatpush.msra.mxu0 0.0
    %2004 = vmatpush.msra.mxu0 0.0
    %2005 = vmatpush.msra.mxu0 0.0
    %2006 = vmatpush.msra.mxu0 0.0
    %2007 = vmatpush.msra.mxu0 0.0
    %2008 = vmatpush.msra.mxu0 0.0
    %2009 = vmatpush.msra.mxu0 0.0
    %2010 = vmatpush.msra.mxu0 0.0
    %2011 = vmatpush.msra.mxu0 0.0
    %2012 = vmatpush.msra.mxu0 0.0
    %2013 = vmatpush.msra.mxu0 0.0
    %2014 = vmatpush.msra.mxu0 0.0
    %2015 = vmatpush.msra.mxu0 0.0
    %2016 = vmatpush.msra.mxu0 0.0
    %2017 = vmatpush.msra.mxu0 0.0
    %2018 = vmatpush.msra.mxu0 %v1727
    %2019 = vmatmul.f32.gmra.mxu0 %v2001
    %v2020 = vpop.f32.mrf.mxu0
    %v2021 = vadd.f32 0.0, %v2020
    %2022 = vdwg.mxu0
    %v2024 = vsel %vm667, %v1877, 0
    %2026 = vmatpush.msra.mxu0 0.0
    %2027 = vmatpush.msra.mxu0 0.0
    %2028 = vmatpush.msra.mxu0 0.0
    %2029 = vmatpush.msra.mxu0 0.0
    %2030 = vmatpush.msra.mxu0 0.0
    %2031 = vmatpush.msra.mxu0 0.0
    %2032 = vmatpush.msra.mxu0 0.0
    %2033 = vmatpush.msra.mxu0 0.0
    %2034 = vmatpush.msra.mxu0 0.0
    %2035 = vmatpush.msra.mxu0 0.0
    %2036 = vmatpush.msra.mxu0 0.0
    %2037 = vmatpush.msra.mxu0 0.0
    %2038 = vmatpush.msra.mxu0 0.0
    %2039 = vmatpush.msra.mxu0 0.0
    %2040 = vmatpush.msra.mxu0 0.0
    %2041 = vmatpush.msra.mxu0 %v1747
    %2042 = vmatmul.f32.gmra.mxu0 %v2024
    %v2043 = vpop.f32.mrf.mxu0
    %v2044 = vadd.f32 0.0, %v2043
    %2045 = vdwg.mxu0
    %v2046 = vmul.f32 %v1975, %v1908
    %v2047 = vmul.f32 %v1998, %v1923
    %v2048 = vmul.f32 %v2021, %v1938
    %v2049 = vmul.f32 %v2044, %v1953
    %v2050 = vadd.f32 %v1517, %v2046
    %v2051 = vadd.f32 %v1518, %v2047
    %v2052 = vadd.f32 %v1519, %v2048
    %v2053 = vadd.f32 %v1520, %v2049
    %v2054 = vmul.f32 %v2050, 0.5
    %v2055 = vmul.f32 %v2051, 0.5
    %v2056 = vmul.f32 %v2052, 0.5
    %v2057 = vmul.f32 %v2053, 0.5
    %v2058 = vld [vmem:[%s8] sm:$0x1]
    %v2059 = vld [vmem:[%s7] sm:$0xff]
    %v2061 = vsel %vm667, %v2054, 0
    %2063 = vmatpush.msra.mxu0 0.0
    %2064 = vmatpush.msra.mxu0 0.0
    %2065 = vmatpush.msra.mxu0 0.0
    %2066 = vmatpush.msra.mxu0 0.0
    %2067 = vmatpush.msra.mxu0 0.0
    %2068 = vmatpush.msra.mxu0 0.0
    %2069 = vmatpush.msra.mxu0 0.0
    %2070 = vmatpush.msra.mxu0 0.0
    %2071 = vmatpush.msra.mxu0 0.0
    %2072 = vmatpush.msra.mxu0 0.0
    %2073 = vmatpush.msra.mxu0 0.0
    %2074 = vmatpush.msra.mxu0 0.0
    %2075 = vmatpush.msra.mxu0 0.0
    %2076 = vmatpush.msra.mxu0 0.0
    %2077 = vmatpush.msra.mxu0 0.0
    %2078 = vmatpush.msra.mxu0 %v2059
    %2079 = vmatmul.f32.gmra.mxu0 %v2061
    %v2080 = vpop.f32.mrf.mxu0
    %v2081 = vadd.f32 0.0, %v2080
    %2082 = vdwg.mxu0
    %v2084 = vperm.slane %v2058, 0
    %v2086 = vadd.f32 %v2084, %v2081
    %s2087 = scalar_lea.vmem %s7, 8
    %v2088 = vld [vmem:[%s2087] sm:$0xff]
    %v2090 = vsel %vm667, %v2055, 0
    %2092 = vmatpush.msra.mxu0 0.0
    %2093 = vmatpush.msra.mxu0 0.0
    %2094 = vmatpush.msra.mxu0 0.0
    %2095 = vmatpush.msra.mxu0 0.0
    %2096 = vmatpush.msra.mxu0 0.0
    %2097 = vmatpush.msra.mxu0 0.0
    %2098 = vmatpush.msra.mxu0 0.0
    %2099 = vmatpush.msra.mxu0 0.0
    %2100 = vmatpush.msra.mxu0 0.0
    %2101 = vmatpush.msra.mxu0 0.0
    %2102 = vmatpush.msra.mxu0 0.0
    %2103 = vmatpush.msra.mxu0 0.0
    %2104 = vmatpush.msra.mxu0 0.0
    %2105 = vmatpush.msra.mxu0 0.0
    %2106 = vmatpush.msra.mxu0 0.0
    %2107 = vmatpush.msra.mxu0 %v2088
    %2108 = vmatmul.f32.gmra.mxu0 %v2090
    %v2109 = vpop.f32.mrf.mxu0
    %v2110 = vadd.f32 0.0, %v2109
    %2111 = vdwg.mxu0
    %v2112 = vadd.f32 %v2086, %v2110
    %s2113 = scalar_lea.vmem %s7, 16
    %v2114 = vld [vmem:[%s2113] sm:$0xff]
    %v2116 = vsel %vm667, %v2056, 0
    %2118 = vmatpush.msra.mxu0 0.0
    %2119 = vmatpush.msra.mxu0 0.0
    %2120 = vmatpush.msra.mxu0 0.0
    %2121 = vmatpush.msra.mxu0 0.0
    %2122 = vmatpush.msra.mxu0 0.0
    %2123 = vmatpush.msra.mxu0 0.0
    %2124 = vmatpush.msra.mxu0 0.0
    %2125 = vmatpush.msra.mxu0 0.0
    %2126 = vmatpush.msra.mxu0 0.0
    %2127 = vmatpush.msra.mxu0 0.0
    %2128 = vmatpush.msra.mxu0 0.0
    %2129 = vmatpush.msra.mxu0 0.0
    %2130 = vmatpush.msra.mxu0 0.0
    %2131 = vmatpush.msra.mxu0 0.0
    %2132 = vmatpush.msra.mxu0 0.0
    %2133 = vmatpush.msra.mxu0 %v2114
    %2134 = vmatmul.f32.gmra.mxu0 %v2116
    %v2135 = vpop.f32.mrf.mxu0
    %v2136 = vadd.f32 0.0, %v2135
    %2137 = vdwg.mxu0
    %v2138 = vadd.f32 %v2112, %v2136
    %s2139 = scalar_lea.vmem %s7, 24
    %v2140 = vld [vmem:[%s2139] sm:$0xff]
    %v2142 = vsel %vm667, %v2057, 0
    %2144 = vmatpush.msra.mxu0 0.0
    %2145 = vmatpush.msra.mxu0 0.0
    %2146 = vmatpush.msra.mxu0 0.0
    %2147 = vmatpush.msra.mxu0 0.0
    %2148 = vmatpush.msra.mxu0 0.0
    %2149 = vmatpush.msra.mxu0 0.0
    %2150 = vmatpush.msra.mxu0 0.0
    %2151 = vmatpush.msra.mxu0 0.0
    %2152 = vmatpush.msra.mxu0 0.0
    %2153 = vmatpush.msra.mxu0 0.0
    %2154 = vmatpush.msra.mxu0 0.0
    %2155 = vmatpush.msra.mxu0 0.0
    %2156 = vmatpush.msra.mxu0 0.0
    %2157 = vmatpush.msra.mxu0 0.0
    %2158 = vmatpush.msra.mxu0 0.0
    %2159 = vmatpush.msra.mxu0 %v2140
    %2160 = vmatmul.f32.gmra.mxu0 %v2142
    %v2161 = vpop.f32.mrf.mxu0
    %v2162 = vadd.f32 0.0, %v2161
    %2163 = vdwg.mxu0
    %v2164 = vadd.f32 %v2138, %v2162
    %s2165 = sld [smem:[#allocation2]]
    %v2166 = vstv %s2165
    %v2167 = vmul.f32 %v129, %v2166
    %v2168 = vadd.f32 %v2164, %v2167
    %v2169 = vsel %vm238, %v2168, 0.0
    %2170 = vadd.xlane.f32.xlu0 %v2169
    %v2171 = vpop.xlane.xlu0 %2170
    %v2172 = vrcp.pop 32.0
    %v2173 = vmul.f32 32.0, %v2172
    %v2174 = vsub.f32 1.0, %v2173
    %v2175 = vmul.f32 %v2172, %v2174
    %v2176 = vadd.f32 %v2172, %v2175
    %vm2177 = vweird.f32 %v2172
    %v2178 = vsel %vm2177, %v2172, %v2176
    %v2179 = vmul.f32 %v2171, %v2178
    %v2180 = vsub.f32 %v2168, %v2179
    %v2181 = vmul.f32 %v2180, %v2180
    %v2182 = vsel %vm238, %v2181, 0.0
    %2183 = vadd.xlane.f32.xlu0 %v2182
    %v2184 = vpop.xlane.xlu0 %2183
    %v2185 = vmul.f32 %v2184, %v2178
    %v2186 = vadd.f32 %v2185, 1e-05
    %v2187 = vrsqrt.pop %v2186
    %v2188 = vmul.f32 %v2187, %v2186
    %v2189 = vmul.f32 %v2188, %v2187
    %v2190 = vmul.f32 0.5, %v2189
    %v2191 = vsub.f32 1.5, %v2190
    %v2192 = vmul.f32 %v2187, %v2191
    %vm2193 = vweird.f32 %v2186
    %vm2194 = vweird.f32 %v2187
    %vm2195 = vmor %vm2193, %vm2194
    %v2196 = vsel %vm2195, %v2187, %v2192
    %v2197 = vmul.f32 %v2180, %v2196
    %s2198 = scalar_lea.vmem %s8, 1
    %v2199 = vld [vmem:[%s2198] sm:$0x1]
    %v2201 = vperm.slane %v2199, 0
    %v2203 = vmul.f32 %v2197, %v2201
    %s2204 = scalar_lea.vmem %s8, 2
    %v2205 = vld [vmem:[%s2204] sm:$0x1]
    %v2207 = vperm.slane %v2205, 0
    %v2209 = vadd.f32 %v2203, %v2207
    %s2210 = scalar_lea.vmem %s8, 3
    %v2211 = vld [vmem:[%s2210] sm:$0x1]
    %s2212 = scalar_lea.vmem %s7, 32
    %v2213 = vld [vmem:[%s2212] sm:$0xff]
    %v2215 = vsel %vm667, %v976, 0
    %2217 = vmatpush.msra.mxu0 0.0
    %2218 = vmatpush.msra.mxu0 0.0
    %2219 = vmatpush.msra.mxu0 0.0
    %2220 = vmatpush.msra.mxu0 0.0
    %2221 = vmatpush.msra.mxu0 0.0
    %2222 = vmatpush.msra.mxu0 0.0
    %2223 = vmatpush.msra.mxu0 0.0
    %2224 = vmatpush.msra.mxu0 0.0
    %2225 = vmatpush.msra.mxu0 0.0
    %2226 = vmatpush.msra.mxu0 0.0
    %2227 = vmatpush.msra.mxu0 0.0
    %2228 = vmatpush.msra.mxu0 0.0
    %2229 = vmatpush.msra.mxu0 0.0
    %2230 = vmatpush.msra.mxu0 0.0
    %2231 = vmatpush.msra.mxu0 0.0
    %2232 = vmatpush.msra.mxu0 %v2213
    %2233 = vmatmul.f32.gmra.mxu0 %v2215
    %v2234 = vpop.f32.mrf.mxu0
    %v2235 = vadd.f32 0.0, %v2234
    %2236 = vdwg.mxu0
    %v2238 = vperm.slane %v2211, 0
    %v2240 = vadd.f32 %v2238, %v2235
    %s2241 = scalar_lea.vmem %s7, 40
    %v2242 = vld [vmem:[%s2241] sm:$0xff]
    %v2244 = vsel %vm667, %v977, 0
    %2246 = vmatpush.msra.mxu0 0.0
    %2247 = vmatpush.msra.mxu0 0.0
    %2248 = vmatpush.msra.mxu0 0.0
    %2249 = vmatpush.msra.mxu0 0.0
    %2250 = vmatpush.msra.mxu0 0.0
    %2251 = vmatpush.msra.mxu0 0.0
    %2252 = vmatpush.msra.mxu0 0.0
    %2253 = vmatpush.msra.mxu0 0.0
    %2254 = vmatpush.msra.mxu0 0.0
    %2255 = vmatpush.msra.mxu0 0.0
    %2256 = vmatpush.msra.mxu0 0.0
    %2257 = vmatpush.msra.mxu0 0.0
    %2258 = vmatpush.msra.mxu0 0.0
    %2259 = vmatpush.msra.mxu0 0.0
    %2260 = vmatpush.msra.mxu0 0.0
    %2261 = vmatpush.msra.mxu0 %v2242
    %2262 = vmatmul.f32.gmra.mxu0 %v2244
    %v2263 = vpop.f32.mrf.mxu0
    %v2264 = vadd.f32 0.0, %v2263
    %2265 = vdwg.mxu0
    %v2266 = vadd.f32 %v2240, %v2264
    %s2267 = scalar_lea.vmem %s7, 48
    %v2268 = vld [vmem:[%s2267] sm:$0xff]
    %v2270 = vsel %vm667, %v978, 0
    %2272 = vmatpush.msra.mxu0 0.0
    %2273 = vmatpush.msra.mxu0 0.0
    %2274 = vmatpush.msra.mxu0 0.0
    %2275 = vmatpush.msra.mxu0 0.0
    %2276 = vmatpush.msra.mxu0 0.0
    %2277 = vmatpush.msra.mxu0 0.0
    %2278 = vmatpush.msra.mxu0 0.0
    %2279 = vmatpush.msra.mxu0 0.0
    %2280 = vmatpush.msra.mxu0 0.0
    %2281 = vmatpush.msra.mxu0 0.0
    %2282 = vmatpush.msra.mxu0 0.0
    %2283 = vmatpush.msra.mxu0 0.0
    %2284 = vmatpush.msra.mxu0 0.0
    %2285 = vmatpush.msra.mxu0 0.0
    %2286 = vmatpush.msra.mxu0 0.0
    %2287 = vmatpush.msra.mxu0 %v2268
    %2288 = vmatmul.f32.gmra.mxu0 %v2270
    %v2289 = vpop.f32.mrf.mxu0
    %v2290 = vadd.f32 0.0, %v2289
    %2291 = vdwg.mxu0
    %v2292 = vadd.f32 %v2266, %v2290
    %s2293 = scalar_lea.vmem %s7, 56
    %v2294 = vld [vmem:[%s2293] sm:$0xff]
    %v2296 = vsel %vm667, %v979, 0
    %2298 = vmatpush.msra.mxu0 0.0
    %2299 = vmatpush.msra.mxu0 0.0
    %2300 = vmatpush.msra.mxu0 0.0
    %2301 = vmatpush.msra.mxu0 0.0
    %2302 = vmatpush.msra.mxu0 0.0
    %2303 = vmatpush.msra.mxu0 0.0
    %2304 = vmatpush.msra.mxu0 0.0
    %2305 = vmatpush.msra.mxu0 0.0
    %2306 = vmatpush.msra.mxu0 0.0
    %2307 = vmatpush.msra.mxu0 0.0
    %2308 = vmatpush.msra.mxu0 0.0
    %2309 = vmatpush.msra.mxu0 0.0
    %2310 = vmatpush.msra.mxu0 0.0
    %2311 = vmatpush.msra.mxu0 0.0
    %2312 = vmatpush.msra.mxu0 0.0
    %2313 = vmatpush.msra.mxu0 %v2294
    %2314 = vmatmul.f32.gmra.mxu0 %v2296
    %v2315 = vpop.f32.mrf.mxu0
    %v2316 = vadd.f32 0.0, %v2315
    %2317 = vdwg.mxu0
    %v2318 = vadd.f32 %v2292, %v2316
    %s2319 = sld [smem:[#allocation2 + $0x1]]
    %v2320 = vstv %s2319
    %v2321 = vmul.f32 %v205, %v2320
    %v2322 = vadd.f32 %v2318, %v2321
    %v2323 = vsel %vm238, %v2322, 0.0
    %2324 = vadd.xlane.f32.xlu0 %v2323
    %v2325 = vpop.xlane.xlu0 %2324
    %v2326 = vmul.f32 %v2325, %v2178
    %v2327 = vsub.f32 %v2322, %v2326
    %v2328 = vmul.f32 %v2327, %v2327
    %v2329 = vsel %vm238, %v2328, 0.0
    %2330 = vadd.xlane.f32.xlu0 %v2329
    %v2331 = vpop.xlane.xlu0 %2330
    %v2332 = vmul.f32 %v2331, %v2178
    %v2333 = vadd.f32 %v2332, 1e-05
    %v2334 = vrsqrt.pop %v2333
    %v2335 = vmul.f32 %v2334, %v2333
    %v2336 = vmul.f32 %v2335, %v2334
    %v2337 = vmul.f32 0.5, %v2336
    %v2338 = vsub.f32 1.5, %v2337
    %v2339 = vmul.f32 %v2334, %v2338
    %vm2340 = vweird.f32 %v2333
    %vm2341 = vweird.f32 %v2334
    %vm2342 = vmor %vm2340, %vm2341
    %v2343 = vsel %vm2342, %v2334, %v2339
    %v2344 = vmul.f32 %v2327, %v2343
    %s2345 = scalar_lea.vmem %s8, 4
    %v2346 = vld [vmem:[%s2345] sm:$0x1]
    %v2348 = vperm.slane %v2346, 0
    %v2350 = vmul.f32 %v2344, %v2348
    %s2351 = scalar_lea.vmem %s8, 5
    %v2352 = vld [vmem:[%s2351] sm:$0x1]
    %v2354 = vperm.slane %v2352, 0
    %v2356 = vadd.f32 %v2350, %v2354
    %s2357 = scalar_lea.vmem %s5, 256
    %v2358 = vld [vmem:[%s2357] sm:$0xff]
    %v2359 = vld [vmem:[%s2357 + $0x8] sm:$0xff]
    %v2360 = vld [vmem:[%s2357 + $0x10] sm:$0xff]
    %v2361 = vld [vmem:[%s2357 + $0x18] sm:$0xff]
    %v2362 = vld [vmem:[%s2357 + $0x20] sm:$0xff]
    %v2363 = vld [vmem:[%s2357 + $0x28] sm:$0xff]
    %v2364 = vld [vmem:[%s2357 + $0x30] sm:$0xff]
    %v2365 = vld [vmem:[%s2357 + $0x38] sm:$0xff]
    %v2366 = vld [vmem:[%s2357 + $0x40] sm:$0xff]
    %v2367 = vld [vmem:[%s2357 + $0x48] sm:$0xff]
    %v2368 = vld [vmem:[%s2357 + $0x50] sm:$0xff]
    %v2369 = vld [vmem:[%s2357 + $0x58] sm:$0xff]
    %v2370 = vld [vmem:[%s2357 + $0x60] sm:$0xff]
    %v2371 = vld [vmem:[%s2357 + $0x68] sm:$0xff]
    %v2372 = vld [vmem:[%s2357 + $0x70] sm:$0xff]
    %v2373 = vld [vmem:[%s2357 + $0x78] sm:$0xff]
    %s2374 = scalar_lea.vmem %s6, 8
    %v2375 = vld [vmem:[%s2374] sm:$0x1]
    %v2376 = vld [vmem:[%s2374 + $0x1] sm:$0x1]
    %v2377 = vld [vmem:[%s2374 + $0x2] sm:$0x1]
    %v2378 = vld [vmem:[%s2374 + $0x3] sm:$0x1]
    %v2383 = vperm.slane %v2375, 0
    %v2384 = vperm.slane %v2376, 0
    %v2385 = vperm.slane %v2377, 0
    %v2386 = vperm.slane %v2378, 0
    %v2392 = vsel %vm238, %v2209, 0
    %2394 = vmatpush.msra.mxu0 0.0
    %2395 = vmatpush.msra.mxu0 0.0
    %2396 = vmatpush.msra.mxu0 0.0
    %2397 = vmatpush.msra.mxu0 0.0
    %2398 = vmatpush.msra.mxu0 0.0
    %2399 = vmatpush.msra.mxu0 0.0
    %2400 = vmatpush.msra.mxu0 0.0
    %2401 = vmatpush.msra.mxu0 0.0
    %2402 = vmatpush.msra.mxu0 0.0
    %2403 = vmatpush.msra.mxu0 0.0
    %2404 = vmatpush.msra.mxu0 0.0
    %2405 = vmatpush.msra.mxu0 0.0
    %2406 = vmatpush.msra.mxu0 %v2361
    %2407 = vmatpush.msra.mxu0 %v2360
    %2408 = vmatpush.msra.mxu0 %v2359
    %2409 = vmatpush.msra.mxu0 %v2358
    %2410 = vmatmul.f32.gmra.mxu0 %v2392
    %v2411 = vpop.f32.mrf.mxu0
    %v2412 = vadd.f32 %v2383, %v2411
    %2413 = vdwg.mxu0
    %2414 = vmatpush.msra.mxu0 0.0
    %2415 = vmatpush.msra.mxu0 0.0
    %2416 = vmatpush.msra.mxu0 0.0
    %2417 = vmatpush.msra.mxu0 0.0
    %2418 = vmatpush.msra.mxu0 0.0
    %2419 = vmatpush.msra.mxu0 0.0
    %2420 = vmatpush.msra.mxu0 0.0
    %2421 = vmatpush.msra.mxu0 0.0
    %2422 = vmatpush.msra.mxu0 0.0
    %2423 = vmatpush.msra.mxu0 0.0
    %2424 = vmatpush.msra.mxu0 0.0
    %2425 = vmatpush.msra.mxu0 0.0
    %2426 = vmatpush.msra.mxu0 %v2365
    %2427 = vmatpush.msra.mxu0 %v2364
    %2428 = vmatpush.msra.mxu0 %v2363
    %2429 = vmatpush.msra.mxu0 %v2362
    %2430 = vmatmul.f32.gmra.mxu0 %v2392
    %v2431 = vpop.f32.mrf.mxu0
    %v2432 = vadd.f32 %v2384, %v2431
    %2433 = vdwg.mxu0
    %2434 = vmatpush.msra.mxu0 0.0
    %2435 = vmatpush.msra.mxu0 0.0
    %2436 = vmatpush.msra.mxu0 0.0
    %2437 = vmatpush.msra.mxu0 0.0
    %2438 = vmatpush.msra.mxu0 0.0
    %2439 = vmatpush.msra.mxu0 0.0
    %2440 = vmatpush.msra.mxu0 0.0
    %2441 = vmatpush.msra.mxu0 0.0
    %2442 = vmatpush.msra.mxu0 0.0
    %2443 = vmatpush.msra.mxu0 0.0
    %2444 = vmatpush.msra.mxu0 0.0
    %2445 = vmatpush.msra.mxu0 0.0
    %2446 = vmatpush.msra.mxu0 %v2369
    %2447 = vmatpush.msra.mxu0 %v2368
    %2448 = vmatpush.msra.mxu0 %v2367
    %2449 = vmatpush.msra.mxu0 %v2366
    %2450 = vmatmul.f32.gmra.mxu0 %v2392
    %v2451 = vpop.f32.mrf.mxu0
    %v2452 = vadd.f32 %v2385, %v2451
    %2453 = vdwg.mxu0
    %2454 = vmatpush.msra.mxu0 0.0
    %2455 = vmatpush.msra.mxu0 0.0
    %2456 = vmatpush.msra.mxu0 0.0
    %2457 = vmatpush.msra.mxu0 0.0
    %2458 = vmatpush.msra.mxu0 0.0
    %2459 = vmatpush.msra.mxu0 0.0
    %2460 = vmatpush.msra.mxu0 0.0
    %2461 = vmatpush.msra.mxu0 0.0
    %2462 = vmatpush.msra.mxu0 0.0
    %2463 = vmatpush.msra.mxu0 0.0
    %2464 = vmatpush.msra.mxu0 0.0
    %2465 = vmatpush.msra.mxu0 0.0
    %2466 = vmatpush.msra.mxu0 %v2373
    %2467 = vmatpush.msra.mxu0 %v2372
    %2468 = vmatpush.msra.mxu0 %v2371
    %2469 = vmatpush.msra.mxu0 %v2370
    %2470 = vmatmul.f32.gmra.mxu0 %v2392
    %v2471 = vpop.f32.mrf.mxu0
    %v2472 = vadd.f32 %v2386, %v2471
    %2473 = vdwg.mxu0
    %s2474 = scalar_lea.vmem %s5, 1024
    %v2475 = vld [vmem:[%s2474] sm:$0xff]
    %v2476 = vld [vmem:[%s2474 + $0x8] sm:$0xff]
    %v2477 = vld [vmem:[%s2474 + $0x10] sm:$0xff]
    %v2478 = vld [vmem:[%s2474 + $0x18] sm:$0xff]
    %v2479 = vld [vmem:[%s2474 + $0x20] sm:$0xff]
    %v2480 = vld [vmem:[%s2474 + $0x28] sm:$0xff]
    %v2481 = vld [vmem:[%s2474 + $0x30] sm:$0xff]
    %v2482 = vld [vmem:[%s2474 + $0x38] sm:$0xff]
    %v2483 = vld [vmem:[%s2474 + $0x40] sm:$0xff]
    %v2484 = vld [vmem:[%s2474 + $0x48] sm:$0xff]
    %v2485 = vld [vmem:[%s2474 + $0x50] sm:$0xff]
    %v2486 = vld [vmem:[%s2474 + $0x58] sm:$0xff]
    %v2487 = vld [vmem:[%s2474 + $0x60] sm:$0xff]
    %v2488 = vld [vmem:[%s2474 + $0x68] sm:$0xff]
    %v2489 = vld [vmem:[%s2474 + $0x70] sm:$0xff]
    %v2490 = vld [vmem:[%s2474 + $0x78] sm:$0xff]
    %s2491 = scalar_lea.vmem %s6, 32
    %v2492 = vld [vmem:[%s2491] sm:$0x1]
    %v2493 = vld [vmem:[%s2491 + $0x1] sm:$0x1]
    %v2494 = vld [vmem:[%s2491 + $0x2] sm:$0x1]
    %v2495 = vld [vmem:[%s2491 + $0x3] sm:$0x1]
    %v2500 = vperm.slane %v2492, 0
    %v2501 = vperm.slane %v2493, 0
    %v2502 = vperm.slane %v2494, 0
    %v2503 = vperm.slane %v2495, 0
    %v2509 = vsel %vm238, %v2356, 0
    %2511 = vmatpush.msra.mxu0 0.0
    %2512 = vmatpush.msra.mxu0 0.0
    %2513 = vmatpush.msra.mxu0 0.0
    %2514 = vmatpush.msra.mxu0 0.0
    %2515 = vmatpush.msra.mxu0 0.0
    %2516 = vmatpush.msra.mxu0 0.0
    %2517 = vmatpush.msra.mxu0 0.0
    %2518 = vmatpush.msra.mxu0 0.0
    %2519 = vmatpush.msra.mxu0 0.0
    %2520 = vmatpush.msra.mxu0 0.0
    %2521 = vmatpush.msra.mxu0 0.0
    %2522 = vmatpush.msra.mxu0 0.0
    %2523 = vmatpush.msra.mxu0 %v2478
    %2524 = vmatpush.msra.mxu0 %v2477
    %2525 = vmatpush.msra.mxu0 %v2476
    %2526 = vmatpush.msra.mxu0 %v2475
    %2527 = vmatmul.f32.gmra.mxu0 %v2509
    %v2528 = vpop.f32.mrf.mxu0
    %v2529 = vadd.f32 %v2500, %v2528
    %2530 = vdwg.mxu0
    %2531 = vmatpush.msra.mxu0 0.0
    %2532 = vmatpush.msra.mxu0 0.0
    %2533 = vmatpush.msra.mxu0 0.0
    %2534 = vmatpush.msra.mxu0 0.0
    %2535 = vmatpush.msra.mxu0 0.0
    %2536 = vmatpush.msra.mxu0 0.0
    %2537 = vmatpush.msra.mxu0 0.0
    %2538 = vmatpush.msra.mxu0 0.0
    %2539 = vmatpush.msra.mxu0 0.0
    %2540 = vmatpush.msra.mxu0 0.0
    %2541 = vmatpush.msra.mxu0 0.0
    %2542 = vmatpush.msra.mxu0 0.0
    %2543 = vmatpush.msra.mxu0 %v2482
    %2544 = vmatpush.msra.mxu0 %v2481
    %2545 = vmatpush.msra.mxu0 %v2480
    %2546 = vmatpush.msra.mxu0 %v2479
    %2547 = vmatmul.f32.gmra.mxu0 %v2509
    %v2548 = vpop.f32.mrf.mxu0
    %v2549 = vadd.f32 %v2501, %v2548
    %2550 = vdwg.mxu0
    %2551 = vmatpush.msra.mxu0 0.0
    %2552 = vmatpush.msra.mxu0 0.0
    %2553 = vmatpush.msra.mxu0 0.0
    %2554 = vmatpush.msra.mxu0 0.0
    %2555 = vmatpush.msra.mxu0 0.0
    %2556 = vmatpush.msra.mxu0 0.0
    %2557 = vmatpush.msra.mxu0 0.0
    %2558 = vmatpush.msra.mxu0 0.0
    %2559 = vmatpush.msra.mxu0 0.0
    %2560 = vmatpush.msra.mxu0 0.0
    %2561 = vmatpush.msra.mxu0 0.0
    %2562 = vmatpush.msra.mxu0 0.0
    %2563 = vmatpush.msra.mxu0 %v2486
    %2564 = vmatpush.msra.mxu0 %v2485
    %2565 = vmatpush.msra.mxu0 %v2484
    %2566 = vmatpush.msra.mxu0 %v2483
    %2567 = vmatmul.f32.gmra.mxu0 %v2509
    %v2568 = vpop.f32.mrf.mxu0
    %v2569 = vadd.f32 %v2502, %v2568
    %2570 = vdwg.mxu0
    %2571 = vmatpush.msra.mxu0 0.0
    %2572 = vmatpush.msra.mxu0 0.0
    %2573 = vmatpush.msra.mxu0 0.0
    %2574 = vmatpush.msra.mxu0 0.0
    %2575 = vmatpush.msra.mxu0 0.0
    %2576 = vmatpush.msra.mxu0 0.0
    %2577 = vmatpush.msra.mxu0 0.0
    %2578 = vmatpush.msra.mxu0 0.0
    %2579 = vmatpush.msra.mxu0 0.0
    %2580 = vmatpush.msra.mxu0 0.0
    %2581 = vmatpush.msra.mxu0 0.0
    %2582 = vmatpush.msra.mxu0 0.0
    %2583 = vmatpush.msra.mxu0 %v2490
    %2584 = vmatpush.msra.mxu0 %v2489
    %2585 = vmatpush.msra.mxu0 %v2488
    %2586 = vmatpush.msra.mxu0 %v2487
    %2587 = vmatmul.f32.gmra.mxu0 %v2509
    %v2588 = vpop.f32.mrf.mxu0
    %v2589 = vadd.f32 %v2503, %v2588
    %2590 = vdwg.mxu0
    %s2591 = scalar_lea.vmem %s5, 1792
    %v2592 = vld [vmem:[%s2591] sm:$0xff]
    %v2593 = vld [vmem:[%s2591 + $0x8] sm:$0xff]
    %v2594 = vld [vmem:[%s2591 + $0x10] sm:$0xff]
    %v2595 = vld [vmem:[%s2591 + $0x18] sm:$0xff]
    %v2596 = vld [vmem:[%s2591 + $0x20] sm:$0xff]
    %v2597 = vld [vmem:[%s2591 + $0x28] sm:$0xff]
    %v2598 = vld [vmem:[%s2591 + $0x30] sm:$0xff]
    %v2599 = vld [vmem:[%s2591 + $0x38] sm:$0xff]
    %v2600 = vld [vmem:[%s2591 + $0x40] sm:$0xff]
    %v2601 = vld [vmem:[%s2591 + $0x48] sm:$0xff]
    %v2602 = vld [vmem:[%s2591 + $0x50] sm:$0xff]
    %v2603 = vld [vmem:[%s2591 + $0x58] sm:$0xff]
    %v2604 = vld [vmem:[%s2591 + $0x60] sm:$0xff]
    %v2605 = vld [vmem:[%s2591 + $0x68] sm:$0xff]
    %v2606 = vld [vmem:[%s2591 + $0x70] sm:$0xff]
    %v2607 = vld [vmem:[%s2591 + $0x78] sm:$0xff]
    %s2608 = scalar_lea.vmem %s6, 56
    %v2609 = vld [vmem:[%s2608] sm:$0x1]
    %v2610 = vld [vmem:[%s2608 + $0x1] sm:$0x1]
    %v2611 = vld [vmem:[%s2608 + $0x2] sm:$0x1]
    %v2612 = vld [vmem:[%s2608 + $0x3] sm:$0x1]
    %v2617 = vperm.slane %v2609, 0
    %v2618 = vperm.slane %v2610, 0
    %v2619 = vperm.slane %v2611, 0
    %v2620 = vperm.slane %v2612, 0
    %2625 = vmatpush.msra.mxu0 0.0
    %2626 = vmatpush.msra.mxu0 0.0
    %2627 = vmatpush.msra.mxu0 0.0
    %2628 = vmatpush.msra.mxu0 0.0
    %2629 = vmatpush.msra.mxu0 0.0
    %2630 = vmatpush.msra.mxu0 0.0
    %2631 = vmatpush.msra.mxu0 0.0
    %2632 = vmatpush.msra.mxu0 0.0
    %2633 = vmatpush.msra.mxu0 0.0
    %2634 = vmatpush.msra.mxu0 0.0
    %2635 = vmatpush.msra.mxu0 0.0
    %2636 = vmatpush.msra.mxu0 0.0
    %2637 = vmatpush.msra.mxu0 %v2595
    %2638 = vmatpush.msra.mxu0 %v2594
    %2639 = vmatpush.msra.mxu0 %v2593
    %2640 = vmatpush.msra.mxu0 %v2592
    %2641 = vmatmul.f32.gmra.mxu0 %v2509
    %v2642 = vpop.f32.mrf.mxu0
    %v2643 = vadd.f32 %v2617, %v2642
    %2644 = vdwg.mxu0
    %2645 = vmatpush.msra.mxu0 0.0
    %2646 = vmatpush.msra.mxu0 0.0
    %2647 = vmatpush.msra.mxu0 0.0
    %2648 = vmatpush.msra.mxu0 0.0
    %2649 = vmatpush.msra.mxu0 0.0
    %2650 = vmatpush.msra.mxu0 0.0
    %2651 = vmatpush.msra.mxu0 0.0
    %2652 = vmatpush.msra.mxu0 0.0
    %2653 = vmatpush.msra.mxu0 0.0
    %2654 = vmatpush.msra.mxu0 0.0
    %2655 = vmatpush.msra.mxu0 0.0
    %2656 = vmatpush.msra.mxu0 0.0
    %2657 = vmatpush.msra.mxu0 %v2599
    %2658 = vmatpush.msra.mxu0 %v2598
    %2659 = vmatpush.msra.mxu0 %v2597
    %2660 = vmatpush.msra.mxu0 %v2596
    %2661 = vmatmul.f32.gmra.mxu0 %v2509
    %v2662 = vpop.f32.mrf.mxu0
    %v2663 = vadd.f32 %v2618, %v2662
    %2664 = vdwg.mxu0
    %2665 = vmatpush.msra.mxu0 0.0
    %2666 = vmatpush.msra.mxu0 0.0
    %2667 = vmatpush.msra.mxu0 0.0
    %2668 = vmatpush.msra.mxu0 0.0
    %2669 = vmatpush.msra.mxu0 0.0
    %2670 = vmatpush.msra.mxu0 0.0
    %2671 = vmatpush.msra.mxu0 0.0
    %2672 = vmatpush.msra.mxu0 0.0
    %2673 = vmatpush.msra.mxu0 0.0
    %2674 = vmatpush.msra.mxu0 0.0
    %2675 = vmatpush.msra.mxu0 0.0
    %2676 = vmatpush.msra.mxu0 0.0
    %2677 = vmatpush.msra.mxu0 %v2603
    %2678 = vmatpush.msra.mxu0 %v2602
    %2679 = vmatpush.msra.mxu0 %v2601
    %2680 = vmatpush.msra.mxu0 %v2600
    %2681 = vmatmul.f32.gmra.mxu0 %v2509
    %v2682 = vpop.f32.mrf.mxu0
    %v2683 = vadd.f32 %v2619, %v2682
    %2684 = vdwg.mxu0
    %2685 = vmatpush.msra.mxu0 0.0
    %2686 = vmatpush.msra.mxu0 0.0
    %2687 = vmatpush.msra.mxu0 0.0
    %2688 = vmatpush.msra.mxu0 0.0
    %2689 = vmatpush.msra.mxu0 0.0
    %2690 = vmatpush.msra.mxu0 0.0
    %2691 = vmatpush.msra.mxu0 0.0
    %2692 = vmatpush.msra.mxu0 0.0
    %2693 = vmatpush.msra.mxu0 0.0
    %2694 = vmatpush.msra.mxu0 0.0
    %2695 = vmatpush.msra.mxu0 0.0
    %2696 = vmatpush.msra.mxu0 0.0
    %2697 = vmatpush.msra.mxu0 %v2607
    %2698 = vmatpush.msra.mxu0 %v2606
    %2699 = vmatpush.msra.mxu0 %v2605
    %2700 = vmatpush.msra.mxu0 %v2604
    %2701 = vmatmul.f32.gmra.mxu0 %v2509
    %v2702 = vpop.f32.mrf.mxu0
    %v2703 = vadd.f32 %v2620, %v2702
    %2704 = vdwg.mxu0
    %v2706 = vsel %vm667, %v2412, 0
    %v2709 = vsel %vm667, %v2529, 0
    %2711 = vmatpush.xpose.msra.mxu0 0.0
    %2712 = vmatpush.xpose.msra.mxu0 0.0
    %2713 = vmatpush.xpose.msra.mxu0 0.0
    %2714 = vmatpush.xpose.msra.mxu0 0.0
    %2715 = vmatpush.xpose.msra.mxu0 0.0
    %2716 = vmatpush.xpose.msra.mxu0 0.0
    %2717 = vmatpush.xpose.msra.mxu0 0.0
    %2718 = vmatpush.xpose.msra.mxu0 0.0
    %2719 = vmatpush.xpose.msra.mxu0 0.0
    %2720 = vmatpush.xpose.msra.mxu0 0.0
    %2721 = vmatpush.xpose.msra.mxu0 0.0
    %2722 = vmatpush.xpose.msra.mxu0 0.0
    %2723 = vmatpush.xpose.msra.mxu0 0.0
    %2724 = vmatpush.xpose.msra.mxu0 0.0
    %2725 = vmatpush.xpose.msra.mxu0 0.0
    %2726 = vmatpush.xpose.msra.mxu0 %v2709
    %2727 = vmatmul.f32.gmra.mxu0 %v2706
    %v2728 = vpop.f32.mrf.mxu0
    %v2729 = vadd.f32 0.0, %v2728
    %2730 = vdwg.mxu0
    %v2732 = vsel %vm667, %v2432, 0
    %v2735 = vsel %vm667, %v2549, 0
    %2737 = vmatpush.xpose.msra.mxu0 0.0
    %2738 = vmatpush.xpose.msra.mxu0 0.0
    %2739 = vmatpush.xpose.msra.mxu0 0.0
    %2740 = vmatpush.xpose.msra.mxu0 0.0
    %2741 = vmatpush.xpose.msra.mxu0 0.0
    %2742 = vmatpush.xpose.msra.mxu0 0.0
    %2743 = vmatpush.xpose.msra.mxu0 0.0
    %2744 = vmatpush.xpose.msra.mxu0 0.0
    %2745 = vmatpush.xpose.msra.mxu0 0.0
    %2746 = vmatpush.xpose.msra.mxu0 0.0
    %2747 = vmatpush.xpose.msra.mxu0 0.0
    %2748 = vmatpush.xpose.msra.mxu0 0.0
    %2749 = vmatpush.xpose.msra.mxu0 0.0
    %2750 = vmatpush.xpose.msra.mxu0 0.0
    %2751 = vmatpush.xpose.msra.mxu0 0.0
    %2752 = vmatpush.xpose.msra.mxu0 %v2735
    %2753 = vmatmul.f32.gmra.mxu0 %v2732
    %v2754 = vpop.f32.mrf.mxu0
    %v2755 = vadd.f32 0.0, %v2754
    %2756 = vdwg.mxu0
    %v2758 = vsel %vm667, %v2452, 0
    %v2761 = vsel %vm667, %v2569, 0
    %2763 = vmatpush.xpose.msra.mxu0 0.0
    %2764 = vmatpush.xpose.msra.mxu0 0.0
    %2765 = vmatpush.xpose.msra.mxu0 0.0
    %2766 = vmatpush.xpose.msra.mxu0 0.0
    %2767 = vmatpush.xpose.msra.mxu0 0.0
    %2768 = vmatpush.xpose.msra.mxu0 0.0
    %2769 = vmatpush.xpose.msra.mxu0 0.0
    %2770 = vmatpush.xpose.msra.mxu0 0.0
    %2771 = vmatpush.xpose.msra.mxu0 0.0
    %2772 = vmatpush.xpose.msra.mxu0 0.0
    %2773 = vmatpush.xpose.msra.mxu0 0.0
    %2774 = vmatpush.xpose.msra.mxu0 0.0
    %2775 = vmatpush.xpose.msra.mxu0 0.0
    %2776 = vmatpush.xpose.msra.mxu0 0.0
    %2777 = vmatpush.xpose.msra.mxu0 0.0
    %2778 = vmatpush.xpose.msra.mxu0 %v2761
    %2779 = vmatmul.f32.gmra.mxu0 %v2758
    %v2780 = vpop.f32.mrf.mxu0
    %v2781 = vadd.f32 0.0, %v2780
    %2782 = vdwg.mxu0
    %v2784 = vsel %vm667, %v2472, 0
    %v2787 = vsel %vm667, %v2589, 0
    %2789 = vmatpush.xpose.msra.mxu0 0.0
    %2790 = vmatpush.xpose.msra.mxu0 0.0
    %2791 = vmatpush.xpose.msra.mxu0 0.0
    %2792 = vmatpush.xpose.msra.mxu0 0.0
    %2793 = vmatpush.xpose.msra.mxu0 0.0
    %2794 = vmatpush.xpose.msra.mxu0 0.0
    %2795 = vmatpush.xpose.msra.mxu0 0.0
    %2796 = vmatpush.xpose.msra.mxu0 0.0
    %2797 = vmatpush.xpose.msra.mxu0 0.0
    %2798 = vmatpush.xpose.msra.mxu0 0.0
    %2799 = vmatpush.xpose.msra.mxu0 0.0
    %2800 = vmatpush.xpose.msra.mxu0 0.0
    %2801 = vmatpush.xpose.msra.mxu0 0.0
    %2802 = vmatpush.xpose.msra.mxu0 0.0
    %2803 = vmatpush.xpose.msra.mxu0 0.0
    %2804 = vmatpush.xpose.msra.mxu0 %v2787
    %2805 = vmatmul.f32.gmra.mxu0 %v2784
    %v2806 = vpop.f32.mrf.mxu0
    %v2807 = vadd.f32 0.0, %v2806
    %2808 = vdwg.mxu0
    %v2809 = vld [vmem:[%s1312] sm:$0xff]
    %vm2810 = vcmp.gt.f32.partialorder %v2809, 0.5
    %v2811 = vsel %vm2810, 1, 0
    %vm2812 = vcmp.eq.s32.totalorder %v2811, 1
    %v2813 = vsel %vm2812, %v2729, -1e+30
    %v2814 = vsel %vm2812, %v2755, -1e+30
    %v2815 = vsel %vm2812, %v2781, -1e+30
    %v2816 = vsel %vm2812, %v2807, -1e+30
    %v2817 = vsel %vm667, %v2813, -inf
    %2818 = vmax.xlane.f32.xlu0 %v2817
    %v2819 = vpop.xlane.xlu0 %2818
    %v2820 = vsel %vm667, %v2814, -inf
    %2821 = vmax.xlane.f32.xlu0 %v2820
    %v2822 = vpop.xlane.xlu0 %2821
    %v2823 = vsel %vm667, %v2815, -inf
    %2824 = vmax.xlane.f32.xlu0 %v2823
    %v2825 = vpop.xlane.xlu0 %2824
    %v2826 = vsel %vm667, %v2816, -inf
    %2827 = vmax.xlane.f32.xlu0 %v2826
    %v2828 = vpop.xlane.xlu0 %2827
    %v2829 = vsub.f32 %v2813, %v2819
    %v2830 = vsub.f32 %v2814, %v2822
    %v2831 = vsub.f32 %v2815, %v2825
    %v2832 = vsub.f32 %v2816, %v2828
    %v2833 = vmul.f32 %v2829, 1.442695
    %v2834 = vpow.pop %v2833
    %v2835 = vmul.f32 %v2830, 1.442695
    %v2836 = vpow.pop %v2835
    %v2837 = vmul.f32 %v2831, 1.442695
    %v2838 = vpow.pop %v2837
    %v2839 = vmul.f32 %v2832, 1.442695
    %v2840 = vpow.pop %v2839
    %v2841 = vmul.f32 %v2834, %v2809
    %v2842 = vmul.f32 %v2836, %v2809
    %v2843 = vmul.f32 %v2838, %v2809
    %v2844 = vmul.f32 %v2840, %v2809
    %v2845 = vsel %vm667, %v2841, 0.0
    %2846 = vadd.xlane.f32.xlu0 %v2845
    %v2847 = vpop.xlane.xlu0 %2846
    %v2848 = vsel %vm667, %v2842, 0.0
    %2849 = vadd.xlane.f32.xlu0 %v2848
    %v2850 = vpop.xlane.xlu0 %2849
    %v2851 = vsel %vm667, %v2843, 0.0
    %2852 = vadd.xlane.f32.xlu0 %v2851
    %v2853 = vpop.xlane.xlu0 %2852
    %v2854 = vsel %vm667, %v2844, 0.0
    %2855 = vadd.xlane.f32.xlu0 %v2854
    %v2856 = vpop.xlane.xlu0 %2855
    %v2857 = vmax.f32 %v2847, 1e-30
    %v2858 = vmax.f32 %v2850, 1e-30
    %v2859 = vmax.f32 %v2853, 1e-30
    %v2860 = vmax.f32 %v2856, 1e-30
    %v2861 = vrcp.pop %v2857
    %v2862 = vmul.f32 %v2857, %v2861
    %v2863 = vsub.f32 1.0, %v2862
    %v2864 = vmul.f32 %v2861, %v2863
    %v2865 = vadd.f32 %v2861, %v2864
    %vm2866 = vweird.f32 %v2857
    %vm2867 = vweird.f32 %v2861
    %vm2868 = vmor %vm2866, %vm2867
    %v2869 = vsel %vm2868, %v2861, %v2865
    %v2870 = vand.u32 2147483647, %v2857
    %vm2871 = vcmp.eq.f32.partialorder %v2870, 8.507059e+37
    %v2872 = vand.u32 %v2857, 2147483648
    %v2873 = vor.u32 1.1754944e-38, %v2872
    %v2874 = vsel %vm2871, %v2873, %v2869
    %v2875 = vmul.f32 1.0, %v2874
    %v2876 = vrcp.pop %v2858
    %v2877 = vmul.f32 %v2858, %v2876
    %v2878 = vsub.f32 1.0, %v2877
    %v2879 = vmul.f32 %v2876, %v2878
    %v2880 = vadd.f32 %v2876, %v2879
    %vm2881 = vweird.f32 %v2858
    %vm2882 = vweird.f32 %v2876
    %vm2883 = vmor %vm2881, %vm2882
    %v2884 = vsel %vm2883, %v2876, %v2880
    %v2885 = vand.u32 2147483647, %v2858
    %vm2886 = vcmp.eq.f32.partialorder %v2885, 8.507059e+37
    %v2887 = vand.u32 %v2858, 2147483648
    %v2888 = vor.u32 1.1754944e-38, %v2887
    %v2889 = vsel %vm2886, %v2888, %v2884
    %v2890 = vmul.f32 1.0, %v2889
    %v2891 = vrcp.pop %v2859
    %v2892 = vmul.f32 %v2859, %v2891
    %v2893 = vsub.f32 1.0, %v2892
    %v2894 = vmul.f32 %v2891, %v2893
    %v2895 = vadd.f32 %v2891, %v2894
    %vm2896 = vweird.f32 %v2859
    %vm2897 = vweird.f32 %v2891
    %vm2898 = vmor %vm2896, %vm2897
    %v2899 = vsel %vm2898, %v2891, %v2895
    %v2900 = vand.u32 2147483647, %v2859
    %vm2901 = vcmp.eq.f32.partialorder %v2900, 8.507059e+37
    %v2902 = vand.u32 %v2859, 2147483648
    %v2903 = vor.u32 1.1754944e-38, %v2902
    %v2904 = vsel %vm2901, %v2903, %v2899
    %v2905 = vmul.f32 1.0, %v2904
    %v2906 = vrcp.pop %v2860
    %v2907 = vmul.f32 %v2860, %v2906
    %v2908 = vsub.f32 1.0, %v2907
    %v2909 = vmul.f32 %v2906, %v2908
    %v2910 = vadd.f32 %v2906, %v2909
    %vm2911 = vweird.f32 %v2860
    %vm2912 = vweird.f32 %v2906
    %vm2913 = vmor %vm2911, %vm2912
    %v2914 = vsel %vm2913, %v2906, %v2910
    %v2915 = vand.u32 2147483647, %v2860
    %vm2916 = vcmp.eq.f32.partialorder %v2915, 8.507059e+37
    %v2917 = vand.u32 %v2860, 2147483648
    %v2918 = vor.u32 1.1754944e-38, %v2917
    %v2919 = vsel %vm2916, %v2918, %v2914
    %v2920 = vmul.f32 1.0, %v2919
    %v2922 = vsel %vm667, %v2841, 0
    %2924 = vmatpush.msra.mxu0 0.0
    %2925 = vmatpush.msra.mxu0 0.0
    %2926 = vmatpush.msra.mxu0 0.0
    %2927 = vmatpush.msra.mxu0 0.0
    %2928 = vmatpush.msra.mxu0 0.0
    %2929 = vmatpush.msra.mxu0 0.0
    %2930 = vmatpush.msra.mxu0 0.0
    %2931 = vmatpush.msra.mxu0 0.0
    %2932 = vmatpush.msra.mxu0 0.0
    %2933 = vmatpush.msra.mxu0 0.0
    %2934 = vmatpush.msra.mxu0 0.0
    %2935 = vmatpush.msra.mxu0 0.0
    %2936 = vmatpush.msra.mxu0 0.0
    %2937 = vmatpush.msra.mxu0 0.0
    %2938 = vmatpush.msra.mxu0 0.0
    %2939 = vmatpush.msra.mxu0 %v2643
    %2940 = vmatmul.f32.gmra.mxu0 %v2922
    %v2941 = vpop.f32.mrf.mxu0
    %v2942 = vadd.f32 0.0, %v2941
    %2943 = vdwg.mxu0
    %v2945 = vsel %vm667, %v2842, 0
    %2947 = vmatpush.msra.mxu0 0.0
    %2948 = vmatpush.msra.mxu0 0.0
    %2949 = vmatpush.msra.mxu0 0.0
    %2950 = vmatpush.msra.mxu0 0.0
    %2951 = vmatpush.msra.mxu0 0.0
    %2952 = vmatpush.msra.mxu0 0.0
    %2953 = vmatpush.msra.mxu0 0.0
    %2954 = vmatpush.msra.mxu0 0.0
    %2955 = vmatpush.msra.mxu0 0.0
    %2956 = vmatpush.msra.mxu0 0.0
    %2957 = vmatpush.msra.mxu0 0.0
    %2958 = vmatpush.msra.mxu0 0.0
    %2959 = vmatpush.msra.mxu0 0.0
    %2960 = vmatpush.msra.mxu0 0.0
    %2961 = vmatpush.msra.mxu0 0.0
    %2962 = vmatpush.msra.mxu0 %v2663
    %2963 = vmatmul.f32.gmra.mxu0 %v2945
    %v2964 = vpop.f32.mrf.mxu0
    %v2965 = vadd.f32 0.0, %v2964
    %2966 = vdwg.mxu0
    %v2968 = vsel %vm667, %v2843, 0
    %2970 = vmatpush.msra.mxu0 0.0
    %2971 = vmatpush.msra.mxu0 0.0
    %2972 = vmatpush.msra.mxu0 0.0
    %2973 = vmatpush.msra.mxu0 0.0
    %2974 = vmatpush.msra.mxu0 0.0
    %2975 = vmatpush.msra.mxu0 0.0
    %2976 = vmatpush.msra.mxu0 0.0
    %2977 = vmatpush.msra.mxu0 0.0
    %2978 = vmatpush.msra.mxu0 0.0
    %2979 = vmatpush.msra.mxu0 0.0
    %2980 = vmatpush.msra.mxu0 0.0
    %2981 = vmatpush.msra.mxu0 0.0
    %2982 = vmatpush.msra.mxu0 0.0
    %2983 = vmatpush.msra.mxu0 0.0
    %2984 = vmatpush.msra.mxu0 0.0
    %2985 = vmatpush.msra.mxu0 %v2683
    %2986 = vmatmul.f32.gmra.mxu0 %v2968
    %v2987 = vpop.f32.mrf.mxu0
    %v2988 = vadd.f32 0.0, %v2987
    %2989 = vdwg.mxu0
    %v2991 = vsel %vm667, %v2844, 0
    %2993 = vmatpush.msra.mxu0 0.0
    %2994 = vmatpush.msra.mxu0 0.0
    %2995 = vmatpush.msra.mxu0 0.0
    %2996 = vmatpush.msra.mxu0 0.0
    %2997 = vmatpush.msra.mxu0 0.0
    %2998 = vmatpush.msra.mxu0 0.0
    %2999 = vmatpush.msra.mxu0 0.0
    %3000 = vmatpush.msra.mxu0 0.0
    %3001 = vmatpush.msra.mxu0 0.0
    %3002 = vmatpush.msra.mxu0 0.0
    %3003 = vmatpush.msra.mxu0 0.0
    %3004 = vmatpush.msra.mxu0 0.0
    %3005 = vmatpush.msra.mxu0 0.0
    %3006 = vmatpush.msra.mxu0 0.0
    %3007 = vmatpush.msra.mxu0 0.0
    %3008 = vmatpush.msra.mxu0 %v2703
    %3009 = vmatmul.f32.gmra.mxu0 %v2991
    %v3010 = vpop.f32.mrf.mxu0
    %v3011 = vadd.f32 0.0, %v3010
    %3012 = vdwg.mxu0
    %v3013 = vmul.f32 %v2942, %v2875
    %v3014 = vmul.f32 %v2965, %v2890
    %v3015 = vmul.f32 %v2988, %v2905
    %v3016 = vmul.f32 %v3011, %v2920
    %s3017 = scalar_lea.vmem %s5, 1152
    %v3018 = vld [vmem:[%s3017] sm:$0xff]
    %v3019 = vld [vmem:[%s3017 + $0x8] sm:$0xff]
    %v3020 = vld [vmem:[%s3017 + $0x10] sm:$0xff]
    %v3021 = vld [vmem:[%s3017 + $0x18] sm:$0xff]
    %v3022 = vld [vmem:[%s3017 + $0x20] sm:$0xff]
    %v3023 = vld [vmem:[%s3017 + $0x28] sm:$0xff]
    %v3024 = vld [vmem:[%s3017 + $0x30] sm:$0xff]
    %v3025 = vld [vmem:[%s3017 + $0x38] sm:$0xff]
    %v3026 = vld [vmem:[%s3017 + $0x40] sm:$0xff]
    %v3027 = vld [vmem:[%s3017 + $0x48] sm:$0xff]
    %v3028 = vld [vmem:[%s3017 + $0x50] sm:$0xff]
    %v3029 = vld [vmem:[%s3017 + $0x58] sm:$0xff]
    %v3030 = vld [vmem:[%s3017 + $0x60] sm:$0xff]
    %v3031 = vld [vmem:[%s3017 + $0x68] sm:$0xff]
    %v3032 = vld [vmem:[%s3017 + $0x70] sm:$0xff]
    %v3033 = vld [vmem:[%s3017 + $0x78] sm:$0xff]
    %s3034 = scalar_lea.vmem %s6, 36
    %v3035 = vld [vmem:[%s3034] sm:$0x1]
    %v3036 = vld [vmem:[%s3034 + $0x1] sm:$0x1]
    %v3037 = vld [vmem:[%s3034 + $0x2] sm:$0x1]
    %v3038 = vld [vmem:[%s3034 + $0x3] sm:$0x1]
    %v3043 = vperm.slane %v3035, 0
    %v3044 = vperm.slane %v3036, 0
    %v3045 = vperm.slane %v3037, 0
    %v3046 = vperm.slane %v3038, 0
    %3051 = vmatpush.msra.mxu0 0.0
    %3052 = vmatpush.msra.mxu0 0.0
    %3053 = vmatpush.msra.mxu0 0.0
    %3054 = vmatpush.msra.mxu0 0.0
    %3055 = vmatpush.msra.mxu0 0.0
    %3056 = vmatpush.msra.mxu0 0.0
    %3057 = vmatpush.msra.mxu0 0.0
    %3058 = vmatpush.msra.mxu0 0.0
    %3059 = vmatpush.msra.mxu0 0.0
    %3060 = vmatpush.msra.mxu0 0.0
    %3061 = vmatpush.msra.mxu0 0.0
    %3062 = vmatpush.msra.mxu0 0.0
    %3063 = vmatpush.msra.mxu0 %v3021
    %3064 = vmatpush.msra.mxu0 %v3020
    %3065 = vmatpush.msra.mxu0 %v3019
    %3066 = vmatpush.msra.mxu0 %v3018
    %3067 = vmatmul.f32.gmra.mxu0 %v2392
    %v3068 = vpop.f32.mrf.mxu0
    %v3069 = vadd.f32 %v3043, %v3068
    %3070 = vdwg.mxu0
    %3071 = vmatpush.msra.mxu0 0.0
    %3072 = vmatpush.msra.mxu0 0.0
    %3073 = vmatpush.msra.mxu0 0.0
    %3074 = vmatpush.msra.mxu0 0.0
    %3075 = vmatpush.msra.mxu0 0.0
    %3076 = vmatpush.msra.mxu0 0.0
    %3077 = vmatpush.msra.mxu0 0.0
    %3078 = vmatpush.msra.mxu0 0.0
    %3079 = vmatpush.msra.mxu0 0.0
    %3080 = vmatpush.msra.mxu0 0.0
    %3081 = vmatpush.msra.mxu0 0.0
    %3082 = vmatpush.msra.mxu0 0.0
    %3083 = vmatpush.msra.mxu0 %v3025
    %3084 = vmatpush.msra.mxu0 %v3024
    %3085 = vmatpush.msra.mxu0 %v3023
    %3086 = vmatpush.msra.mxu0 %v3022
    %3087 = vmatmul.f32.gmra.mxu0 %v2392
    %v3088 = vpop.f32.mrf.mxu0
    %v3089 = vadd.f32 %v3044, %v3088
    %3090 = vdwg.mxu0
    %3091 = vmatpush.msra.mxu0 0.0
    %3092 = vmatpush.msra.mxu0 0.0
    %3093 = vmatpush.msra.mxu0 0.0
    %3094 = vmatpush.msra.mxu0 0.0
    %3095 = vmatpush.msra.mxu0 0.0
    %3096 = vmatpush.msra.mxu0 0.0
    %3097 = vmatpush.msra.mxu0 0.0
    %3098 = vmatpush.msra.mxu0 0.0
    %3099 = vmatpush.msra.mxu0 0.0
    %3100 = vmatpush.msra.mxu0 0.0
    %3101 = vmatpush.msra.mxu0 0.0
    %3102 = vmatpush.msra.mxu0 0.0
    %3103 = vmatpush.msra.mxu0 %v3029
    %3104 = vmatpush.msra.mxu0 %v3028
    %3105 = vmatpush.msra.mxu0 %v3027
    %3106 = vmatpush.msra.mxu0 %v3026
    %3107 = vmatmul.f32.gmra.mxu0 %v2392
    %v3108 = vpop.f32.mrf.mxu0
    %v3109 = vadd.f32 %v3045, %v3108
    %3110 = vdwg.mxu0
    %3111 = vmatpush.msra.mxu0 0.0
    %3112 = vmatpush.msra.mxu0 0.0
    %3113 = vmatpush.msra.mxu0 0.0
    %3114 = vmatpush.msra.mxu0 0.0
    %3115 = vmatpush.msra.mxu0 0.0
    %3116 = vmatpush.msra.mxu0 0.0
    %3117 = vmatpush.msra.mxu0 0.0
    %3118 = vmatpush.msra.mxu0 0.0
    %3119 = vmatpush.msra.mxu0 0.0
    %3120 = vmatpush.msra.mxu0 0.0
    %3121 = vmatpush.msra.mxu0 0.0
    %3122 = vmatpush.msra.mxu0 0.0
    %3123 = vmatpush.msra.mxu0 %v3033
    %3124 = vmatpush.msra.mxu0 %v3032
    %3125 = vmatpush.msra.mxu0 %v3031
    %3126 = vmatpush.msra.mxu0 %v3030
    %3127 = vmatmul.f32.gmra.mxu0 %v2392
    %v3128 = vpop.f32.mrf.mxu0
    %v3129 = vadd.f32 %v3046, %v3128
    %3130 = vdwg.mxu0
    %s3131 = scalar_lea.vmem %s5, 1920
    %v3132 = vld [vmem:[%s3131] sm:$0xff]
    %v3133 = vld [vmem:[%s3131 + $0x8] sm:$0xff]
    %v3134 = vld [vmem:[%s3131 + $0x10] sm:$0xff]
    %v3135 = vld [vmem:[%s3131 + $0x18] sm:$0xff]
    %v3136 = vld [vmem:[%s3131 + $0x20] sm:$0xff]
    %v3137 = vld [vmem:[%s3131 + $0x28] sm:$0xff]
    %v3138 = vld [vmem:[%s3131 + $0x30] sm:$0xff]
    %v3139 = vld [vmem:[%s3131 + $0x38] sm:$0xff]
    %v3140 = vld [vmem:[%s3131 + $0x40] sm:$0xff]
    %v3141 = vld [vmem:[%s3131 + $0x48] sm:$0xff]
    %v3142 = vld [vmem:[%s3131 + $0x50] sm:$0xff]
    %v3143 = vld [vmem:[%s3131 + $0x58] sm:$0xff]
    %v3144 = vld [vmem:[%s3131 + $0x60] sm:$0xff]
    %v3145 = vld [vmem:[%s3131 + $0x68] sm:$0xff]
    %v3146 = vld [vmem:[%s3131 + $0x70] sm:$0xff]
    %v3147 = vld [vmem:[%s3131 + $0x78] sm:$0xff]
    %s3148 = scalar_lea.vmem %s6, 60
    %v3149 = vld [vmem:[%s3148] sm:$0x1]
    %v3150 = vld [vmem:[%s3148 + $0x1] sm:$0x1]
    %v3151 = vld [vmem:[%s3148 + $0x2] sm:$0x1]
    %v3152 = vld [vmem:[%s3148 + $0x3] sm:$0x1]
    %v3157 = vperm.slane %v3149, 0
    %v3158 = vperm.slane %v3150, 0
    %v3159 = vperm.slane %v3151, 0
    %v3160 = vperm.slane %v3152, 0
    %3165 = vmatpush.msra.mxu0 0.0
    %3166 = vmatpush.msra.mxu0 0.0
    %3167 = vmatpush.msra.mxu0 0.0
    %3168 = vmatpush.msra.mxu0 0.0
    %3169 = vmatpush.msra.mxu0 0.0
    %3170 = vmatpush.msra.mxu0 0.0
    %3171 = vmatpush.msra.mxu0 0.0
    %3172 = vmatpush.msra.mxu0 0.0
    %3173 = vmatpush.msra.mxu0 0.0
    %3174 = vmatpush.msra.mxu0 0.0
    %3175 = vmatpush.msra.mxu0 0.0
    %3176 = vmatpush.msra.mxu0 0.0
    %3177 = vmatpush.msra.mxu0 %v3135
    %3178 = vmatpush.msra.mxu0 %v3134
    %3179 = vmatpush.msra.mxu0 %v3133
    %3180 = vmatpush.msra.mxu0 %v3132
    %3181 = vmatmul.f32.gmra.mxu0 %v2392
    %v3182 = vpop.f32.mrf.mxu0
    %v3183 = vadd.f32 %v3157, %v3182
    %3184 = vdwg.mxu0
    %3185 = vmatpush.msra.mxu0 0.0
    %3186 = vmatpush.msra.mxu0 0.0
    %3187 = vmatpush.msra.mxu0 0.0
    %3188 = vmatpush.msra.mxu0 0.0
    %3189 = vmatpush.msra.mxu0 0.0
    %3190 = vmatpush.msra.mxu0 0.0
    %3191 = vmatpush.msra.mxu0 0.0
    %3192 = vmatpush.msra.mxu0 0.0
    %3193 = vmatpush.msra.mxu0 0.0
    %3194 = vmatpush.msra.mxu0 0.0
    %3195 = vmatpush.msra.mxu0 0.0
    %3196 = vmatpush.msra.mxu0 0.0
    %3197 = vmatpush.msra.mxu0 %v3139
    %3198 = vmatpush.msra.mxu0 %v3138
    %3199 = vmatpush.msra.mxu0 %v3137
    %3200 = vmatpush.msra.mxu0 %v3136
    %3201 = vmatmul.f32.gmra.mxu0 %v2392
    %v3202 = vpop.f32.mrf.mxu0
    %v3203 = vadd.f32 %v3158, %v3202
    %3204 = vdwg.mxu0
    %3205 = vmatpush.msra.mxu0 0.0
    %3206 = vmatpush.msra.mxu0 0.0
    %3207 = vmatpush.msra.mxu0 0.0
    %3208 = vmatpush.msra.mxu0 0.0
    %3209 = vmatpush.msra.mxu0 0.0
    %3210 = vmatpush.msra.mxu0 0.0
    %3211 = vmatpush.msra.mxu0 0.0
    %3212 = vmatpush.msra.mxu0 0.0
    %3213 = vmatpush.msra.mxu0 0.0
    %3214 = vmatpush.msra.mxu0 0.0
    %3215 = vmatpush.msra.mxu0 0.0
    %3216 = vmatpush.msra.mxu0 0.0
    %3217 = vmatpush.msra.mxu0 %v3143
    %3218 = vmatpush.msra.mxu0 %v3142
    %3219 = vmatpush.msra.mxu0 %v3141
    %3220 = vmatpush.msra.mxu0 %v3140
    %3221 = vmatmul.f32.gmra.mxu0 %v2392
    %v3222 = vpop.f32.mrf.mxu0
    %v3223 = vadd.f32 %v3159, %v3222
    %3224 = vdwg.mxu0
    %3225 = vmatpush.msra.mxu0 0.0
    %3226 = vmatpush.msra.mxu0 0.0
    %3227 = vmatpush.msra.mxu0 0.0
    %3228 = vmatpush.msra.mxu0 0.0
    %3229 = vmatpush.msra.mxu0 0.0
    %3230 = vmatpush.msra.mxu0 0.0
    %3231 = vmatpush.msra.mxu0 0.0
    %3232 = vmatpush.msra.mxu0 0.0
    %3233 = vmatpush.msra.mxu0 0.0
    %3234 = vmatpush.msra.mxu0 0.0
    %3235 = vmatpush.msra.mxu0 0.0
    %3236 = vmatpush.msra.mxu0 0.0
    %3237 = vmatpush.msra.mxu0 %v3147
    %3238 = vmatpush.msra.mxu0 %v3146
    %3239 = vmatpush.msra.mxu0 %v3145
    %3240 = vmatpush.msra.mxu0 %v3144
    %3241 = vmatmul.f32.gmra.mxu0 %v2392
    %v3242 = vpop.f32.mrf.mxu0
    %v3243 = vadd.f32 %v3160, %v3242
    %3244 = vdwg.mxu0
    %v3246 = vsel %vm667, %v3069, 0
    %3248 = vmatpush.xpose.msra.mxu0 0.0
    %3249 = vmatpush.xpose.msra.mxu0 0.0
    %3250 = vmatpush.xpose.msra.mxu0 0.0
    %3251 = vmatpush.xpose.msra.mxu0 0.0
    %3252 = vmatpush.xpose.msra.mxu0 0.0
    %3253 = vmatpush.xpose.msra.mxu0 0.0
    %3254 = vmatpush.xpose.msra.mxu0 0.0
    %3255 = vmatpush.xpose.msra.mxu0 0.0
    %3256 = vmatpush.xpose.msra.mxu0 0.0
    %3257 = vmatpush.xpose.msra.mxu0 0.0
    %3258 = vmatpush.xpose.msra.mxu0 0.0
    %3259 = vmatpush.xpose.msra.mxu0 0.0
    %3260 = vmatpush.xpose.msra.mxu0 0.0
    %3261 = vmatpush.xpose.msra.mxu0 0.0
    %3262 = vmatpush.xpose.msra.mxu0 0.0
    %3263 = vmatpush.xpose.msra.mxu0 %v3246
    %3264 = vmatmul.f32.gmra.mxu0 %v2706
    %v3265 = vpop.f32.mrf.mxu0
    %v3266 = vadd.f32 0.0, %v3265
    %3267 = vdwg.mxu0
    %v3269 = vsel %vm667, %v3089, 0
    %3271 = vmatpush.xpose.msra.mxu0 0.0
    %3272 = vmatpush.xpose.msra.mxu0 0.0
    %3273 = vmatpush.xpose.msra.mxu0 0.0
    %3274 = vmatpush.xpose.msra.mxu0 0.0
    %3275 = vmatpush.xpose.msra.mxu0 0.0
    %3276 = vmatpush.xpose.msra.mxu0 0.0
    %3277 = vmatpush.xpose.msra.mxu0 0.0
    %3278 = vmatpush.xpose.msra.mxu0 0.0
    %3279 = vmatpush.xpose.msra.mxu0 0.0
    %3280 = vmatpush.xpose.msra.mxu0 0.0
    %3281 = vmatpush.xpose.msra.mxu0 0.0
    %3282 = vmatpush.xpose.msra.mxu0 0.0
    %3283 = vmatpush.xpose.msra.mxu0 0.0
    %3284 = vmatpush.xpose.msra.mxu0 0.0
    %3285 = vmatpush.xpose.msra.mxu0 0.0
    %3286 = vmatpush.xpose.msra.mxu0 %v3269
    %3287 = vmatmul.f32.gmra.mxu0 %v2732
    %v3288 = vpop.f32.mrf.mxu0
    %v3289 = vadd.f32 0.0, %v3288
    %3290 = vdwg.mxu0
    %v3292 = vsel %vm667, %v3109, 0
    %3294 = vmatpush.xpose.msra.mxu0 0.0
    %3295 = vmatpush.xpose.msra.mxu0 0.0
    %3296 = vmatpush.xpose.msra.mxu0 0.0
    %3297 = vmatpush.xpose.msra.mxu0 0.0
    %3298 = vmatpush.xpose.msra.mxu0 0.0
    %3299 = vmatpush.xpose.msra.mxu0 0.0
    %3300 = vmatpush.xpose.msra.mxu0 0.0
    %3301 = vmatpush.xpose.msra.mxu0 0.0
    %3302 = vmatpush.xpose.msra.mxu0 0.0
    %3303 = vmatpush.xpose.msra.mxu0 0.0
    %3304 = vmatpush.xpose.msra.mxu0 0.0
    %3305 = vmatpush.xpose.msra.mxu0 0.0
    %3306 = vmatpush.xpose.msra.mxu0 0.0
    %3307 = vmatpush.xpose.msra.mxu0 0.0
    %3308 = vmatpush.xpose.msra.mxu0 0.0
    %3309 = vmatpush.xpose.msra.mxu0 %v3292
    %3310 = vmatmul.f32.gmra.mxu0 %v2758
    %v3311 = vpop.f32.mrf.mxu0
    %v3312 = vadd.f32 0.0, %v3311
    %3313 = vdwg.mxu0
    %v3315 = vsel %vm667, %v3129, 0
    %3317 = vmatpush.xpose.msra.mxu0 0.0
    %3318 = vmatpush.xpose.msra.mxu0 0.0
    %3319 = vmatpush.xpose.msra.mxu0 0.0
    %3320 = vmatpush.xpose.msra.mxu0 0.0
    %3321 = vmatpush.xpose.msra.mxu0 0.0
    %3322 = vmatpush.xpose.msra.mxu0 0.0
    %3323 = vmatpush.xpose.msra.mxu0 0.0
    %3324 = vmatpush.xpose.msra.mxu0 0.0
    %3325 = vmatpush.xpose.msra.mxu0 0.0
    %3326 = vmatpush.xpose.msra.mxu0 0.0
    %3327 = vmatpush.xpose.msra.mxu0 0.0
    %3328 = vmatpush.xpose.msra.mxu0 0.0
    %3329 = vmatpush.xpose.msra.mxu0 0.0
    %3330 = vmatpush.xpose.msra.mxu0 0.0
    %3331 = vmatpush.xpose.msra.mxu0 0.0
    %3332 = vmatpush.xpose.msra.mxu0 %v3315
    %3333 = vmatmul.f32.gmra.mxu0 %v2784
    %v3334 = vpop.f32.mrf.mxu0
    %v3335 = vadd.f32 0.0, %v3334
    %3336 = vdwg.mxu0
    %v3337 = vld [vmem:[%s1841] sm:$0xff]
    %vm3338 = vcmp.gt.f32.partialorder %v3337, 0.5
    %v3339 = vsel %vm3338, 1, 0
    %vm3340 = vcmp.eq.s32.totalorder %v3339, 1
    %v3341 = vsel %vm3340, %v3266, -1e+30
    %v3342 = vsel %vm3340, %v3289, -1e+30
    %v3343 = vsel %vm3340, %v3312, -1e+30
    %v3344 = vsel %vm3340, %v3335, -1e+30
    %v3345 = vsel %vm667, %v3341, -inf
    %3346 = vmax.xlane.f32.xlu0 %v3345
    %v3347 = vpop.xlane.xlu0 %3346
    %v3348 = vsel %vm667, %v3342, -inf
    %3349 = vmax.xlane.f32.xlu0 %v3348
    %v3350 = vpop.xlane.xlu0 %3349
    %v3351 = vsel %vm667, %v3343, -inf
    %3352 = vmax.xlane.f32.xlu0 %v3351
    %v3353 = vpop.xlane.xlu0 %3352
    %v3354 = vsel %vm667, %v3344, -inf
    %3355 = vmax.xlane.f32.xlu0 %v3354
    %v3356 = vpop.xlane.xlu0 %3355
    %v3357 = vsub.f32 %v3341, %v3347
    %v3358 = vsub.f32 %v3342, %v3350
    %v3359 = vsub.f32 %v3343, %v3353
    %v3360 = vsub.f32 %v3344, %v3356
    %v3361 = vmul.f32 %v3357, 1.442695
    %v3362 = vpow.pop %v3361
    %v3363 = vmul.f32 %v3358, 1.442695
    %v3364 = vpow.pop %v3363
    %v3365 = vmul.f32 %v3359, 1.442695
    %v3366 = vpow.pop %v3365
    %v3367 = vmul.f32 %v3360, 1.442695
    %v3368 = vpow.pop %v3367
    %v3369 = vmul.f32 %v3362, %v3337
    %v3370 = vmul.f32 %v3364, %v3337
    %v3371 = vmul.f32 %v3366, %v3337
    %v3372 = vmul.f32 %v3368, %v3337
    %v3373 = vsel %vm667, %v3369, 0.0
    %3374 = vadd.xlane.f32.xlu0 %v3373
    %v3375 = vpop.xlane.xlu0 %3374
    %v3376 = vsel %vm667, %v3370, 0.0
    %3377 = vadd.xlane.f32.xlu0 %v3376
    %v3378 = vpop.xlane.xlu0 %3377
    %v3379 = vsel %vm667, %v3371, 0.0
    %3380 = vadd.xlane.f32.xlu0 %v3379
    %v3381 = vpop.xlane.xlu0 %3380
    %v3382 = vsel %vm667, %v3372, 0.0
    %3383 = vadd.xlane.f32.xlu0 %v3382
    %v3384 = vpop.xlane.xlu0 %3383
    %v3385 = vmax.f32 %v3375, 1e-30
    %v3386 = vmax.f32 %v3378, 1e-30
    %v3387 = vmax.f32 %v3381, 1e-30
    %v3388 = vmax.f32 %v3384, 1e-30
    %v3389 = vrcp.pop %v3385
    %v3390 = vmul.f32 %v3385, %v3389
    %v3391 = vsub.f32 1.0, %v3390
    %v3392 = vmul.f32 %v3389, %v3391
    %v3393 = vadd.f32 %v3389, %v3392
    %vm3394 = vweird.f32 %v3385
    %vm3395 = vweird.f32 %v3389
    %vm3396 = vmor %vm3394, %vm3395
    %v3397 = vsel %vm3396, %v3389, %v3393
    %v3398 = vand.u32 2147483647, %v3385
    %vm3399 = vcmp.eq.f32.partialorder %v3398, 8.507059e+37
    %v3400 = vand.u32 %v3385, 2147483648
    %v3401 = vor.u32 1.1754944e-38, %v3400
    %v3402 = vsel %vm3399, %v3401, %v3397
    %v3403 = vmul.f32 1.0, %v3402
    %v3404 = vrcp.pop %v3386
    %v3405 = vmul.f32 %v3386, %v3404
    %v3406 = vsub.f32 1.0, %v3405
    %v3407 = vmul.f32 %v3404, %v3406
    %v3408 = vadd.f32 %v3404, %v3407
    %vm3409 = vweird.f32 %v3386
    %vm3410 = vweird.f32 %v3404
    %vm3411 = vmor %vm3409, %vm3410
    %v3412 = vsel %vm3411, %v3404, %v3408
    %v3413 = vand.u32 2147483647, %v3386
    %vm3414 = vcmp.eq.f32.partialorder %v3413, 8.507059e+37
    %v3415 = vand.u32 %v3386, 2147483648
    %v3416 = vor.u32 1.1754944e-38, %v3415
    %v3417 = vsel %vm3414, %v3416, %v3412
    %v3418 = vmul.f32 1.0, %v3417
    %v3419 = vrcp.pop %v3387
    %v3420 = vmul.f32 %v3387, %v3419
    %v3421 = vsub.f32 1.0, %v3420
    %v3422 = vmul.f32 %v3419, %v3421
    %v3423 = vadd.f32 %v3419, %v3422
    %vm3424 = vweird.f32 %v3387
    %vm3425 = vweird.f32 %v3419
    %vm3426 = vmor %vm3424, %vm3425
    %v3427 = vsel %vm3426, %v3419, %v3423
    %v3428 = vand.u32 2147483647, %v3387
    %vm3429 = vcmp.eq.f32.partialorder %v3428, 8.507059e+37
    %v3430 = vand.u32 %v3387, 2147483648
    %v3431 = vor.u32 1.1754944e-38, %v3430
    %v3432 = vsel %vm3429, %v3431, %v3427
    %v3433 = vmul.f32 1.0, %v3432
    %v3434 = vrcp.pop %v3388
    %v3435 = vmul.f32 %v3388, %v3434
    %v3436 = vsub.f32 1.0, %v3435
    %v3437 = vmul.f32 %v3434, %v3436
    %v3438 = vadd.f32 %v3434, %v3437
    %vm3439 = vweird.f32 %v3388
    %vm3440 = vweird.f32 %v3434
    %vm3441 = vmor %vm3439, %vm3440
    %v3442 = vsel %vm3441, %v3434, %v3438
    %v3443 = vand.u32 2147483647, %v3388
    %vm3444 = vcmp.eq.f32.partialorder %v3443, 8.507059e+37
    %v3445 = vand.u32 %v3388, 2147483648
    %v3446 = vor.u32 1.1754944e-38, %v3445
    %v3447 = vsel %vm3444, %v3446, %v3442
    %v3448 = vmul.f32 1.0, %v3447
    %v3450 = vsel %vm667, %v3369, 0
    %3452 = vmatpush.msra.mxu0 0.0
    %3453 = vmatpush.msra.mxu0 0.0
    %3454 = vmatpush.msra.mxu0 0.0
    %3455 = vmatpush.msra.mxu0 0.0
    %3456 = vmatpush.msra.mxu0 0.0
    %3457 = vmatpush.msra.mxu0 0.0
    %3458 = vmatpush.msra.mxu0 0.0
    %3459 = vmatpush.msra.mxu0 0.0
    %3460 = vmatpush.msra.mxu0 0.0
    %3461 = vmatpush.msra.mxu0 0.0
    %3462 = vmatpush.msra.mxu0 0.0
    %3463 = vmatpush.msra.mxu0 0.0
    %3464 = vmatpush.msra.mxu0 0.0
    %3465 = vmatpush.msra.mxu0 0.0
    %3466 = vmatpush.msra.mxu0 0.0
    %3467 = vmatpush.msra.mxu0 %v3183
    %3468 = vmatmul.f32.gmra.mxu0 %v3450
    %v3469 = vpop.f32.mrf.mxu0
    %v3470 = vadd.f32 0.0, %v3469
    %3471 = vdwg.mxu0
    %v3473 = vsel %vm667, %v3370, 0
    %3475 = vmatpush.msra.mxu0 0.0
    %3476 = vmatpush.msra.mxu0 0.0
    %3477 = vmatpush.msra.mxu0 0.0
    %3478 = vmatpush.msra.mxu0 0.0
    %3479 = vmatpush.msra.mxu0 0.0
    %3480 = vmatpush.msra.mxu0 0.0
    %3481 = vmatpush.msra.mxu0 0.0
    %3482 = vmatpush.msra.mxu0 0.0
    %3483 = vmatpush.msra.mxu0 0.0
    %3484 = vmatpush.msra.mxu0 0.0
    %3485 = vmatpush.msra.mxu0 0.0
    %3486 = vmatpush.msra.mxu0 0.0
    %3487 = vmatpush.msra.mxu0 0.0
    %3488 = vmatpush.msra.mxu0 0.0
    %3489 = vmatpush.msra.mxu0 0.0
    %3490 = vmatpush.msra.mxu0 %v3203
    %3491 = vmatmul.f32.gmra.mxu0 %v3473
    %v3492 = vpop.f32.mrf.mxu0
    %v3493 = vadd.f32 0.0, %v3492
    %3494 = vdwg.mxu0
    %v3496 = vsel %vm667, %v3371, 0
    %3498 = vmatpush.msra.mxu0 0.0
    %3499 = vmatpush.msra.mxu0 0.0
    %3500 = vmatpush.msra.mxu0 0.0
    %3501 = vmatpush.msra.mxu0 0.0
    %3502 = vmatpush.msra.mxu0 0.0
    %3503 = vmatpush.msra.mxu0 0.0
    %3504 = vmatpush.msra.mxu0 0.0
    %3505 = vmatpush.msra.mxu0 0.0
    %3506 = vmatpush.msra.mxu0 0.0
    %3507 = vmatpush.msra.mxu0 0.0
    %3508 = vmatpush.msra.mxu0 0.0
    %3509 = vmatpush.msra.mxu0 0.0
    %3510 = vmatpush.msra.mxu0 0.0
    %3511 = vmatpush.msra.mxu0 0.0
    %3512 = vmatpush.msra.mxu0 0.0
    %3513 = vmatpush.msra.mxu0 %v3223
    %3514 = vmatmul.f32.gmra.mxu0 %v3496
    %v3515 = vpop.f32.mrf.mxu0
    %v3516 = vadd.f32 0.0, %v3515
    %3517 = vdwg.mxu0
    %v3519 = vsel %vm667, %v3372, 0
    %3521 = vmatpush.msra.mxu0 0.0
    %3522 = vmatpush.msra.mxu0 0.0
    %3523 = vmatpush.msra.mxu0 0.0
    %3524 = vmatpush.msra.mxu0 0.0
    %3525 = vmatpush.msra.mxu0 0.0
    %3526 = vmatpush.msra.mxu0 0.0
    %3527 = vmatpush.msra.mxu0 0.0
    %3528 = vmatpush.msra.mxu0 0.0
    %3529 = vmatpush.msra.mxu0 0.0
    %3530 = vmatpush.msra.mxu0 0.0
    %3531 = vmatpush.msra.mxu0 0.0
    %3532 = vmatpush.msra.mxu0 0.0
    %3533 = vmatpush.msra.mxu0 0.0
    %3534 = vmatpush.msra.mxu0 0.0
    %3535 = vmatpush.msra.mxu0 0.0
    %3536 = vmatpush.msra.mxu0 %v3243
    %3537 = vmatmul.f32.gmra.mxu0 %v3519
    %v3538 = vpop.f32.mrf.mxu0
    %v3539 = vadd.f32 0.0, %v3538
    %3540 = vdwg.mxu0
    %v3541 = vmul.f32 %v3470, %v3403
    %v3542 = vmul.f32 %v3493, %v3418
    %v3543 = vmul.f32 %v3516, %v3433
    %v3544 = vmul.f32 %v3539, %v3448
    %v3545 = vadd.f32 %v3013, %v3541
    %v3546 = vadd.f32 %v3014, %v3542
    %v3547 = vadd.f32 %v3015, %v3543
    %v3548 = vadd.f32 %v3016, %v3544
    %v3549 = vmul.f32 %v3545, 0.5
    %v3550 = vmul.f32 %v3546, 0.5
    %v3551 = vmul.f32 %v3547, 0.5
    %v3552 = vmul.f32 %v3548, 0.5
    %s3553 = scalar_lea.vmem %s8, 6
    %v3554 = vld [vmem:[%s3553] sm:$0x1]
    %s3555 = scalar_lea.vmem %s7, 64
    %v3556 = vld [vmem:[%s3555] sm:$0xff]
    %v3558 = vsel %vm667, %v3549, 0
    %3560 = vmatpush.msra.mxu0 0.0
    %3561 = vmatpush.msra.mxu0 0.0
    %3562 = vmatpush.msra.mxu0 0.0
    %3563 = vmatpush.msra.mxu0 0.0
    %3564 = vmatpush.msra.mxu0 0.0
    %3565 = vmatpush.msra.mxu0 0.0
    %3566 = vmatpush.msra.mxu0 0.0
    %3567 = vmatpush.msra.mxu0 0.0
    %3568 = vmatpush.msra.mxu0 0.0
    %3569 = vmatpush.msra.mxu0 0.0
    %3570 = vmatpush.msra.mxu0 0.0
    %3571 = vmatpush.msra.mxu0 0.0
    %3572 = vmatpush.msra.mxu0 0.0
    %3573 = vmatpush.msra.mxu0 0.0
    %3574 = vmatpush.msra.mxu0 0.0
    %3575 = vmatpush.msra.mxu0 %v3556
    %3576 = vmatmul.f32.gmra.mxu0 %v3558
    %v3577 = vpop.f32.mrf.mxu0
    %v3578 = vadd.f32 0.0, %v3577
    %3579 = vdwg.mxu0
    %v3581 = vperm.slane %v3554, 0
    %v3583 = vadd.f32 %v3581, %v3578
    %s3584 = scalar_lea.vmem %s7, 72
    %v3585 = vld [vmem:[%s3584] sm:$0xff]
    %v3587 = vsel %vm667, %v3550, 0
    %3589 = vmatpush.msra.mxu0 0.0
    %3590 = vmatpush.msra.mxu0 0.0
    %3591 = vmatpush.msra.mxu0 0.0
    %3592 = vmatpush.msra.mxu0 0.0
    %3593 = vmatpush.msra.mxu0 0.0
    %3594 = vmatpush.msra.mxu0 0.0
    %3595 = vmatpush.msra.mxu0 0.0
    %3596 = vmatpush.msra.mxu0 0.0
    %3597 = vmatpush.msra.mxu0 0.0
    %3598 = vmatpush.msra.mxu0 0.0
    %3599 = vmatpush.msra.mxu0 0.0
    %3600 = vmatpush.msra.mxu0 0.0
    %3601 = vmatpush.msra.mxu0 0.0
    %3602 = vmatpush.msra.mxu0 0.0
    %3603 = vmatpush.msra.mxu0 0.0
    %3604 = vmatpush.msra.mxu0 %v3585
    %3605 = vmatmul.f32.gmra.mxu0 %v3587
    %v3606 = vpop.f32.mrf.mxu0
    %v3607 = vadd.f32 0.0, %v3606
    %3608 = vdwg.mxu0
    %v3609 = vadd.f32 %v3583, %v3607
    %s3610 = scalar_lea.vmem %s7, 80
    %v3611 = vld [vmem:[%s3610] sm:$0xff]
    %v3613 = vsel %vm667, %v3551, 0
    %3615 = vmatpush.msra.mxu0 0.0
    %3616 = vmatpush.msra.mxu0 0.0
    %3617 = vmatpush.msra.mxu0 0.0
    %3618 = vmatpush.msra.mxu0 0.0
    %3619 = vmatpush.msra.mxu0 0.0
    %3620 = vmatpush.msra.mxu0 0.0
    %3621 = vmatpush.msra.mxu0 0.0
    %3622 = vmatpush.msra.mxu0 0.0
    %3623 = vmatpush.msra.mxu0 0.0
    %3624 = vmatpush.msra.mxu0 0.0
    %3625 = vmatpush.msra.mxu0 0.0
    %3626 = vmatpush.msra.mxu0 0.0
    %3627 = vmatpush.msra.mxu0 0.0
    %3628 = vmatpush.msra.mxu0 0.0
    %3629 = vmatpush.msra.mxu0 0.0
    %3630 = vmatpush.msra.mxu0 %v3611
    %3631 = vmatmul.f32.gmra.mxu0 %v3613
    %v3632 = vpop.f32.mrf.mxu0
    %v3633 = vadd.f32 0.0, %v3632
    %3634 = vdwg.mxu0
    %v3635 = vadd.f32 %v3609, %v3633
    %s3636 = scalar_lea.vmem %s7, 88
    %v3637 = vld [vmem:[%s3636] sm:$0xff]
    %v3639 = vsel %vm667, %v3552, 0
    %3641 = vmatpush.msra.mxu0 0.0
    %3642 = vmatpush.msra.mxu0 0.0
    %3643 = vmatpush.msra.mxu0 0.0
    %3644 = vmatpush.msra.mxu0 0.0
    %3645 = vmatpush.msra.mxu0 0.0
    %3646 = vmatpush.msra.mxu0 0.0
    %3647 = vmatpush.msra.mxu0 0.0
    %3648 = vmatpush.msra.mxu0 0.0
    %3649 = vmatpush.msra.mxu0 0.0
    %3650 = vmatpush.msra.mxu0 0.0
    %3651 = vmatpush.msra.mxu0 0.0
    %3652 = vmatpush.msra.mxu0 0.0
    %3653 = vmatpush.msra.mxu0 0.0
    %3654 = vmatpush.msra.mxu0 0.0
    %3655 = vmatpush.msra.mxu0 0.0
    %3656 = vmatpush.msra.mxu0 %v3637
    %3657 = vmatmul.f32.gmra.mxu0 %v3639
    %v3658 = vpop.f32.mrf.mxu0
    %v3659 = vadd.f32 0.0, %v3658
    %3660 = vdwg.mxu0
    %v3661 = vadd.f32 %v3635, %v3659
    %s3662 = sld [smem:[#allocation2 + $0x2]]
    %v3663 = vstv %s3662
    %v3664 = vmul.f32 %v2209, %v3663
    %v3665 = vadd.f32 %v3661, %v3664
    %v3666 = vsel %vm238, %v3665, 0.0
    %3667 = vadd.xlane.f32.xlu0 %v3666
    %v3668 = vpop.xlane.xlu0 %3667
    %v3669 = vmul.f32 %v3668, %v2178
    %v3670 = vsub.f32 %v3665, %v3669
    %v3671 = vmul.f32 %v3670, %v3670
    %v3672 = vsel %vm238, %v3671, 0.0
    %3673 = vadd.xlane.f32.xlu0 %v3672
    %v3674 = vpop.xlane.xlu0 %3673
    %v3675 = vmul.f32 %v3674, %v2178
    %v3676 = vadd.f32 %v3675, 1e-05
    %v3677 = vrsqrt.pop %v3676
    %v3678 = vmul.f32 %v3677, %v3676
    %v3679 = vmul.f32 %v3678, %v3677
    %v3680 = vmul.f32 0.5, %v3679
    %v3681 = vsub.f32 1.5, %v3680
    %v3682 = vmul.f32 %v3677, %v3681
    %vm3683 = vweird.f32 %v3676
    %vm3684 = vweird.f32 %v3677
    %vm3685 = vmor %vm3683, %vm3684
    %v3686 = vsel %vm3685, %v3677, %v3682
    %v3687 = vmul.f32 %v3670, %v3686
    %s3688 = scalar_lea.vmem %s8, 7
    %v3689 = vld [vmem:[%s3688] sm:$0x1]
    %v3691 = vperm.slane %v3689, 0
    %v3693 = vmul.f32 %v3687, %v3691
    %s3694 = scalar_lea.vmem %s8, 8
    %v3695 = vld [vmem:[%s3694] sm:$0x1]
    %v3697 = vperm.slane %v3695, 0
    %v3699 = vadd.f32 %v3693, %v3697
    %v3700 = vld [vmem:[%s9] sm:$0xff]
    %v3701 = vld [vmem:[%s9 + $0x8] sm:$0xff]
    %v3702 = vld [vmem:[%s9 + $0x10] sm:$0xff]
    %v3703 = vld [vmem:[%s9 + $0x18] sm:$0xff]
    %v3704 = vld [vmem:[%s10] sm:$0x1]
    %v3706 = vperm.slane %v3704, 0
    %v3709 = vsel %vm238, %v3699, 0
    %3711 = vmatpush.msra.mxu0 0.0
    %3712 = vmatpush.msra.mxu0 0.0
    %3713 = vmatpush.msra.mxu0 0.0
    %3714 = vmatpush.msra.mxu0 0.0
    %3715 = vmatpush.msra.mxu0 0.0
    %3716 = vmatpush.msra.mxu0 0.0
    %3717 = vmatpush.msra.mxu0 0.0
    %3718 = vmatpush.msra.mxu0 0.0
    %3719 = vmatpush.msra.mxu0 0.0
    %3720 = vmatpush.msra.mxu0 0.0
    %3721 = vmatpush.msra.mxu0 0.0
    %3722 = vmatpush.msra.mxu0 0.0
    %3723 = vmatpush.msra.mxu0 %v3703
    %3724 = vmatpush.msra.mxu0 %v3702
    %3725 = vmatpush.msra.mxu0 %v3701
    %3726 = vmatpush.msra.mxu0 %v3700
    %3727 = vmatmul.f32.gmra.mxu0 %v3709
    %v3728 = vpop.f32.mrf.mxu0
    %v3729 = vadd.f32 %v3706, %v3728
    %3730 = vdwg.mxu0
    %3731 = vst.msk [vmem:[#allocation5] sm:$0xff] %vm667, %v3729
    // Predicated region
    $region54: #{hgt_forward.1} parent=1 // pred_check
      _
    $region55: #{hgt_forward.1} parent=1 // pred_check_branch
      %3733 = sbr.rel (0) target = $region57
    $region56: #{hgt_forward.1} parent=1 // pred_region
      %3735 = vsyncadd [#allocation3], 0
      %s3737 = sshll.u32 [#allocation5], 4
      %s3738 = int_to_ptr.vmem [resolvable:$true] %s3737
      %s3739 = sshll.u32 %s12, 4
      %s3740 = int_to_ptr.hbm [resolvable:$true] %s3739
      %3742 = dma.vmem_to_hbm [thread:$0]  %s3738, 128, %s3740, [#allocation3]
    $region57: #{hgt_forward.1} parent=1 // pred_fallthru
      _
    // Predicated region
    $region58: #{hgt_forward.1} parent=1 // pred_check
      _
    $region59: #{hgt_forward.1} parent=1 // pred_check_branch
      %3744 = sbr.rel (0) target = $region61
    $region60: #{hgt_forward.1} parent=1 // pred_region
      %3746 = dma.done [#allocation3], 128
    $region61: #{hgt_forward.1} parent=1 // pred_fallthru
      _
    %3747 = vsyncpa [#allocation3], 1
    %3748 = vsyncpa [#allocation4], 1

</llo_original>
